<compile_context>
chip_gen: v5e
topology: v5e:2x2
jax: 0.10.0
libtpu: 0.0.40
codegen_flags: <defaults>
</compile_context>

<pallas_src>
import functools

import jax
import jax.numpy as jnp
from jax.experimental import pallas as pl
from jax.experimental.pallas import tpu as pltpu

FEAT_IN = 794     # 28*28 image + 10-way one-hot label
FEAT_PAD = 896    # 7 * 128, lane-aligned


def _leaky_relu(x, slope=0.2):
    return jnp.where(x > 0, x, slope * x)


def _round_up(n, m):
    return ((n + m - 1) // m) * m


def disc_mlp_kernel(x_ref, w1_ref, b1_ref, w2_ref, b2_ref,
                    w3_ref, b3_ref, w4_ref, b4_ref, o_ref):
    # Activations are cast to bf16 only at the MXU inputs; accumulation,
    # bias-add and LeakyReLU stay in f32.
    # Layer 1: (TB, 896) @ (896, 1024)
    h = jnp.dot(x_ref[...].astype(jnp.bfloat16), w1_ref[...],
                preferred_element_type=jnp.float32)
    h = _leaky_relu(h + b1_ref[...])
    # Layer 2: (TB, 1024) @ (1024, 512)
    h = jnp.dot(h.astype(jnp.bfloat16), w2_ref[...],
                preferred_element_type=jnp.float32)
    h = _leaky_relu(h + b2_ref[...])
    # Layer 3: (TB, 512) @ (512, 256)
    h = jnp.dot(h.astype(jnp.bfloat16), w3_ref[...],
                preferred_element_type=jnp.float32)
    h = _leaky_relu(h + b3_ref[...])
    # Layer 4: (TB, 256) x (1, 256) -> row-sum on VPU/XLU (avoids N=1 matmul).
    logits = jnp.sum(h * w4_ref[...], axis=-1, keepdims=True)   # (TB, 1)
    o_ref[...] = jax.nn.sigmoid(logits + b4_ref[...])
    # TODO(synk): Dropout(0.3) is eval-mode identity here.


def _resident_spec(shape):
    # Whole array as one block, same block for every grid step (stays in VMEM).
    return pl.BlockSpec(shape, lambda i: tuple(0 for _ in shape))


@functools.partial(jax.jit, static_argnames=("batch_tile",))
def discriminator_forward(x, label, kparams, batch_tile=128):
    """x: (B, 1, 28, 28) f32, label: (B,) int32. Returns (B, 1) f32.

    kparams must come from prepare_params() (pre-padded / bf16 weights).
    """
    B = x.shape[0]
    # Glue: flatten (torch.flatten(x, 1) semantics), one-hot, concat, lane-pad.
    x_flat = x.reshape(B, -1).astype(jnp.float32)                    # (B, 784)
    one_hot = jax.nn.one_hot(label, 10, dtype=jnp.float32)           # (B, 10)
    feat = jnp.concatenate(
        [x_flat, one_hot, jnp.zeros((B, FEAT_PAD - FEAT_IN), jnp.float32)],
        axis=1)                                                      # (B, 896)

    # Batch tiling: tile multiple of 8, capped at batch_tile; weights resident.
    tb = min(batch_tile, _round_up(B, 8))
    b_pad = _round_up(B, tb)
    if b_pad != B:
        feat = jnp.pad(feat, ((0, b_pad - B), (0, 0)))

    w1, b1, w2, b2, w3, b3, w4, b4 = kparams
    weight_args = (w1, b1, w2, b2, w3, b3, w4, b4)

    in_specs = [pl.BlockSpec((tb, FEAT_PAD), lambda i: (i, 0))]
    in_specs += [_resident_spec(a.shape) for a in weight_args]

    out = pl.pallas_call(
        disc_mlp_kernel,
        out_shape=jax.ShapeDtypeStruct((b_pad, 1), jnp.float32),
        grid=(b_pad // tb,),
        in_specs=in_specs,
        out_specs=pl.BlockSpec((tb, 1), lambda i: (i, 0)),
        compiler_params=pltpu.CompilerParams(
            dimension_semantics=("parallel",)),
    )(feat, *weight_args)

    return out[:B] if b_pad != B else out


def init_params(key):
    """Torch-like f32 params: uniform +-1/sqrt(fan_in), Linear layout."""
    dims = [(794, 1024), (1024, 512), (512, 256), (256, 1)]
    params = []
    keys = jax.random.split(key, 2 * len(dims))
    for i, (fan_in, fan_out) in enumerate(dims):
        bound = 1.0 / jnp.sqrt(fan_in)
        w = jax.random.uniform(keys[2 * i], (fan_in, fan_out),
                               minval=-bound, maxval=bound, dtype=jnp.float32)
        b = jax.random.uniform(keys[2 * i + 1], (1, fan_out),
                               minval=-bound, maxval=bound, dtype=jnp.float32)
        params += [w, b]
    return tuple(params)


def prepare_params(params):
    """One-time conversion of torch-layout f32 params into kernel layout.

    - W1 rows zero-padded 794 -> 896 (matches the zero-padded feature slab).
    - W1..W3 stored in bf16 (kernel accumulates in f32).
    - W4 stored as a (1, 256) f32 row for the VPU reduction; biases stay f32.
    """
    w1, b1, w2, b2, w3, b3, w4, b4 = params
    w1p = jnp.pad(w1, ((0, FEAT_PAD - w1.shape[0]), (0, 0)))
    return (w1p.astype(jnp.bfloat16),
            b1.reshape(1, -1).astype(jnp.float32),
            w2.astype(jnp.bfloat16),
            b2.reshape(1, -1).astype(jnp.float32),
            w3.astype(jnp.bfloat16),
            b3.reshape(1, -1).astype(jnp.float32),
            w4.reshape(-1)[None, :].astype(jnp.float32),   # (1, 256)
            b4.reshape(1, 1).astype(jnp.float32))


def reference_forward_kernel_numerics(x, label, kparams):
    """Pure-JAX reference using the SAME prepared (bf16) weights as the kernel."""
    w1, b1, w2, b2, w3, b3, w4, b4 = kparams
    B = x.shape[0]
    x_flat = x.reshape(B, -1).astype(jnp.float32)
    one_hot = jax.nn.one_hot(label, 10, dtype=jnp.float32)
    feat = jnp.concatenate(
        [x_flat, one_hot, jnp.zeros((B, FEAT_PAD - FEAT_IN), jnp.float32)], 1)
    h = _leaky_relu(jnp.dot(feat.astype(jnp.bfloat16), w1,
                            preferred_element_type=jnp.float32) + b1)
    h = _leaky_relu(jnp.dot(h.astype(jnp.bfloat16), w2,
                            preferred_element_type=jnp.float32) + b2)
    h = _leaky_relu(jnp.dot(h.astype(jnp.bfloat16), w3,
                            preferred_element_type=jnp.float32) + b3)
    logits = jnp.sum(h * w4, axis=-1, keepdims=True) + b4
    return jax.nn.sigmoid(logits)


def reference_forward_f32(x, label, params):
    """Full-f32 math identical to the PyTorch module (eval mode)."""
    B = x.shape[0]
    x_flat = x.reshape(B, -1)
    one_hot = jax.nn.one_hot(label, 10, dtype=x_flat.dtype)
    h = jnp.concatenate([x_flat, one_hot], axis=1)
    w1, b1, w2, b2, w3, b3, w4, b4 = params
    h = _leaky_relu(h @ w1 + b1)
    h = _leaky_relu(h @ w2 + b2)
    h = _leaky_relu(h @ w3 + b3)
    return jax.nn.sigmoid(h @ w4 + b4)


if __name__ == "__main__":
    key = jax.random.PRNGKey(0)
    k_param, k_x, k_lbl = jax.random.split(key, 3)

    B = 8
    x = jax.random.normal(k_x, (B, 1, 28, 28), dtype=jnp.float32)
    label = jax.random.randint(k_lbl, (B,), 0, 10, dtype=jnp.int32)

    torch_like_params = init_params(k_param)        # f32, torch Linear layout
    kparams = prepare_params(torch_like_params)     # one-time pad + bf16 cast

    out = discriminator_forward(x, label, kparams)
    out = jax.block_until_ready(out)
    assert out.shape == (B, 1)

    # Tight check vs. a JAX reference with identical bf16-weight numerics.
    ref_bf16 = reference_forward_kernel_numerics(x, label, kparams)
    assert jnp.allclose(out, ref_bf16, atol=1e-3, rtol=1e-3), \
        "mismatch vs bf16-numerics reference"

    # Loose check vs. the full-f32 PyTorch-equivalent math.
    ref_f32 = reference_forward_f32(x, label, torch_like_params)
    assert jnp.allclose(out, ref_f32, atol=5e-2, rtol=5e-2), \
        "mismatch vs f32 reference"

    print("KERNEL_OK")
</pallas_src>

<mosaic_0001>
module attributes {stable_mosaic.version = 11 : i64} {
  func.func @disc_mlp_kernel(%arg0: i32, %arg1: memref<8x896xf32, #tpu.memory_space<vmem>>, %arg2: memref<896x1024xbf16, #tpu.memory_space<vmem>>, %arg3: memref<1x1024xf32, #tpu.memory_space<vmem>>, %arg4: memref<1024x512xbf16, #tpu.memory_space<vmem>>, %arg5: memref<1x512xf32, #tpu.memory_space<vmem>>, %arg6: memref<512x256xbf16, #tpu.memory_space<vmem>>, %arg7: memref<1x256xf32, #tpu.memory_space<vmem>>, %arg8: memref<1x256xf32, #tpu.memory_space<vmem>>, %arg9: memref<1x1xf32, #tpu.memory_space<vmem>>, %arg10: memref<8x1xf32, #tpu.memory_space<vmem>>) attributes {dimension_semantics = [#tpu.dimension_semantics<parallel>], iteration_bounds = array<i64: 1>, scalar_prefetch = 0 : i64, scratch_operands = 0 : i64, tpu.core_type = #tpu.core_type<tc>, window_params = [{transform_indices = @transform_0, window_bounds = array<i64: 8, 896>}, {pipeline_mode = #tpu.pipeline_mode<synchronous>, transform_indices = @transform_1, window_bounds = array<i64: 896, 1024>}, {pipeline_mode = #tpu.pipeline_mode<synchronous>, transform_indices = @transform_2, window_bounds = array<i64: 1, 1024>}, {pipeline_mode = #tpu.pipeline_mode<synchronous>, transform_indices = @transform_3, window_bounds = array<i64: 1024, 512>}, {pipeline_mode = #tpu.pipeline_mode<synchronous>, transform_indices = @transform_4, window_bounds = array<i64: 1, 512>}, {pipeline_mode = #tpu.pipeline_mode<synchronous>, transform_indices = @transform_5, window_bounds = array<i64: 512, 256>}, {pipeline_mode = #tpu.pipeline_mode<synchronous>, transform_indices = @transform_6, window_bounds = array<i64: 1, 256>}, {pipeline_mode = #tpu.pipeline_mode<synchronous>, transform_indices = @transform_7, window_bounds = array<i64: 1, 256>}, {pipeline_mode = #tpu.pipeline_mode<synchronous>, transform_indices = @transform_8, window_bounds = array<i64: 1, 1>}, {transform_indices = @transform_9, window_bounds = array<i64: 8, 1>}]} {
    %c0 = arith.constant 0 : index
    %c0_0 = arith.constant 0 : index
    %0 = vector.load %arg1[%c0, %c0_0] : memref<8x896xf32, #tpu.memory_space<vmem>>, vector<8x896xf32>
    %1 = arith.truncf %0 : vector<8x896xf32> to vector<8x896xbf16>
    %c0_1 = arith.constant 0 : index
    %c0_2 = arith.constant 0 : index
    %2 = vector.load %arg2[%c0_1, %c0_2] : memref<896x1024xbf16, #tpu.memory_space<vmem>>, vector<896x1024xbf16>
    %cst = arith.constant dense<0.000000e+00> : vector<8x1024xf32>
    %3 = tpu.matmul %1, %2, %cst {dimension_numbers = #tpu.dot_dimension_numbers<[1], [0], [0], [1], [0, 0, 1, 1], [], []>} : vector<8x896xbf16>, vector<896x1024xbf16>, vector<8x1024xf32> -> vector<8x1024xf32>
    %c0_3 = arith.constant 0 : index
    %c0_4 = arith.constant 0 : index
    %4 = vector.load %arg3[%c0_3, %c0_4] : memref<1x1024xf32, #tpu.memory_space<vmem>>, vector<1x1024xf32>
    %5 = vector.broadcast %4 : vector<1x1024xf32> to vector<8x1024xf32>
    %6 = arith.addf %3, %5 : vector<8x1024xf32>
    %cst_5 = arith.constant 0.000000e+00 : f32
    %7 = vector.broadcast %cst_5 : f32 to vector<8x1024xf32>
    %8 = arith.cmpf ogt, %6, %7 : vector<8x1024xf32>
    %cst_6 = arith.constant 2.000000e-01 : f32
    %9 = vector.broadcast %cst_6 : f32 to vector<8x1024xf32>
    %10 = arith.mulf %9, %6 : vector<8x1024xf32>
    %11 = arith.select %8, %6, %10 : vector<8x1024xi1>, vector<8x1024xf32>
    %12 = arith.truncf %11 : vector<8x1024xf32> to vector<8x1024xbf16>
    %c0_7 = arith.constant 0 : index
    %c0_8 = arith.constant 0 : index
    %13 = vector.load %arg4[%c0_7, %c0_8] : memref<1024x512xbf16, #tpu.memory_space<vmem>>, vector<1024x512xbf16>
    %cst_9 = arith.constant dense<0.000000e+00> : vector<8x512xf32>
    %14 = tpu.matmul %12, %13, %cst_9 {dimension_numbers = #tpu.dot_dimension_numbers<[1], [0], [0], [1], [0, 0, 1, 1], [], []>} : vector<8x1024xbf16>, vector<1024x512xbf16>, vector<8x512xf32> -> vector<8x512xf32>
    %c0_10 = arith.constant 0 : index
    %c0_11 = arith.constant 0 : index
    %15 = vector.load %arg5[%c0_10, %c0_11] : memref<1x512xf32, #tpu.memory_space<vmem>>, vector<1x512xf32>
    %16 = vector.broadcast %15 : vector<1x512xf32> to vector<8x512xf32>
    %17 = arith.addf %14, %16 : vector<8x512xf32>
    %cst_12 = arith.constant 0.000000e+00 : f32
    %18 = vector.broadcast %cst_12 : f32 to vector<8x512xf32>
    %19 = arith.cmpf ogt, %17, %18 : vector<8x512xf32>
    %cst_13 = arith.constant 2.000000e-01 : f32
    %20 = vector.broadcast %cst_13 : f32 to vector<8x512xf32>
    %21 = arith.mulf %20, %17 : vector<8x512xf32>
    %22 = arith.select %19, %17, %21 : vector<8x512xi1>, vector<8x512xf32>
    %23 = arith.truncf %22 : vector<8x512xf32> to vector<8x512xbf16>
    %c0_14 = arith.constant 0 : index
    %c0_15 = arith.constant 0 : index
    %24 = vector.load %arg6[%c0_14, %c0_15] : memref<512x256xbf16, #tpu.memory_space<vmem>>, vector<512x256xbf16>
    %cst_16 = arith.constant dense<0.000000e+00> : vector<8x256xf32>
    %25 = tpu.matmul %23, %24, %cst_16 {dimension_numbers = #tpu.dot_dimension_numbers<[1], [0], [0], [1], [0, 0, 1, 1], [], []>} : vector<8x512xbf16>, vector<512x256xbf16>, vector<8x256xf32> -> vector<8x256xf32>
    %c0_17 = arith.constant 0 : index
    %c0_18 = arith.constant 0 : index
    %26 = vector.load %arg7[%c0_17, %c0_18] : memref<1x256xf32, #tpu.memory_space<vmem>>, vector<1x256xf32>
    %27 = vector.broadcast %26 : vector<1x256xf32> to vector<8x256xf32>
    %28 = arith.addf %25, %27 : vector<8x256xf32>
    %cst_19 = arith.constant 0.000000e+00 : f32
    %29 = vector.broadcast %cst_19 : f32 to vector<8x256xf32>
    %30 = arith.cmpf ogt, %28, %29 : vector<8x256xf32>
    %cst_20 = arith.constant 2.000000e-01 : f32
    %31 = vector.broadcast %cst_20 : f32 to vector<8x256xf32>
    %32 = arith.mulf %31, %28 : vector<8x256xf32>
    %33 = arith.select %30, %28, %32 : vector<8x256xi1>, vector<8x256xf32>
    %c0_21 = arith.constant 0 : index
    %c0_22 = arith.constant 0 : index
    %34 = vector.load %arg8[%c0_21, %c0_22] : memref<1x256xf32, #tpu.memory_space<vmem>>, vector<1x256xf32>
    %35 = vector.broadcast %34 : vector<1x256xf32> to vector<8x256xf32>
    %36 = arith.mulf %33, %35 : vector<8x256xf32>
    %cst_23 = arith.constant dense<0.000000e+00> : vector<8xf32>
    %37 = vector.multi_reduction <add>, %36, %cst_23 [1] : vector<8x256xf32> to vector<8xf32>
    %38 = vector.shape_cast %37 : vector<8xf32> to vector<8x1xf32>
    %c0_24 = arith.constant 0 : index
    %c0_25 = arith.constant 0 : index
    %39 = vector.load %arg9[%c0_24, %c0_25] : memref<1x1xf32, #tpu.memory_space<vmem>>, vector<1x1xf32>
    %40 = vector.broadcast %39 : vector<1x1xf32> to vector<8x1xf32>
    %41 = arith.addf %38, %40 : vector<8x1xf32>
    %42 = arith.negf %41 : vector<8x1xf32>
    %43 = math.exp %42 : vector<8x1xf32>
    %cst_26 = arith.constant 1.000000e+00 : f32
    %44 = vector.broadcast %cst_26 : f32 to vector<8x1xf32>
    %45 = arith.addf %44, %43 : vector<8x1xf32>
    %46 = arith.divf %44, %45 : vector<8x1xf32>
    %c0_27 = arith.constant 0 : index
    %c0_28 = arith.constant 0 : index
    %47 = vector.load %arg10[%c0_27, %c0_28] : memref<8x1xf32, #tpu.memory_space<vmem>>, vector<8x1xf32>
    tpu.vector_store %arg10[%c0_27, %c0_28], %46 {strides = array<i32>} : memref<8x1xf32, #tpu.memory_space<vmem>>, vector<8x1xf32>,
    return
  }
  func.func @transform_0(%arg0: i32) -> (i32, i32) {
    %c0_i32 = arith.constant 0 : i32
    %c0_i32_0 = arith.constant 0 : i32
    return %arg0, %c0_i32 : i32, i32
  }
  func.func @transform_1(%arg0: i32) -> (i32, i32) {
    %c0_i32 = arith.constant 0 : i32
    %c0_i32_0 = arith.constant 0 : i32
    %c0_i32_1 = arith.constant 0 : i32
    return %c0_i32, %c0_i32_0 : i32, i32
  }
  func.func @transform_2(%arg0: i32) -> (i32, i32) {
    %c0_i32 = arith.constant 0 : i32
    %c0_i32_0 = arith.constant 0 : i32
    %c0_i32_1 = arith.constant 0 : i32
    return %c0_i32, %c0_i32_0 : i32, i32
  }
  func.func @transform_3(%arg0: i32) -> (i32, i32) {
    %c0_i32 = arith.constant 0 : i32
    %c0_i32_0 = arith.constant 0 : i32
    %c0_i32_1 = arith.constant 0 : i32
    return %c0_i32, %c0_i32_0 : i32, i32
  }
  func.func @transform_4(%arg0: i32) -> (i32, i32) {
    %c0_i32 = arith.constant 0 : i32
    %c0_i32_0 = arith.constant 0 : i32
    %c0_i32_1 = arith.constant 0 : i32
    return %c0_i32, %c0_i32_0 : i32, i32
  }
  func.func @transform_5(%arg0: i32) -> (i32, i32) {
    %c0_i32 = arith.constant 0 : i32
    %c0_i32_0 = arith.constant 0 : i32
    %c0_i32_1 = arith.constant 0 : i32
    return %c0_i32, %c0_i32_0 : i32, i32
  }
  func.func @transform_6(%arg0: i32) -> (i32, i32) {
    %c0_i32 = arith.constant 0 : i32
    %c0_i32_0 = arith.constant 0 : i32
    %c0_i32_1 = arith.constant 0 : i32
    return %c0_i32, %c0_i32_0 : i32, i32
  }
  func.func @transform_7(%arg0: i32) -> (i32, i32) {
    %c0_i32 = arith.constant 0 : i32
    %c0_i32_0 = arith.constant 0 : i32
    %c0_i32_1 = arith.constant 0 : i32
    return %c0_i32, %c0_i32_0 : i32, i32
  }
  func.func @transform_8(%arg0: i32) -> (i32, i32) {
    %c0_i32 = arith.constant 0 : i32
    %c0_i32_0 = arith.constant 0 : i32
    %c0_i32_1 = arith.constant 0 : i32
    return %c0_i32, %c0_i32_0 : i32, i32
  }
  func.func @transform_9(%arg0: i32) -> (i32, i32) {
    %c0_i32 = arith.constant 0 : i32
    %c0_i32_0 = arith.constant 0 : i32
    return %arg0, %c0_i32 : i32, i32
  }
}

</mosaic_0001>

<llo_original>
// kernel: discriminator_forward.1
$region0: #{discriminator_forward.1}
  #allocation0 [shape = 'u32[]', space=smem, size = 0x4, offset = 0x4, fixed_abs, tag = 'smem constant byte address 0x4 - core index']
  #allocation1 [shape = 'u32[72,128]{1,0:T(1,128)}', space=vmem, size = 0x9000, scoped, tag = 'internal scratch']
  #allocation2 [shape = 'f32[1,1]{1,0:T(1,128)S(1)}', space=vmem, size = 0x200, scoped, tag = 'scoped memory for discriminator_forward.1']
  %s0 = inlined_call_operand.vmem [shape: f32[8,896], index: 0, kind: input, shape index: {}]
  %s1 = inlined_call_operand.hbm [shape: bf16[896,1024], index: 1, kind: input, shape index: {}]
  %s2 = inlined_call_operand.hbm [shape: f32[1,1024], index: 2, kind: input, shape index: {}]
  %s3 = inlined_call_operand.hbm [shape: bf16[1024,512], index: 3, kind: input, shape index: {}]
  %s4 = inlined_call_operand.hbm [shape: f32[1,512], index: 4, kind: input, shape index: {}]
  %s5 = inlined_call_operand.hbm [shape: bf16[512,256], index: 5, kind: input, shape index: {}]
  %s6 = inlined_call_operand.hbm [shape: f32[1,256], index: 6, kind: input, shape index: {}]
  %s7 = inlined_call_operand.hbm [shape: f32[1,256], index: 7, kind: input, shape index: {}]
  %s8 = inlined_call_operand.<no memory space> [shape: f32[1,1], index: 8, kind: input, shape index: {}]
  %s9 = inlined_call_operand.vmem [shape: f32[8,1], index: 9, kind: output, shape index: {}]
  %s10 = sld [smem:[#allocation0]]
  $region74: #{discriminator_forward.1} parent=0
    _
  %s12 = ssub.s32 1, %s10
  %s13 = scalar_select 0, %s12, %s10
  %v14 = vstv %s8
  %15 = vst [vmem:[#allocation2] sm:$0x1] %v14
  $region1: #{discriminator_forward.1} parent=0
    #allocation3 [shape = 'u8[1835008]{0}', space=vmem, size = 0x1c0000, scoped, tag = 'input window, operand 1, single buffered']
    #allocation4 [shape = 's32[1]{0}', space=sflag, size = 0x4, scoped, tag = 'scoped memory for discriminator_forward.1']
    #allocation5 [shape = 'u8[4096]{0}', space=vmem, size = 0x1000, scoped, tag = 'input window, operand 2, single buffered']
    #allocation6 [shape = 's32[1]{0}', space=sflag, size = 0x4, scoped, tag = 'scoped memory for discriminator_forward.1']
    #allocation7 [shape = 'u8[1048576]{0}', space=vmem, size = 0x100000, scoped, tag = 'input window, operand 3, single buffered']
    #allocation8 [shape = 'u8[2048]{0}', space=vmem, size = 0x800, scoped, tag = 'input window, operand 4, single buffered']
    #allocation9 [shape = 's32[1]{0}', space=sflag, size = 0x4, scoped, tag = 'scoped memory for discriminator_forward.1']
    #allocation10 [shape = 'u8[262144]{0}', space=vmem, size = 0x40000, scoped, tag = 'input window, operand 5, single buffered']
    #allocation11 [shape = 'u8[1024]{0}', space=vmem, size = 0x400, scoped, tag = 'input window, operand 6, single buffered']
    #allocation12 [shape = 's32[1]{0}', space=sflag, size = 0x4, scoped, tag = 'scoped memory for discriminator_forward.1']
    #allocation13 [shape = 'u8[1024]{0}', space=vmem, size = 0x400, scoped, tag = 'input window, operand 7, single buffered']
    %16 = vsyncpa [#allocation4], 0
    %17 = vsyncpa [#allocation6], 0
    %18 = vsyncpa [#allocation9], 0
    %19 = vsyncpa [#allocation12], 0
    // Predicated region
    $region2: #{discriminator_forward.1} parent=1 // pred_check
      _
    $region3: #{discriminator_forward.1} parent=1 // pred_check_branch
      %21 = sbr.rel (0) target = $region5
    $region4: #{discriminator_forward.1} parent=1 // pred_region
      _
    $region5: #{discriminator_forward.1} parent=1 // pred_fallthru
      _
    // Predicated region
    $region6: #{discriminator_forward.1} parent=1 // pred_check
      _
    $region7: #{discriminator_forward.1} parent=1 // pred_check_branch
      %23 = sbr.rel (0) target = $region9
    $region8: #{discriminator_forward.1} parent=1 // pred_region
      %25 = vsyncadd [#allocation4], 0
      %s26 = sshll.u32 %s1, 4
      %s27 = int_to_ptr.hbm [resolvable:$true] %s26
      %s28 = sshll.u32 [#allocation3], 4
      %s29 = int_to_ptr.vmem [resolvable:$true] %s28
      %34 = dma.hbm_to_vmem [thread:$0]  %s27, 57344, %s29, [#allocation4], 512, 512, 32
    $region9: #{discriminator_forward.1} parent=1 // pred_fallthru
      _
    // Predicated region
    $region10: #{discriminator_forward.1} parent=1 // pred_check
      _
    $region11: #{discriminator_forward.1} parent=1 // pred_check_branch
      %36 = sbr.rel (0) target = $region13
    $region12: #{discriminator_forward.1} parent=1 // pred_region
      %38 = vsyncadd [#allocation6], 0
      %s40 = sshll.u32 %s2, 4
      %s41 = int_to_ptr.hbm [resolvable:$true] %s40
      %s42 = sshll.u32 [#allocation5], 4
      %s43 = int_to_ptr.vmem [resolvable:$true] %s42
      %45 = dma.hbm_to_vmem [thread:$0]  %s41, 128, %s43, [#allocation6]
    $region13: #{discriminator_forward.1} parent=1 // pred_fallthru
      _
    // Predicated region
    $region14: #{discriminator_forward.1} parent=1 // pred_check
      _
    $region15: #{discriminator_forward.1} parent=1 // pred_check_branch
      %47 = sbr.rel (0) target = $region17
    $region16: #{discriminator_forward.1} parent=1 // pred_region
      %49 = vsyncadd [#allocation6], 0
      %s50 = sshll.u32 %s3, 4
      %s51 = int_to_ptr.hbm [resolvable:$true] %s50
      %s52 = sshll.u32 [#allocation7], 4
      %s53 = int_to_ptr.vmem [resolvable:$true] %s52
      %58 = dma.hbm_to_vmem [thread:$0]  %s51, 32768, %s53, [#allocation6], 256, 256, 16
    $region17: #{discriminator_forward.1} parent=1 // pred_fallthru
      _
    // Predicated region
    $region18: #{discriminator_forward.1} parent=1 // pred_check
      _
    $region19: #{discriminator_forward.1} parent=1 // pred_check_branch
      %60 = sbr.rel (0) target = $region21
    $region20: #{discriminator_forward.1} parent=1 // pred_region
      %62 = vsyncadd [#allocation9], 0
      %s64 = sshll.u32 %s4, 4
      %s65 = int_to_ptr.hbm [resolvable:$true] %s64
      %s66 = sshll.u32 [#allocation8], 4
      %s67 = int_to_ptr.vmem [resolvable:$true] %s66
      %69 = dma.hbm_to_vmem [thread:$0]  %s65, 64, %s67, [#allocation9]
    $region21: #{discriminator_forward.1} parent=1 // pred_fallthru
      _
    // Predicated region
    $region22: #{discriminator_forward.1} parent=1 // pred_check
      _
    $region23: #{discriminator_forward.1} parent=1 // pred_check_branch
      %71 = sbr.rel (0) target = $region25
    $region24: #{discriminator_forward.1} parent=1 // pred_region
      %73 = vsyncadd [#allocation9], 0
      %s74 = sshll.u32 %s5, 4
      %s75 = int_to_ptr.hbm [resolvable:$true] %s74
      %s76 = sshll.u32 [#allocation10], 4
      %s77 = int_to_ptr.vmem [resolvable:$true] %s76
      %82 = dma.hbm_to_vmem [thread:$0]  %s75, 8192, %s77, [#allocation9], 128, 128, 8
    $region25: #{discriminator_forward.1} parent=1 // pred_fallthru
      _
    // Predicated region
    $region26: #{discriminator_forward.1} parent=1 // pred_check
      _
    $region27: #{discriminator_forward.1} parent=1 // pred_check_branch
      %84 = sbr.rel (0) target = $region29
    $region28: #{discriminator_forward.1} parent=1 // pred_region
      %86 = vsyncadd [#allocation12], 0
      %s88 = sshll.u32 %s6, 4
      %s89 = int_to_ptr.hbm [resolvable:$true] %s88
      %s90 = sshll.u32 [#allocation11], 4
      %s91 = int_to_ptr.vmem [resolvable:$true] %s90
      %93 = dma.hbm_to_vmem [thread:$0]  %s89, 32, %s91, [#allocation12]
    $region29: #{discriminator_forward.1} parent=1 // pred_fallthru
      _
    // Predicated region
    $region30: #{discriminator_forward.1} parent=1 // pred_check
      _
    $region31: #{discriminator_forward.1} parent=1 // pred_check_branch
      %95 = sbr.rel (0) target = $region33
    $region32: #{discriminator_forward.1} parent=1 // pred_region
      %97 = vsyncadd [#allocation12], 0
      %s99 = sshll.u32 %s7, 4
      %s100 = int_to_ptr.hbm [resolvable:$true] %s99
      %s101 = sshll.u32 [#allocation13], 4
      %s102 = int_to_ptr.vmem [resolvable:$true] %s101
      %104 = dma.hbm_to_vmem [thread:$0]  %s100, 32, %s102, [#allocation12]
    $region33: #{discriminator_forward.1} parent=1 // pred_fallthru
      _
    // Predicated region
    $region34: #{discriminator_forward.1} parent=1 // pred_check
      _
    $region35: #{discriminator_forward.1} parent=1 // pred_check_branch
      %106 = sbr.rel (0) target = $region37
    $region36: #{discriminator_forward.1} parent=1 // pred_region
      _
    $region37: #{discriminator_forward.1} parent=1 // pred_fallthru
      _
    // Predicated region
    $region38: #{discriminator_forward.1} parent=1 // pred_check
      _
    $region39: #{discriminator_forward.1} parent=1 // pred_check_branch
      %108 = sbr.rel (0) target = $region41
    $region40: #{discriminator_forward.1} parent=1 // pred_region
      %110 = dma.done [#allocation4], 57344
    $region41: #{discriminator_forward.1} parent=1 // pred_fallthru
      _
    // Predicated region
    $region42: #{discriminator_forward.1} parent=1 // pred_check
      _
    $region43: #{discriminator_forward.1} parent=1 // pred_check_branch
      %112 = sbr.rel (0) target = $region45
    $region44: #{discriminator_forward.1} parent=1 // pred_region
      %114 = dma.done [#allocation6], 128
    $region45: #{discriminator_forward.1} parent=1 // pred_fallthru
      _
    // Predicated region
    $region46: #{discriminator_forward.1} parent=1 // pred_check
      _
    $region47: #{discriminator_forward.1} parent=1 // pred_check_branch
      %116 = sbr.rel (0) target = $region49
    $region48: #{discriminator_forward.1} parent=1 // pred_region
      %118 = dma.done [#allocation6], 32768
    $region49: #{discriminator_forward.1} parent=1 // pred_fallthru
      _
    // Predicated region
    $region50: #{discriminator_forward.1} parent=1 // pred_check
      _
    $region51: #{discriminator_forward.1} parent=1 // pred_check_branch
      %120 = sbr.rel (0) target = $region53
    $region52: #{discriminator_forward.1} parent=1 // pred_region
      %122 = dma.done [#allocation9], 64
    $region53: #{discriminator_forward.1} parent=1 // pred_fallthru
      _
    // Predicated region
    $region54: #{discriminator_forward.1} parent=1 // pred_check
      _
    $region55: #{discriminator_forward.1} parent=1 // pred_check_branch
      %124 = sbr.rel (0) target = $region57
    $region56: #{discriminator_forward.1} parent=1 // pred_region
      %126 = dma.done [#allocation9], 8192
    $region57: #{discriminator_forward.1} parent=1 // pred_fallthru
      _
    // Predicated region
    $region58: #{discriminator_forward.1} parent=1 // pred_check
      _
    $region59: #{discriminator_forward.1} parent=1 // pred_check_branch
      %128 = sbr.rel (0) target = $region61
    $region60: #{discriminator_forward.1} parent=1 // pred_region
      %130 = dma.done [#allocation12], 32
    $region61: #{discriminator_forward.1} parent=1 // pred_fallthru
      _
    // Predicated region
    $region62: #{discriminator_forward.1} parent=1 // pred_check
      _
    $region63: #{discriminator_forward.1} parent=1 // pred_check_branch
      %132 = sbr.rel (0) target = $region65
    $region64: #{discriminator_forward.1} parent=1 // pred_region
      %134 = dma.done [#allocation12], 32
    $region65: #{discriminator_forward.1} parent=1 // pred_fallthru
      _
    %v135 = vld [vmem:[%s0] sm:$0xff]
    %v136 = vld [vmem:[%s0 + $0x8] sm:$0xff]
    %v137 = vld [vmem:[%s0 + $0x10] sm:$0xff]
    %v138 = vld [vmem:[%s0 + $0x18] sm:$0xff]
    %v139 = vld [vmem:[%s0 + $0x20] sm:$0xff]
    %v140 = vld [vmem:[%s0 + $0x28] sm:$0xff]
    %v141 = vld [vmem:[%s0 + $0x30] sm:$0xff]
    %v142 = vpack.c.bf16 %v135, %v135
    %v143 = vpack.c.bf16 %v136, %v136
    %v144 = vpack.c.bf16 %v137, %v137
    %v145 = vpack.c.bf16 %v138, %v138
    %v146 = vpack.c.bf16 %v139, %v139
    %v147 = vpack.c.bf16 %v140, %v140
    %v148 = vpack.c.bf16 %v141, %v141
    %v149 = vld [vmem:[#allocation3] sm:$0xff]
    %v150 = vld [vmem:[#allocation3 + $0x8] sm:$0xff]
    %v151 = vld [vmem:[#allocation3 + $0x10] sm:$0xff]
    %v152 = vld [vmem:[#allocation3 + $0x18] sm:$0xff]
    %v153 = vld [vmem:[#allocation3 + $0x20] sm:$0xff]
    %v154 = vld [vmem:[#allocation3 + $0x28] sm:$0xff]
    %v155 = vld [vmem:[#allocation3 + $0x30] sm:$0xff]
    %v156 = vld [vmem:[#allocation3 + $0x38] sm:$0xff]
    %v157 = vld [vmem:[#allocation3 + $0x40] sm:$0xff]
    %v158 = vld [vmem:[#allocation3 + $0x48] sm:$0xff]
    %v159 = vld [vmem:[#allocation3 + $0x50] sm:$0xff]
    %v160 = vld [vmem:[#allocation3 + $0x58] sm:$0xff]
    %v161 = vld [vmem:[#allocation3 + $0x60] sm:$0xff]
    %v162 = vld [vmem:[#allocation3 + $0x68] sm:$0xff]
    %v163 = vld [vmem:[#allocation3 + $0x70] sm:$0xff]
    %v164 = vld [vmem:[#allocation3 + $0x78] sm:$0xff]
    %v165 = vld [vmem:[#allocation3 + $0x80] sm:$0xff]
    %v166 = vld [vmem:[#allocation3 + $0x88] sm:$0xff]
    %v167 = vld [vmem:[#allocation3 + $0x90] sm:$0xff]
    %v168 = vld [vmem:[#allocation3 + $0x98] sm:$0xff]
    %v169 = vld [vmem:[#allocation3 + $0xa0] sm:$0xff]
    %v170 = vld [vmem:[#allocation3 + $0xa8] sm:$0xff]
    %v171 = vld [vmem:[#allocation3 + $0xb0] sm:$0xff]
    %v172 = vld [vmem:[#allocation3 + $0xb8] sm:$0xff]
    %v173 = vld [vmem:[#allocation3 + $0xc0] sm:$0xff]
    %v174 = vld [vmem:[#allocation3 + $0xc8] sm:$0xff]
    %v175 = vld [vmem:[#allocation3 + $0xd0] sm:$0xff]
    %v176 = vld [vmem:[#allocation3 + $0xd8] sm:$0xff]
    %v177 = vld [vmem:[#allocation3 + $0xe0] sm:$0xff]
    %v178 = vld [vmem:[#allocation3 + $0xe8] sm:$0xff]
    %v179 = vld [vmem:[#allocation3 + $0xf0] sm:$0xff]
    %v180 = vld [vmem:[#allocation3 + $0xf8] sm:$0xff]
    %v181 = vld [vmem:[#allocation3 + $0x100] sm:$0xff]
    %v182 = vld [vmem:[#allocation3 + $0x108] sm:$0xff]
    %v183 = vld [vmem:[#allocation3 + $0x110] sm:$0xff]
    %v184 = vld [vmem:[#allocation3 + $0x118] sm:$0xff]
    %v185 = vld [vmem:[#allocation3 + $0x120] sm:$0xff]
    %v186 = vld [vmem:[#allocation3 + $0x128] sm:$0xff]
    %v187 = vld [vmem:[#allocation3 + $0x130] sm:$0xff]
    %v188 = vld [vmem:[#allocation3 + $0x138] sm:$0xff]
    %v189 = vld [vmem:[#allocation3 + $0x140] sm:$0xff]
    %v190 = vld [vmem:[#allocation3 + $0x148] sm:$0xff]
    %v191 = vld [vmem:[#allocation3 + $0x150] sm:$0xff]
    %v192 = vld [vmem:[#allocation3 + $0x158] sm:$0xff]
    %v193 = vld [vmem:[#allocation3 + $0x160] sm:$0xff]
    %v194 = vld [vmem:[#allocation3 + $0x168] sm:$0xff]
    %v195 = vld [vmem:[#allocation3 + $0x170] sm:$0xff]
    %v196 = vld [vmem:[#allocation3 + $0x178] sm:$0xff]
    %v197 = vld [vmem:[#allocation3 + $0x180] sm:$0xff]
    %v198 = vld [vmem:[#allocation3 + $0x188] sm:$0xff]
    %v199 = vld [vmem:[#allocation3 + $0x190] sm:$0xff]
    %v200 = vld [vmem:[#allocation3 + $0x198] sm:$0xff]
    %v201 = vld [vmem:[#allocation3 + $0x1a0] sm:$0xff]
    %v202 = vld [vmem:[#allocation3 + $0x1a8] sm:$0xff]
    %v203 = vld [vmem:[#allocation3 + $0x1b0] sm:$0xff]
    %v204 = vld [vmem:[#allocation3 + $0x1b8] sm:$0xff]
    %v205 = vld [vmem:[#allocation3 + $0x1c0] sm:$0xff]
    %v206 = vld [vmem:[#allocation3 + $0x1c8] sm:$0xff]
    %v207 = vld [vmem:[#allocation3 + $0x1d0] sm:$0xff]
    %v208 = vld [vmem:[#allocation3 + $0x1d8] sm:$0xff]
    %v209 = vld [vmem:[#allocation3 + $0x1e0] sm:$0xff]
    %v210 = vld [vmem:[#allocation3 + $0x1e8] sm:$0xff]
    %v211 = vld [vmem:[#allocation3 + $0x1f0] sm:$0xff]
    %v212 = vld [vmem:[#allocation3 + $0x1f8] sm:$0xff]
    %v213 = vld [vmem:[#allocation3 + $0x200] sm:$0xff]
    %v214 = vld [vmem:[#allocation3 + $0x208] sm:$0xff]
    %v215 = vld [vmem:[#allocation3 + $0x210] sm:$0xff]
    %v216 = vld [vmem:[#allocation3 + $0x218] sm:$0xff]
    %v217 = vld [vmem:[#allocation3 + $0x220] sm:$0xff]
    %v218 = vld [vmem:[#allocation3 + $0x228] sm:$0xff]
    %v219 = vld [vmem:[#allocation3 + $0x230] sm:$0xff]
    %v220 = vld [vmem:[#allocation3 + $0x238] sm:$0xff]
    %v221 = vld [vmem:[#allocation3 + $0x240] sm:$0xff]
    %v222 = vld [vmem:[#allocation3 + $0x248] sm:$0xff]
    %v223 = vld [vmem:[#allocation3 + $0x250] sm:$0xff]
    %v224 = vld [vmem:[#allocation3 + $0x258] sm:$0xff]
    %v225 = vld [vmem:[#allocation3 + $0x260] sm:$0xff]
    %v226 = vld [vmem:[#allocation3 + $0x268] sm:$0xff]
    %v227 = vld [vmem:[#allocation3 + $0x270] sm:$0xff]
    %v228 = vld [vmem:[#allocation3 + $0x278] sm:$0xff]
    %v229 = vld [vmem:[#allocation3 + $0x280] sm:$0xff]
    %v230 = vld [vmem:[#allocation3 + $0x288] sm:$0xff]
    %v231 = vld [vmem:[#allocation3 + $0x290] sm:$0xff]
    %v232 = vld [vmem:[#allocation3 + $0x298] sm:$0xff]
    %v233 = vld [vmem:[#allocation3 + $0x2a0] sm:$0xff]
    %v234 = vld [vmem:[#allocation3 + $0x2a8] sm:$0xff]
    %v235 = vld [vmem:[#allocation3 + $0x2b0] sm:$0xff]
    %v236 = vld [vmem:[#allocation3 + $0x2b8] sm:$0xff]
    %v237 = vld [vmem:[#allocation3 + $0x2c0] sm:$0xff]
    %v238 = vld [vmem:[#allocation3 + $0x2c8] sm:$0xff]
    %v239 = vld [vmem:[#allocation3 + $0x2d0] sm:$0xff]
    %v240 = vld [vmem:[#allocation3 + $0x2d8] sm:$0xff]
    %v241 = vld [vmem:[#allocation3 + $0x2e0] sm:$0xff]
    %v242 = vld [vmem:[#allocation3 + $0x2e8] sm:$0xff]
    %v243 = vld [vmem:[#allocation3 + $0x2f0] sm:$0xff]
    %v244 = vld [vmem:[#allocation3 + $0x2f8] sm:$0xff]
    %v245 = vld [vmem:[#allocation3 + $0x300] sm:$0xff]
    %v246 = vld [vmem:[#allocation3 + $0x308] sm:$0xff]
    %v247 = vld [vmem:[#allocation3 + $0x310] sm:$0xff]
    %v248 = vld [vmem:[#allocation3 + $0x318] sm:$0xff]
    %v249 = vld [vmem:[#allocation3 + $0x320] sm:$0xff]
    %v250 = vld [vmem:[#allocation3 + $0x328] sm:$0xff]
    %v251 = vld [vmem:[#allocation3 + $0x330] sm:$0xff]
    %v252 = vld [vmem:[#allocation3 + $0x338] sm:$0xff]
    %v253 = vld [vmem:[#allocation3 + $0x340] sm:$0xff]
    %v254 = vld [vmem:[#allocation3 + $0x348] sm:$0xff]
    %v255 = vld [vmem:[#allocation3 + $0x350] sm:$0xff]
    %v256 = vld [vmem:[#allocation3 + $0x358] sm:$0xff]
    %v257 = vld [vmem:[#allocation3 + $0x360] sm:$0xff]
    %v258 = vld [vmem:[#allocation3 + $0x368] sm:$0xff]
    %v259 = vld [vmem:[#allocation3 + $0x370] sm:$0xff]
    %v260 = vld [vmem:[#allocation3 + $0x378] sm:$0xff]
    %v261 = vld [vmem:[#allocation3 + $0x380] sm:$0xff]
    %v262 = vld [vmem:[#allocation3 + $0x388] sm:$0xff]
    %v263 = vld [vmem:[#allocation3 + $0x390] sm:$0xff]
    %v264 = vld [vmem:[#allocation3 + $0x398] sm:$0xff]
    %v265 = vld [vmem:[#allocation3 + $0x3a0] sm:$0xff]
    %v266 = vld [vmem:[#allocation3 + $0x3a8] sm:$0xff]
    %v267 = vld [vmem:[#allocation3 + $0x3b0] sm:$0xff]
    %v268 = vld [vmem:[#allocation3 + $0x3b8] sm:$0xff]
    %v269 = vld [vmem:[#allocation3 + $0x3c0] sm:$0xff]
    %v270 = vld [vmem:[#allocation3 + $0x3c8] sm:$0xff]
    %v271 = vld [vmem:[#allocation3 + $0x3d0] sm:$0xff]
    %v272 = vld [vmem:[#allocation3 + $0x3d8] sm:$0xff]
    %v273 = vld [vmem:[#allocation3 + $0x3e0] sm:$0xff]
    %v274 = vld [vmem:[#allocation3 + $0x3e8] sm:$0xff]
    %v275 = vld [vmem:[#allocation3 + $0x3f0] sm:$0xff]
    %v276 = vld [vmem:[#allocation3 + $0x3f8] sm:$0xff]
    %v277 = vld [vmem:[#allocation3 + $0x400] sm:$0xff]
    %v278 = vld [vmem:[#allocation3 + $0x408] sm:$0xff]
    %v279 = vld [vmem:[#allocation3 + $0x410] sm:$0xff]
    %v280 = vld [vmem:[#allocation3 + $0x418] sm:$0xff]
    %v281 = vld [vmem:[#allocation3 + $0x420] sm:$0xff]
    %v282 = vld [vmem:[#allocation3 + $0x428] sm:$0xff]
    %v283 = vld [vmem:[#allocation3 + $0x430] sm:$0xff]
    %v284 = vld [vmem:[#allocation3 + $0x438] sm:$0xff]
    %v285 = vld [vmem:[#allocation3 + $0x440] sm:$0xff]
    %v286 = vld [vmem:[#allocation3 + $0x448] sm:$0xff]
    %v287 = vld [vmem:[#allocation3 + $0x450] sm:$0xff]
    %v288 = vld [vmem:[#allocation3 + $0x458] sm:$0xff]
    %v289 = vld [vmem:[#allocation3 + $0x460] sm:$0xff]
    %v290 = vld [vmem:[#allocation3 + $0x468] sm:$0xff]
    %v291 = vld [vmem:[#allocation3 + $0x470] sm:$0xff]
    %v292 = vld [vmem:[#allocation3 + $0x478] sm:$0xff]
    %v293 = vld [vmem:[#allocation3 + $0x480] sm:$0xff]
    %v294 = vld [vmem:[#allocation3 + $0x488] sm:$0xff]
    %v295 = vld [vmem:[#allocation3 + $0x490] sm:$0xff]
    %v296 = vld [vmem:[#allocation3 + $0x498] sm:$0xff]
    %v297 = vld [vmem:[#allocation3 + $0x4a0] sm:$0xff]
    %v298 = vld [vmem:[#allocation3 + $0x4a8] sm:$0xff]
    %v299 = vld [vmem:[#allocation3 + $0x4b0] sm:$0xff]
    %v300 = vld [vmem:[#allocation3 + $0x4b8] sm:$0xff]
    %v301 = vld [vmem:[#allocation3 + $0x4c0] sm:$0xff]
    %v302 = vld [vmem:[#allocation3 + $0x4c8] sm:$0xff]
    %v303 = vld [vmem:[#allocation3 + $0x4d0] sm:$0xff]
    %v304 = vld [vmem:[#allocation3 + $0x4d8] sm:$0xff]
    %v305 = vld [vmem:[#allocation3 + $0x4e0] sm:$0xff]
    %v306 = vld [vmem:[#allocation3 + $0x4e8] sm:$0xff]
    %v307 = vld [vmem:[#allocation3 + $0x4f0] sm:$0xff]
    %v308 = vld [vmem:[#allocation3 + $0x4f8] sm:$0xff]
    %v309 = vld [vmem:[#allocation3 + $0x500] sm:$0xff]
    %v310 = vld [vmem:[#allocation3 + $0x508] sm:$0xff]
    %v311 = vld [vmem:[#allocation3 + $0x510] sm:$0xff]
    %v312 = vld [vmem:[#allocation3 + $0x518] sm:$0xff]
    %v313 = vld [vmem:[#allocation3 + $0x520] sm:$0xff]
    %v314 = vld [vmem:[#allocation3 + $0x528] sm:$0xff]
    %v315 = vld [vmem:[#allocation3 + $0x530] sm:$0xff]
    %v316 = vld [vmem:[#allocation3 + $0x538] sm:$0xff]
    %v317 = vld [vmem:[#allocation3 + $0x540] sm:$0xff]
    %v318 = vld [vmem:[#allocation3 + $0x548] sm:$0xff]
    %v319 = vld [vmem:[#allocation3 + $0x550] sm:$0xff]
    %v320 = vld [vmem:[#allocation3 + $0x558] sm:$0xff]
    %v321 = vld [vmem:[#allocation3 + $0x560] sm:$0xff]
    %v322 = vld [vmem:[#allocation3 + $0x568] sm:$0xff]
    %v323 = vld [vmem:[#allocation3 + $0x570] sm:$0xff]
    %v324 = vld [vmem:[#allocation3 + $0x578] sm:$0xff]
    %v325 = vld [vmem:[#allocation3 + $0x580] sm:$0xff]
    %v326 = vld [vmem:[#allocation3 + $0x588] sm:$0xff]
    %v327 = vld [vmem:[#allocation3 + $0x590] sm:$0xff]
    %v328 = vld [vmem:[#allocation3 + $0x598] sm:$0xff]
    %v329 = vld [vmem:[#allocation3 + $0x5a0] sm:$0xff]
    %v330 = vld [vmem:[#allocation3 + $0x5a8] sm:$0xff]
    %v331 = vld [vmem:[#allocation3 + $0x5b0] sm:$0xff]
    %v332 = vld [vmem:[#allocation3 + $0x5b8] sm:$0xff]
    %v333 = vld [vmem:[#allocation3 + $0x5c0] sm:$0xff]
    %v334 = vld [vmem:[#allocation3 + $0x5c8] sm:$0xff]
    %v335 = vld [vmem:[#allocation3 + $0x5d0] sm:$0xff]
    %v336 = vld [vmem:[#allocation3 + $0x5d8] sm:$0xff]
    %v337 = vld [vmem:[#allocation3 + $0x5e0] sm:$0xff]
    %v338 = vld [vmem:[#allocation3 + $0x5e8] sm:$0xff]
    %v339 = vld [vmem:[#allocation3 + $0x5f0] sm:$0xff]
    %v340 = vld [vmem:[#allocation3 + $0x5f8] sm:$0xff]
    %v341 = vld [vmem:[#allocation3 + $0x600] sm:$0xff]
    %v342 = vld [vmem:[#allocation3 + $0x608] sm:$0xff]
    %v343 = vld [vmem:[#allocation3 + $0x610] sm:$0xff]
    %v344 = vld [vmem:[#allocation3 + $0x618] sm:$0xff]
    %v345 = vld [vmem:[#allocation3 + $0x620] sm:$0xff]
    %v346 = vld [vmem:[#allocation3 + $0x628] sm:$0xff]
    %v347 = vld [vmem:[#allocation3 + $0x630] sm:$0xff]
    %v348 = vld [vmem:[#allocation3 + $0x638] sm:$0xff]
    %v349 = vld [vmem:[#allocation3 + $0x640] sm:$0xff]
    %v350 = vld [vmem:[#allocation3 + $0x648] sm:$0xff]
    %v351 = vld [vmem:[#allocation3 + $0x650] sm:$0xff]
    %v352 = vld [vmem:[#allocation3 + $0x658] sm:$0xff]
    %v353 = vld [vmem:[#allocation3 + $0x660] sm:$0xff]
    %v354 = vld [vmem:[#allocation3 + $0x668] sm:$0xff]
    %v355 = vld [vmem:[#allocation3 + $0x670] sm:$0xff]
    %v356 = vld [vmem:[#allocation3 + $0x678] sm:$0xff]
    %v357 = vld [vmem:[#allocation3 + $0x680] sm:$0xff]
    %v358 = vld [vmem:[#allocation3 + $0x688] sm:$0xff]
    %v359 = vld [vmem:[#allocation3 + $0x690] sm:$0xff]
    %v360 = vld [vmem:[#allocation3 + $0x698] sm:$0xff]
    %v361 = vld [vmem:[#allocation3 + $0x6a0] sm:$0xff]
    %v362 = vld [vmem:[#allocation3 + $0x6a8] sm:$0xff]
    %v363 = vld [vmem:[#allocation3 + $0x6b0] sm:$0xff]
    %v364 = vld [vmem:[#allocation3 + $0x6b8] sm:$0xff]
    %v365 = vld [vmem:[#allocation3 + $0x6c0] sm:$0xff]
    %v366 = vld [vmem:[#allocation3 + $0x6c8] sm:$0xff]
    %v367 = vld [vmem:[#allocation3 + $0x6d0] sm:$0xff]
    %v368 = vld [vmem:[#allocation3 + $0x6d8] sm:$0xff]
    %v369 = vld [vmem:[#allocation3 + $0x6e0] sm:$0xff]
    %v370 = vld [vmem:[#allocation3 + $0x6e8] sm:$0xff]
    %v371 = vld [vmem:[#allocation3 + $0x6f0] sm:$0xff]
    %v372 = vld [vmem:[#allocation3 + $0x6f8] sm:$0xff]
    %v373 = vld [vmem:[#allocation3 + $0x700] sm:$0xff]
    %v374 = vld [vmem:[#allocation3 + $0x708] sm:$0xff]
    %v375 = vld [vmem:[#allocation3 + $0x710] sm:$0xff]
    %v376 = vld [vmem:[#allocation3 + $0x718] sm:$0xff]
    %v377 = vld [vmem:[#allocation3 + $0x720] sm:$0xff]
    %v378 = vld [vmem:[#allocation3 + $0x728] sm:$0xff]
    %v379 = vld [vmem:[#allocation3 + $0x730] sm:$0xff]
    %v380 = vld [vmem:[#allocation3 + $0x738] sm:$0xff]
    %v381 = vld [vmem:[#allocation3 + $0x740] sm:$0xff]
    %v382 = vld [vmem:[#allocation3 + $0x748] sm:$0xff]
    %v383 = vld [vmem:[#allocation3 + $0x750] sm:$0xff]
    %v384 = vld [vmem:[#allocation3 + $0x758] sm:$0xff]
    %v385 = vld [vmem:[#allocation3 + $0x760] sm:$0xff]
    %v386 = vld [vmem:[#allocation3 + $0x768] sm:$0xff]
    %v387 = vld [vmem:[#allocation3 + $0x770] sm:$0xff]
    %v388 = vld [vmem:[#allocation3 + $0x778] sm:$0xff]
    %v389 = vld [vmem:[#allocation3 + $0x780] sm:$0xff]
    %v390 = vld [vmem:[#allocation3 + $0x788] sm:$0xff]
    %v391 = vld [vmem:[#allocation3 + $0x790] sm:$0xff]
    %v392 = vld [vmem:[#allocation3 + $0x798] sm:$0xff]
    %v393 = vld [vmem:[#allocation3 + $0x7a0] sm:$0xff]
    %v394 = vld [vmem:[#allocation3 + $0x7a8] sm:$0xff]
    %v395 = vld [vmem:[#allocation3 + $0x7b0] sm:$0xff]
    %v396 = vld [vmem:[#allocation3 + $0x7b8] sm:$0xff]
    %v397 = vld [vmem:[#allocation3 + $0x7c0] sm:$0xff]
    %v398 = vld [vmem:[#allocation3 + $0x7c8] sm:$0xff]
    %v399 = vld [vmem:[#allocation3 + $0x7d0] sm:$0xff]
    %v400 = vld [vmem:[#allocation3 + $0x7d8] sm:$0xff]
    %v401 = vld [vmem:[#allocation3 + $0x7e0] sm:$0xff]
    %v402 = vld [vmem:[#allocation3 + $0x7e8] sm:$0xff]
    %v403 = vld [vmem:[#allocation3 + $0x7f0] sm:$0xff]
    %v404 = vld [vmem:[#allocation3 + $0x7f8] sm:$0xff]
    %v405 = vld [vmem:[#allocation3 + $0x800] sm:$0xff]
    %v406 = vld [vmem:[#allocation3 + $0x808] sm:$0xff]
    %v407 = vld [vmem:[#allocation3 + $0x810] sm:$0xff]
    %v408 = vld [vmem:[#allocation3 + $0x818] sm:$0xff]
    %v409 = vld [vmem:[#allocation3 + $0x820] sm:$0xff]
    %v410 = vld [vmem:[#allocation3 + $0x828] sm:$0xff]
    %v411 = vld [vmem:[#allocation3 + $0x830] sm:$0xff]
    %v412 = vld [vmem:[#allocation3 + $0x838] sm:$0xff]
    %v413 = vld [vmem:[#allocation3 + $0x840] sm:$0xff]
    %v414 = vld [vmem:[#allocation3 + $0x848] sm:$0xff]
    %v415 = vld [vmem:[#allocation3 + $0x850] sm:$0xff]
    %v416 = vld [vmem:[#allocation3 + $0x858] sm:$0xff]
    %v417 = vld [vmem:[#allocation3 + $0x860] sm:$0xff]
    %v418 = vld [vmem:[#allocation3 + $0x868] sm:$0xff]
    %v419 = vld [vmem:[#allocation3 + $0x870] sm:$0xff]
    %v420 = vld [vmem:[#allocation3 + $0x878] sm:$0xff]
    %v421 = vld [vmem:[#allocation3 + $0x880] sm:$0xff]
    %v422 = vld [vmem:[#allocation3 + $0x888] sm:$0xff]
    %v423 = vld [vmem:[#allocation3 + $0x890] sm:$0xff]
    %v424 = vld [vmem:[#allocation3 + $0x898] sm:$0xff]
    %v425 = vld [vmem:[#allocation3 + $0x8a0] sm:$0xff]
    %v426 = vld [vmem:[#allocation3 + $0x8a8] sm:$0xff]
    %v427 = vld [vmem:[#allocation3 + $0x8b0] sm:$0xff]
    %v428 = vld [vmem:[#allocation3 + $0x8b8] sm:$0xff]
    %v429 = vld [vmem:[#allocation3 + $0x8c0] sm:$0xff]
    %v430 = vld [vmem:[#allocation3 + $0x8c8] sm:$0xff]
    %v431 = vld [vmem:[#allocation3 + $0x8d0] sm:$0xff]
    %v432 = vld [vmem:[#allocation3 + $0x8d8] sm:$0xff]
    %v433 = vld [vmem:[#allocation3 + $0x8e0] sm:$0xff]
    %v434 = vld [vmem:[#allocation3 + $0x8e8] sm:$0xff]
    %v435 = vld [vmem:[#allocation3 + $0x8f0] sm:$0xff]
    %v436 = vld [vmem:[#allocation3 + $0x8f8] sm:$0xff]
    %v437 = vld [vmem:[#allocation3 + $0x900] sm:$0xff]
    %v438 = vld [vmem:[#allocation3 + $0x908] sm:$0xff]
    %v439 = vld [vmem:[#allocation3 + $0x910] sm:$0xff]
    %v440 = vld [vmem:[#allocation3 + $0x918] sm:$0xff]
    %v441 = vld [vmem:[#allocation3 + $0x920] sm:$0xff]
    %v442 = vld [vmem:[#allocation3 + $0x928] sm:$0xff]
    %v443 = vld [vmem:[#allocation3 + $0x930] sm:$0xff]
    %v444 = vld [vmem:[#allocation3 + $0x938] sm:$0xff]
    %v445 = vld [vmem:[#allocation3 + $0x940] sm:$0xff]
    %v446 = vld [vmem:[#allocation3 + $0x948] sm:$0xff]
    %v447 = vld [vmem:[#allocation3 + $0x950] sm:$0xff]
    %v448 = vld [vmem:[#allocation3 + $0x958] sm:$0xff]
    %v449 = vld [vmem:[#allocation3 + $0x960] sm:$0xff]
    %v450 = vld [vmem:[#allocation3 + $0x968] sm:$0xff]
    %v451 = vld [vmem:[#allocation3 + $0x970] sm:$0xff]
    %v452 = vld [vmem:[#allocation3 + $0x978] sm:$0xff]
    %v453 = vld [vmem:[#allocation3 + $0x980] sm:$0xff]
    %v454 = vld [vmem:[#allocation3 + $0x988] sm:$0xff]
    %v455 = vld [vmem:[#allocation3 + $0x990] sm:$0xff]
    %v456 = vld [vmem:[#allocation3 + $0x998] sm:$0xff]
    %v457 = vld [vmem:[#allocation3 + $0x9a0] sm:$0xff]
    %v458 = vld [vmem:[#allocation3 + $0x9a8] sm:$0xff]
    %v459 = vld [vmem:[#allocation3 + $0x9b0] sm:$0xff]
    %v460 = vld [vmem:[#allocation3 + $0x9b8] sm:$0xff]
    %v461 = vld [vmem:[#allocation3 + $0x9c0] sm:$0xff]
    %v462 = vld [vmem:[#allocation3 + $0x9c8] sm:$0xff]
    %v463 = vld [vmem:[#allocation3 + $0x9d0] sm:$0xff]
    %v464 = vld [vmem:[#allocation3 + $0x9d8] sm:$0xff]
    %v465 = vld [vmem:[#allocation3 + $0x9e0] sm:$0xff]
    %v466 = vld [vmem:[#allocation3 + $0x9e8] sm:$0xff]
    %v467 = vld [vmem:[#allocation3 + $0x9f0] sm:$0xff]
    %v468 = vld [vmem:[#allocation3 + $0x9f8] sm:$0xff]
    %v469 = vld [vmem:[#allocation3 + $0xa00] sm:$0xff]
    %v470 = vld [vmem:[#allocation3 + $0xa08] sm:$0xff]
    %v471 = vld [vmem:[#allocation3 + $0xa10] sm:$0xff]
    %v472 = vld [vmem:[#allocation3 + $0xa18] sm:$0xff]
    %v473 = vld [vmem:[#allocation3 + $0xa20] sm:$0xff]
    %v474 = vld [vmem:[#allocation3 + $0xa28] sm:$0xff]
    %v475 = vld [vmem:[#allocation3 + $0xa30] sm:$0xff]
    %v476 = vld [vmem:[#allocation3 + $0xa38] sm:$0xff]
    %v477 = vld [vmem:[#allocation3 + $0xa40] sm:$0xff]
    %v478 = vld [vmem:[#allocation3 + $0xa48] sm:$0xff]
    %v479 = vld [vmem:[#allocation3 + $0xa50] sm:$0xff]
    %v480 = vld [vmem:[#allocation3 + $0xa58] sm:$0xff]
    %v481 = vld [vmem:[#allocation3 + $0xa60] sm:$0xff]
    %v482 = vld [vmem:[#allocation3 + $0xa68] sm:$0xff]
    %v483 = vld [vmem:[#allocation3 + $0xa70] sm:$0xff]
    %v484 = vld [vmem:[#allocation3 + $0xa78] sm:$0xff]
    %v485 = vld [vmem:[#allocation3 + $0xa80] sm:$0xff]
    %v486 = vld [vmem:[#allocation3 + $0xa88] sm:$0xff]
    %v487 = vld [vmem:[#allocation3 + $0xa90] sm:$0xff]
    %v488 = vld [vmem:[#allocation3 + $0xa98] sm:$0xff]
    %v489 = vld [vmem:[#allocation3 + $0xaa0] sm:$0xff]
    %v490 = vld [vmem:[#allocation3 + $0xaa8] sm:$0xff]
    %v491 = vld [vmem:[#allocation3 + $0xab0] sm:$0xff]
    %v492 = vld [vmem:[#allocation3 + $0xab8] sm:$0xff]
    %v493 = vld [vmem:[#allocation3 + $0xac0] sm:$0xff]
    %v494 = vld [vmem:[#allocation3 + $0xac8] sm:$0xff]
    %v495 = vld [vmem:[#allocation3 + $0xad0] sm:$0xff]
    %v496 = vld [vmem:[#allocation3 + $0xad8] sm:$0xff]
    %v497 = vld [vmem:[#allocation3 + $0xae0] sm:$0xff]
    %v498 = vld [vmem:[#allocation3 + $0xae8] sm:$0xff]
    %v499 = vld [vmem:[#allocation3 + $0xaf0] sm:$0xff]
    %v500 = vld [vmem:[#allocation3 + $0xaf8] sm:$0xff]
    %v501 = vld [vmem:[#allocation3 + $0xb00] sm:$0xff]
    %v502 = vld [vmem:[#allocation3 + $0xb08] sm:$0xff]
    %v503 = vld [vmem:[#allocation3 + $0xb10] sm:$0xff]
    %v504 = vld [vmem:[#allocation3 + $0xb18] sm:$0xff]
    %v505 = vld [vmem:[#allocation3 + $0xb20] sm:$0xff]
    %v506 = vld [vmem:[#allocation3 + $0xb28] sm:$0xff]
    %v507 = vld [vmem:[#allocation3 + $0xb30] sm:$0xff]
    %v508 = vld [vmem:[#allocation3 + $0xb38] sm:$0xff]
    %v509 = vld [vmem:[#allocation3 + $0xb40] sm:$0xff]
    %v510 = vld [vmem:[#allocation3 + $0xb48] sm:$0xff]
    %v511 = vld [vmem:[#allocation3 + $0xb50] sm:$0xff]
    %v512 = vld [vmem:[#allocation3 + $0xb58] sm:$0xff]
    %v513 = vld [vmem:[#allocation3 + $0xb60] sm:$0xff]
    %v514 = vld [vmem:[#allocation3 + $0xb68] sm:$0xff]
    %v515 = vld [vmem:[#allocation3 + $0xb70] sm:$0xff]
    %v516 = vld [vmem:[#allocation3 + $0xb78] sm:$0xff]
    %v517 = vld [vmem:[#allocation3 + $0xb80] sm:$0xff]
    %v518 = vld [vmem:[#allocation3 + $0xb88] sm:$0xff]
    %v519 = vld [vmem:[#allocation3 + $0xb90] sm:$0xff]
    %v520 = vld [vmem:[#allocation3 + $0xb98] sm:$0xff]
    %v521 = vld [vmem:[#allocation3 + $0xba0] sm:$0xff]
    %v522 = vld [vmem:[#allocation3 + $0xba8] sm:$0xff]
    %v523 = vld [vmem:[#allocation3 + $0xbb0] sm:$0xff]
    %v524 = vld [vmem:[#allocation3 + $0xbb8] sm:$0xff]
    %v525 = vld [vmem:[#allocation3 + $0xbc0] sm:$0xff]
    %v526 = vld [vmem:[#allocation3 + $0xbc8] sm:$0xff]
    %v527 = vld [vmem:[#allocation3 + $0xbd0] sm:$0xff]
    %v528 = vld [vmem:[#allocation3 + $0xbd8] sm:$0xff]
    %v529 = vld [vmem:[#allocation3 + $0xbe0] sm:$0xff]
    %v530 = vld [vmem:[#allocation3 + $0xbe8] sm:$0xff]
    %v531 = vld [vmem:[#allocation3 + $0xbf0] sm:$0xff]
    %v532 = vld [vmem:[#allocation3 + $0xbf8] sm:$0xff]
    %v533 = vld [vmem:[#allocation3 + $0xc00] sm:$0xff]
    %v534 = vld [vmem:[#allocation3 + $0xc08] sm:$0xff]
    %v535 = vld [vmem:[#allocation3 + $0xc10] sm:$0xff]
    %v536 = vld [vmem:[#allocation3 + $0xc18] sm:$0xff]
    %v537 = vld [vmem:[#allocation3 + $0xc20] sm:$0xff]
    %v538 = vld [vmem:[#allocation3 + $0xc28] sm:$0xff]
    %v539 = vld [vmem:[#allocation3 + $0xc30] sm:$0xff]
    %v540 = vld [vmem:[#allocation3 + $0xc38] sm:$0xff]
    %v541 = vld [vmem:[#allocation3 + $0xc40] sm:$0xff]
    %v542 = vld [vmem:[#allocation3 + $0xc48] sm:$0xff]
    %v543 = vld [vmem:[#allocation3 + $0xc50] sm:$0xff]
    %v544 = vld [vmem:[#allocation3 + $0xc58] sm:$0xff]
    %v545 = vld [vmem:[#allocation3 + $0xc60] sm:$0xff]
    %v546 = vld [vmem:[#allocation3 + $0xc68] sm:$0xff]
    %v547 = vld [vmem:[#allocation3 + $0xc70] sm:$0xff]
    %v548 = vld [vmem:[#allocation3 + $0xc78] sm:$0xff]
    %v549 = vld [vmem:[#allocation3 + $0xc80] sm:$0xff]
    %v550 = vld [vmem:[#allocation3 + $0xc88] sm:$0xff]
    %v551 = vld [vmem:[#allocation3 + $0xc90] sm:$0xff]
    %v552 = vld [vmem:[#allocation3 + $0xc98] sm:$0xff]
    %v553 = vld [vmem:[#allocation3 + $0xca0] sm:$0xff]
    %v554 = vld [vmem:[#allocation3 + $0xca8] sm:$0xff]
    %v555 = vld [vmem:[#allocation3 + $0xcb0] sm:$0xff]
    %v556 = vld [vmem:[#allocation3 + $0xcb8] sm:$0xff]
    %v557 = vld [vmem:[#allocation3 + $0xcc0] sm:$0xff]
    %v558 = vld [vmem:[#allocation3 + $0xcc8] sm:$0xff]
    %v559 = vld [vmem:[#allocation3 + $0xcd0] sm:$0xff]
    %v560 = vld [vmem:[#allocation3 + $0xcd8] sm:$0xff]
    %v561 = vld [vmem:[#allocation3 + $0xce0] sm:$0xff]
    %v562 = vld [vmem:[#allocation3 + $0xce8] sm:$0xff]
    %v563 = vld [vmem:[#allocation3 + $0xcf0] sm:$0xff]
    %v564 = vld [vmem:[#allocation3 + $0xcf8] sm:$0xff]
    %v565 = vld [vmem:[#allocation3 + $0xd00] sm:$0xff]
    %v566 = vld [vmem:[#allocation3 + $0xd08] sm:$0xff]
    %v567 = vld [vmem:[#allocation3 + $0xd10] sm:$0xff]
    %v568 = vld [vmem:[#allocation3 + $0xd18] sm:$0xff]
    %v569 = vld [vmem:[#allocation3 + $0xd20] sm:$0xff]
    %v570 = vld [vmem:[#allocation3 + $0xd28] sm:$0xff]
    %v571 = vld [vmem:[#allocation3 + $0xd30] sm:$0xff]
    %v572 = vld [vmem:[#allocation3 + $0xd38] sm:$0xff]
    %v573 = vld [vmem:[#allocation3 + $0xd40] sm:$0xff]
    %v574 = vld [vmem:[#allocation3 + $0xd48] sm:$0xff]
    %v575 = vld [vmem:[#allocation3 + $0xd50] sm:$0xff]
    %v576 = vld [vmem:[#allocation3 + $0xd58] sm:$0xff]
    %v577 = vld [vmem:[#allocation3 + $0xd60] sm:$0xff]
    %v578 = vld [vmem:[#allocation3 + $0xd68] sm:$0xff]
    %v579 = vld [vmem:[#allocation3 + $0xd70] sm:$0xff]
    %v580 = vld [vmem:[#allocation3 + $0xd78] sm:$0xff]
    %v581 = vld [vmem:[#allocation3 + $0xd80] sm:$0xff]
    %v582 = vld [vmem:[#allocation3 + $0xd88] sm:$0xff]
    %v583 = vld [vmem:[#allocation3 + $0xd90] sm:$0xff]
    %v584 = vld [vmem:[#allocation3 + $0xd98] sm:$0xff]
    %v585 = vld [vmem:[#allocation3 + $0xda0] sm:$0xff]
    %v586 = vld [vmem:[#allocation3 + $0xda8] sm:$0xff]
    %v587 = vld [vmem:[#allocation3 + $0xdb0] sm:$0xff]
    %v588 = vld [vmem:[#allocation3 + $0xdb8] sm:$0xff]
    %v589 = vld [vmem:[#allocation3 + $0xdc0] sm:$0xff]
    %v590 = vld [vmem:[#allocation3 + $0xdc8] sm:$0xff]
    %v591 = vld [vmem:[#allocation3 + $0xdd0] sm:$0xff]
    %v592 = vld [vmem:[#allocation3 + $0xdd8] sm:$0xff]
    %v593 = vld [vmem:[#allocation3 + $0xde0] sm:$0xff]
    %v594 = vld [vmem:[#allocation3 + $0xde8] sm:$0xff]
    %v595 = vld [vmem:[#allocation3 + $0xdf0] sm:$0xff]
    %v596 = vld [vmem:[#allocation3 + $0xdf8] sm:$0xff]
    %v597 = vld [vmem:[#allocation5] sm:$0xff]
    %v599 = vperm.slane %v597, 0
    %v600 = vperm.slane %v597, 1
    %v601 = vperm.slane %v597, 2
    %v602 = vperm.slane %v597, 3
    %v603 = vperm.slane %v597, 4
    %v604 = vperm.slane %v597, 5
    %v605 = vperm.slane %v597, 6
    %v606 = vperm.slane %v597, 7
    %v1063 = vunpack.c.l.b16 %v149
    %v1064 = vunpack.c.h.b16 %v149
    %v1065 = vunpack.c.l.b16 %v150
    %v1066 = vunpack.c.h.b16 %v150
    %v1067 = vunpack.c.l.b16 %v151
    %v1068 = vunpack.c.h.b16 %v151
    %v1069 = vunpack.c.l.b16 %v152
    %v1070 = vunpack.c.h.b16 %v152
    %v1071 = vunpack.c.l.b16 %v153
    %v1072 = vunpack.c.h.b16 %v153
    %v1073 = vunpack.c.l.b16 %v154
    %v1074 = vunpack.c.h.b16 %v154
    %v1075 = vunpack.c.l.b16 %v155
    %v1076 = vunpack.c.h.b16 %v155
    %v1077 = vunpack.c.l.b16 %v156
    %v1078 = vunpack.c.h.b16 %v156
    %v1079 = vunpack.c.l.b16 %v157
    %v1080 = vunpack.c.h.b16 %v157
    %v1081 = vunpack.c.l.b16 %v158
    %v1082 = vunpack.c.h.b16 %v158
    %v1083 = vunpack.c.l.b16 %v159
    %v1084 = vunpack.c.h.b16 %v159
    %v1085 = vunpack.c.l.b16 %v160
    %v1086 = vunpack.c.h.b16 %v160
    %v1087 = vunpack.c.l.b16 %v161
    %v1088 = vunpack.c.h.b16 %v161
    %v1089 = vunpack.c.l.b16 %v162
    %v1090 = vunpack.c.h.b16 %v162
    %v1091 = vunpack.c.l.b16 %v163
    %v1092 = vunpack.c.h.b16 %v163
    %v1093 = vunpack.c.l.b16 %v164
    %v1094 = vunpack.c.h.b16 %v164
    %v1095 = vunpack.c.l.b16 %v165
    %v1096 = vunpack.c.h.b16 %v165
    %v1097 = vunpack.c.l.b16 %v166
    %v1098 = vunpack.c.h.b16 %v166
    %v1099 = vunpack.c.l.b16 %v167
    %v1100 = vunpack.c.h.b16 %v167
    %v1101 = vunpack.c.l.b16 %v168
    %v1102 = vunpack.c.h.b16 %v168
    %v1103 = vunpack.c.l.b16 %v169
    %v1104 = vunpack.c.h.b16 %v169
    %v1105 = vunpack.c.l.b16 %v170
    %v1106 = vunpack.c.h.b16 %v170
    %v1107 = vunpack.c.l.b16 %v171
    %v1108 = vunpack.c.h.b16 %v171
    %v1109 = vunpack.c.l.b16 %v172
    %v1110 = vunpack.c.h.b16 %v172
    %v1111 = vunpack.c.l.b16 %v173
    %v1112 = vunpack.c.h.b16 %v173
    %v1113 = vunpack.c.l.b16 %v174
    %v1114 = vunpack.c.h.b16 %v174
    %v1115 = vunpack.c.l.b16 %v175
    %v1116 = vunpack.c.h.b16 %v175
    %v1117 = vunpack.c.l.b16 %v176
    %v1118 = vunpack.c.h.b16 %v176
    %v1119 = vunpack.c.l.b16 %v177
    %v1120 = vunpack.c.h.b16 %v177
    %v1121 = vunpack.c.l.b16 %v178
    %v1122 = vunpack.c.h.b16 %v178
    %v1123 = vunpack.c.l.b16 %v179
    %v1124 = vunpack.c.h.b16 %v179
    %v1125 = vunpack.c.l.b16 %v180
    %v1126 = vunpack.c.h.b16 %v180
    %v1127 = vunpack.c.l.b16 %v181
    %v1128 = vunpack.c.h.b16 %v181
    %v1129 = vunpack.c.l.b16 %v182
    %v1130 = vunpack.c.h.b16 %v182
    %v1131 = vunpack.c.l.b16 %v183
    %v1132 = vunpack.c.h.b16 %v183
    %v1133 = vunpack.c.l.b16 %v184
    %v1134 = vunpack.c.h.b16 %v184
    %v1135 = vunpack.c.l.b16 %v185
    %v1136 = vunpack.c.h.b16 %v185
    %v1137 = vunpack.c.l.b16 %v186
    %v1138 = vunpack.c.h.b16 %v186
    %v1139 = vunpack.c.l.b16 %v187
    %v1140 = vunpack.c.h.b16 %v187
    %v1141 = vunpack.c.l.b16 %v188
    %v1142 = vunpack.c.h.b16 %v188
    %v1143 = vunpack.c.l.b16 %v189
    %v1144 = vunpack.c.h.b16 %v189
    %v1145 = vunpack.c.l.b16 %v190
    %v1146 = vunpack.c.h.b16 %v190
    %v1147 = vunpack.c.l.b16 %v191
    %v1148 = vunpack.c.h.b16 %v191
    %v1149 = vunpack.c.l.b16 %v192
    %v1150 = vunpack.c.h.b16 %v192
    %v1151 = vunpack.c.l.b16 %v193
    %v1152 = vunpack.c.h.b16 %v193
    %v1153 = vunpack.c.l.b16 %v194
    %v1154 = vunpack.c.h.b16 %v194
    %v1155 = vunpack.c.l.b16 %v195
    %v1156 = vunpack.c.h.b16 %v195
    %v1157 = vunpack.c.l.b16 %v196
    %v1158 = vunpack.c.h.b16 %v196
    %v1159 = vunpack.c.l.b16 %v197
    %v1160 = vunpack.c.h.b16 %v197
    %v1161 = vunpack.c.l.b16 %v198
    %v1162 = vunpack.c.h.b16 %v198
    %v1163 = vunpack.c.l.b16 %v199
    %v1164 = vunpack.c.h.b16 %v199
    %v1165 = vunpack.c.l.b16 %v200
    %v1166 = vunpack.c.h.b16 %v200
    %v1167 = vunpack.c.l.b16 %v201
    %v1168 = vunpack.c.h.b16 %v201
    %v1169 = vunpack.c.l.b16 %v202
    %v1170 = vunpack.c.h.b16 %v202
    %v1171 = vunpack.c.l.b16 %v203
    %v1172 = vunpack.c.h.b16 %v203
    %v1173 = vunpack.c.l.b16 %v204
    %v1174 = vunpack.c.h.b16 %v204
    %v1175 = vunpack.c.l.b16 %v205
    %v1176 = vunpack.c.h.b16 %v205
    %v1177 = vunpack.c.l.b16 %v206
    %v1178 = vunpack.c.h.b16 %v206
    %v1179 = vunpack.c.l.b16 %v207
    %v1180 = vunpack.c.h.b16 %v207
    %v1181 = vunpack.c.l.b16 %v208
    %v1182 = vunpack.c.h.b16 %v208
    %v1183 = vunpack.c.l.b16 %v209
    %v1184 = vunpack.c.h.b16 %v209
    %v1185 = vunpack.c.l.b16 %v210
    %v1186 = vunpack.c.h.b16 %v210
    %v1187 = vunpack.c.l.b16 %v211
    %v1188 = vunpack.c.h.b16 %v211
    %v1189 = vunpack.c.l.b16 %v212
    %v1190 = vunpack.c.h.b16 %v212
    %v1191 = vunpack.c.l.b16 %v213
    %v1192 = vunpack.c.h.b16 %v213
    %v1193 = vunpack.c.l.b16 %v214
    %v1194 = vunpack.c.h.b16 %v214
    %v1195 = vunpack.c.l.b16 %v215
    %v1196 = vunpack.c.h.b16 %v215
    %v1197 = vunpack.c.l.b16 %v216
    %v1198 = vunpack.c.h.b16 %v216
    %v1199 = vunpack.c.l.b16 %v217
    %v1200 = vunpack.c.h.b16 %v217
    %v1201 = vunpack.c.l.b16 %v218
    %v1202 = vunpack.c.h.b16 %v218
    %v1203 = vunpack.c.l.b16 %v219
    %v1204 = vunpack.c.h.b16 %v219
    %v1205 = vunpack.c.l.b16 %v220
    %v1206 = vunpack.c.h.b16 %v220
    %v1207 = vunpack.c.l.b16 %v221
    %v1208 = vunpack.c.h.b16 %v221
    %v1209 = vunpack.c.l.b16 %v222
    %v1210 = vunpack.c.h.b16 %v222
    %v1211 = vunpack.c.l.b16 %v223
    %v1212 = vunpack.c.h.b16 %v223
    %v1213 = vunpack.c.l.b16 %v224
    %v1214 = vunpack.c.h.b16 %v224
    %v1215 = vunpack.c.l.b16 %v225
    %v1216 = vunpack.c.h.b16 %v225
    %v1217 = vunpack.c.l.b16 %v226
    %v1218 = vunpack.c.h.b16 %v226
    %v1219 = vunpack.c.l.b16 %v227
    %v1220 = vunpack.c.h.b16 %v227
    %v1221 = vunpack.c.l.b16 %v228
    %v1222 = vunpack.c.h.b16 %v228
    %v1223 = vunpack.c.l.b16 %v229
    %v1224 = vunpack.c.h.b16 %v229
    %v1225 = vunpack.c.l.b16 %v230
    %v1226 = vunpack.c.h.b16 %v230
    %v1227 = vunpack.c.l.b16 %v231
    %v1228 = vunpack.c.h.b16 %v231
    %v1229 = vunpack.c.l.b16 %v232
    %v1230 = vunpack.c.h.b16 %v232
    %v1231 = vunpack.c.l.b16 %v233
    %v1232 = vunpack.c.h.b16 %v233
    %v1233 = vunpack.c.l.b16 %v234
    %v1234 = vunpack.c.h.b16 %v234
    %v1235 = vunpack.c.l.b16 %v235
    %v1236 = vunpack.c.h.b16 %v235
    %v1237 = vunpack.c.l.b16 %v236
    %v1238 = vunpack.c.h.b16 %v236
    %v1239 = vunpack.c.l.b16 %v237
    %v1240 = vunpack.c.h.b16 %v237
    %v1241 = vunpack.c.l.b16 %v238
    %v1242 = vunpack.c.h.b16 %v238
    %v1243 = vunpack.c.l.b16 %v239
    %v1244 = vunpack.c.h.b16 %v239
    %v1245 = vunpack.c.l.b16 %v240
    %v1246 = vunpack.c.h.b16 %v240
    %v1247 = vunpack.c.l.b16 %v241
    %v1248 = vunpack.c.h.b16 %v241
    %v1249 = vunpack.c.l.b16 %v242
    %v1250 = vunpack.c.h.b16 %v242
    %v1251 = vunpack.c.l.b16 %v243
    %v1252 = vunpack.c.h.b16 %v243
    %v1253 = vunpack.c.l.b16 %v244
    %v1254 = vunpack.c.h.b16 %v244
    %v1255 = vunpack.c.l.b16 %v245
    %v1256 = vunpack.c.h.b16 %v245
    %v1257 = vunpack.c.l.b16 %v246
    %v1258 = vunpack.c.h.b16 %v246
    %v1259 = vunpack.c.l.b16 %v247
    %v1260 = vunpack.c.h.b16 %v247
    %v1261 = vunpack.c.l.b16 %v248
    %v1262 = vunpack.c.h.b16 %v248
    %v1263 = vunpack.c.l.b16 %v249
    %v1264 = vunpack.c.h.b16 %v249
    %v1265 = vunpack.c.l.b16 %v250
    %v1266 = vunpack.c.h.b16 %v250
    %v1267 = vunpack.c.l.b16 %v251
    %v1268 = vunpack.c.h.b16 %v251
    %v1269 = vunpack.c.l.b16 %v252
    %v1270 = vunpack.c.h.b16 %v252
    %v1271 = vunpack.c.l.b16 %v253
    %v1272 = vunpack.c.h.b16 %v253
    %v1273 = vunpack.c.l.b16 %v254
    %v1274 = vunpack.c.h.b16 %v254
    %v1275 = vunpack.c.l.b16 %v255
    %v1276 = vunpack.c.h.b16 %v255
    %v1277 = vunpack.c.l.b16 %v256
    %v1278 = vunpack.c.h.b16 %v256
    %v1279 = vunpack.c.l.b16 %v257
    %v1280 = vunpack.c.h.b16 %v257
    %v1281 = vunpack.c.l.b16 %v258
    %v1282 = vunpack.c.h.b16 %v258
    %v1283 = vunpack.c.l.b16 %v259
    %v1284 = vunpack.c.h.b16 %v259
    %v1285 = vunpack.c.l.b16 %v260
    %v1286 = vunpack.c.h.b16 %v260
    %v1287 = vunpack.c.l.b16 %v261
    %v1288 = vunpack.c.h.b16 %v261
    %v1289 = vunpack.c.l.b16 %v262
    %v1290 = vunpack.c.h.b16 %v262
    %v1291 = vunpack.c.l.b16 %v263
    %v1292 = vunpack.c.h.b16 %v263
    %v1293 = vunpack.c.l.b16 %v264
    %v1294 = vunpack.c.h.b16 %v264
    %v1295 = vunpack.c.l.b16 %v265
    %v1296 = vunpack.c.h.b16 %v265
    %v1297 = vunpack.c.l.b16 %v266
    %v1298 = vunpack.c.h.b16 %v266
    %v1299 = vunpack.c.l.b16 %v267
    %v1300 = vunpack.c.h.b16 %v267
    %v1301 = vunpack.c.l.b16 %v268
    %v1302 = vunpack.c.h.b16 %v268
    %v1303 = vunpack.c.l.b16 %v269
    %v1304 = vunpack.c.h.b16 %v269
    %v1305 = vunpack.c.l.b16 %v270
    %v1306 = vunpack.c.h.b16 %v270
    %v1307 = vunpack.c.l.b16 %v271
    %v1308 = vunpack.c.h.b16 %v271
    %v1309 = vunpack.c.l.b16 %v272
    %v1310 = vunpack.c.h.b16 %v272
    %v1311 = vunpack.c.l.b16 %v273
    %v1312 = vunpack.c.h.b16 %v273
    %v1313 = vunpack.c.l.b16 %v274
    %v1314 = vunpack.c.h.b16 %v274
    %v1315 = vunpack.c.l.b16 %v275
    %v1316 = vunpack.c.h.b16 %v275
    %v1317 = vunpack.c.l.b16 %v276
    %v1318 = vunpack.c.h.b16 %v276
    %v1319 = vunpack.c.l.b16 %v277
    %v1320 = vunpack.c.h.b16 %v277
    %v1321 = vunpack.c.l.b16 %v278
    %v1322 = vunpack.c.h.b16 %v278
    %v1323 = vunpack.c.l.b16 %v279
    %v1324 = vunpack.c.h.b16 %v279
    %v1325 = vunpack.c.l.b16 %v280
    %v1326 = vunpack.c.h.b16 %v280
    %v1327 = vunpack.c.l.b16 %v281
    %v1328 = vunpack.c.h.b16 %v281
    %v1329 = vunpack.c.l.b16 %v282
    %v1330 = vunpack.c.h.b16 %v282
    %v1331 = vunpack.c.l.b16 %v283
    %v1332 = vunpack.c.h.b16 %v283
    %v1333 = vunpack.c.l.b16 %v284
    %v1334 = vunpack.c.h.b16 %v284
    %v1335 = vunpack.c.l.b16 %v285
    %v1336 = vunpack.c.h.b16 %v285
    %v1337 = vunpack.c.l.b16 %v286
    %v1338 = vunpack.c.h.b16 %v286
    %v1339 = vunpack.c.l.b16 %v287
    %v1340 = vunpack.c.h.b16 %v287
    %v1341 = vunpack.c.l.b16 %v288
    %v1342 = vunpack.c.h.b16 %v288
    %v1343 = vunpack.c.l.b16 %v289
    %v1344 = vunpack.c.h.b16 %v289
    %v1345 = vunpack.c.l.b16 %v290
    %v1346 = vunpack.c.h.b16 %v290
    %v1347 = vunpack.c.l.b16 %v291
    %v1348 = vunpack.c.h.b16 %v291
    %v1349 = vunpack.c.l.b16 %v292
    %v1350 = vunpack.c.h.b16 %v292
    %v1351 = vunpack.c.l.b16 %v293
    %v1352 = vunpack.c.h.b16 %v293
    %v1353 = vunpack.c.l.b16 %v294
    %v1354 = vunpack.c.h.b16 %v294
    %v1355 = vunpack.c.l.b16 %v295
    %v1356 = vunpack.c.h.b16 %v295
    %v1357 = vunpack.c.l.b16 %v296
    %v1358 = vunpack.c.h.b16 %v296
    %v1359 = vunpack.c.l.b16 %v297
    %v1360 = vunpack.c.h.b16 %v297
    %v1361 = vunpack.c.l.b16 %v298
    %v1362 = vunpack.c.h.b16 %v298
    %v1363 = vunpack.c.l.b16 %v299
    %v1364 = vunpack.c.h.b16 %v299
    %v1365 = vunpack.c.l.b16 %v300
    %v1366 = vunpack.c.h.b16 %v300
    %v1367 = vunpack.c.l.b16 %v301
    %v1368 = vunpack.c.h.b16 %v301
    %v1369 = vunpack.c.l.b16 %v302
    %v1370 = vunpack.c.h.b16 %v302
    %v1371 = vunpack.c.l.b16 %v303
    %v1372 = vunpack.c.h.b16 %v303
    %v1373 = vunpack.c.l.b16 %v304
    %v1374 = vunpack.c.h.b16 %v304
    %v1375 = vunpack.c.l.b16 %v305
    %v1376 = vunpack.c.h.b16 %v305
    %v1377 = vunpack.c.l.b16 %v306
    %v1378 = vunpack.c.h.b16 %v306
    %v1379 = vunpack.c.l.b16 %v307
    %v1380 = vunpack.c.h.b16 %v307
    %v1381 = vunpack.c.l.b16 %v308
    %v1382 = vunpack.c.h.b16 %v308
    %v1383 = vunpack.c.l.b16 %v309
    %v1384 = vunpack.c.h.b16 %v309
    %v1385 = vunpack.c.l.b16 %v310
    %v1386 = vunpack.c.h.b16 %v310
    %v1387 = vunpack.c.l.b16 %v311
    %v1388 = vunpack.c.h.b16 %v311
    %v1389 = vunpack.c.l.b16 %v312
    %v1390 = vunpack.c.h.b16 %v312
    %v1391 = vunpack.c.l.b16 %v313
    %v1392 = vunpack.c.h.b16 %v313
    %v1393 = vunpack.c.l.b16 %v314
    %v1394 = vunpack.c.h.b16 %v314
    %v1395 = vunpack.c.l.b16 %v315
    %v1396 = vunpack.c.h.b16 %v315
    %v1397 = vunpack.c.l.b16 %v316
    %v1398 = vunpack.c.h.b16 %v316
    %v1399 = vunpack.c.l.b16 %v317
    %v1400 = vunpack.c.h.b16 %v317
    %v1401 = vunpack.c.l.b16 %v318
    %v1402 = vunpack.c.h.b16 %v318
    %v1403 = vunpack.c.l.b16 %v319
    %v1404 = vunpack.c.h.b16 %v319
    %v1405 = vunpack.c.l.b16 %v320
    %v1406 = vunpack.c.h.b16 %v320
    %v1407 = vunpack.c.l.b16 %v321
    %v1408 = vunpack.c.h.b16 %v321
    %v1409 = vunpack.c.l.b16 %v322
    %v1410 = vunpack.c.h.b16 %v322
    %v1411 = vunpack.c.l.b16 %v323
    %v1412 = vunpack.c.h.b16 %v323
    %v1413 = vunpack.c.l.b16 %v324
    %v1414 = vunpack.c.h.b16 %v324
    %v1415 = vunpack.c.l.b16 %v325
    %v1416 = vunpack.c.h.b16 %v325
    %v1417 = vunpack.c.l.b16 %v326
    %v1418 = vunpack.c.h.b16 %v326
    %v1419 = vunpack.c.l.b16 %v327
    %v1420 = vunpack.c.h.b16 %v327
    %v1421 = vunpack.c.l.b16 %v328
    %v1422 = vunpack.c.h.b16 %v328
    %v1423 = vunpack.c.l.b16 %v329
    %v1424 = vunpack.c.h.b16 %v329
    %v1425 = vunpack.c.l.b16 %v330
    %v1426 = vunpack.c.h.b16 %v330
    %v1427 = vunpack.c.l.b16 %v331
    %v1428 = vunpack.c.h.b16 %v331
    %v1429 = vunpack.c.l.b16 %v332
    %v1430 = vunpack.c.h.b16 %v332
    %v1431 = vunpack.c.l.b16 %v333
    %v1432 = vunpack.c.h.b16 %v333
    %v1433 = vunpack.c.l.b16 %v334
    %v1434 = vunpack.c.h.b16 %v334
    %v1435 = vunpack.c.l.b16 %v335
    %v1436 = vunpack.c.h.b16 %v335
    %v1437 = vunpack.c.l.b16 %v336
    %v1438 = vunpack.c.h.b16 %v336
    %v1439 = vunpack.c.l.b16 %v337
    %v1440 = vunpack.c.h.b16 %v337
    %v1441 = vunpack.c.l.b16 %v338
    %v1442 = vunpack.c.h.b16 %v338
    %v1443 = vunpack.c.l.b16 %v339
    %v1444 = vunpack.c.h.b16 %v339
    %v1445 = vunpack.c.l.b16 %v340
    %v1446 = vunpack.c.h.b16 %v340
    %v1447 = vunpack.c.l.b16 %v341
    %v1448 = vunpack.c.h.b16 %v341
    %v1449 = vunpack.c.l.b16 %v342
    %v1450 = vunpack.c.h.b16 %v342
    %v1451 = vunpack.c.l.b16 %v343
    %v1452 = vunpack.c.h.b16 %v343
    %v1453 = vunpack.c.l.b16 %v344
    %v1454 = vunpack.c.h.b16 %v344
    %v1455 = vunpack.c.l.b16 %v345
    %v1456 = vunpack.c.h.b16 %v345
    %v1457 = vunpack.c.l.b16 %v346
    %v1458 = vunpack.c.h.b16 %v346
    %v1459 = vunpack.c.l.b16 %v347
    %v1460 = vunpack.c.h.b16 %v347
    %v1461 = vunpack.c.l.b16 %v348
    %v1462 = vunpack.c.h.b16 %v348
    %v1463 = vunpack.c.l.b16 %v349
    %v1464 = vunpack.c.h.b16 %v349
    %v1465 = vunpack.c.l.b16 %v350
    %v1466 = vunpack.c.h.b16 %v350
    %v1467 = vunpack.c.l.b16 %v351
    %v1468 = vunpack.c.h.b16 %v351
    %v1469 = vunpack.c.l.b16 %v352
    %v1470 = vunpack.c.h.b16 %v352
    %v1471 = vunpack.c.l.b16 %v353
    %v1472 = vunpack.c.h.b16 %v353
    %v1473 = vunpack.c.l.b16 %v354
    %v1474 = vunpack.c.h.b16 %v354
    %v1475 = vunpack.c.l.b16 %v355
    %v1476 = vunpack.c.h.b16 %v355
    %v1477 = vunpack.c.l.b16 %v356
    %v1478 = vunpack.c.h.b16 %v356
    %v1479 = vunpack.c.l.b16 %v357
    %v1480 = vunpack.c.h.b16 %v357
    %v1481 = vunpack.c.l.b16 %v358
    %v1482 = vunpack.c.h.b16 %v358
    %v1483 = vunpack.c.l.b16 %v359
    %v1484 = vunpack.c.h.b16 %v359
    %v1485 = vunpack.c.l.b16 %v360
    %v1486 = vunpack.c.h.b16 %v360
    %v1487 = vunpack.c.l.b16 %v361
    %v1488 = vunpack.c.h.b16 %v361
    %v1489 = vunpack.c.l.b16 %v362
    %v1490 = vunpack.c.h.b16 %v362
    %v1491 = vunpack.c.l.b16 %v363
    %v1492 = vunpack.c.h.b16 %v363
    %v1493 = vunpack.c.l.b16 %v364
    %v1494 = vunpack.c.h.b16 %v364
    %v1495 = vunpack.c.l.b16 %v365
    %v1496 = vunpack.c.h.b16 %v365
    %v1497 = vunpack.c.l.b16 %v366
    %v1498 = vunpack.c.h.b16 %v366
    %v1499 = vunpack.c.l.b16 %v367
    %v1500 = vunpack.c.h.b16 %v367
    %v1501 = vunpack.c.l.b16 %v368
    %v1502 = vunpack.c.h.b16 %v368
    %v1503 = vunpack.c.l.b16 %v369
    %v1504 = vunpack.c.h.b16 %v369
    %v1505 = vunpack.c.l.b16 %v370
    %v1506 = vunpack.c.h.b16 %v370
    %v1507 = vunpack.c.l.b16 %v371
    %v1508 = vunpack.c.h.b16 %v371
    %v1509 = vunpack.c.l.b16 %v372
    %v1510 = vunpack.c.h.b16 %v372
    %v1511 = vunpack.c.l.b16 %v373
    %v1512 = vunpack.c.h.b16 %v373
    %v1513 = vunpack.c.l.b16 %v374
    %v1514 = vunpack.c.h.b16 %v374
    %v1515 = vunpack.c.l.b16 %v375
    %v1516 = vunpack.c.h.b16 %v375
    %v1517 = vunpack.c.l.b16 %v376
    %v1518 = vunpack.c.h.b16 %v376
    %v1519 = vunpack.c.l.b16 %v377
    %v1520 = vunpack.c.h.b16 %v377
    %v1521 = vunpack.c.l.b16 %v378
    %v1522 = vunpack.c.h.b16 %v378
    %v1523 = vunpack.c.l.b16 %v379
    %v1524 = vunpack.c.h.b16 %v379
    %v1525 = vunpack.c.l.b16 %v380
    %v1526 = vunpack.c.h.b16 %v380
    %v1527 = vunpack.c.l.b16 %v381
    %v1528 = vunpack.c.h.b16 %v381
    %v1529 = vunpack.c.l.b16 %v382
    %v1530 = vunpack.c.h.b16 %v382
    %v1531 = vunpack.c.l.b16 %v383
    %v1532 = vunpack.c.h.b16 %v383
    %v1533 = vunpack.c.l.b16 %v384
    %v1534 = vunpack.c.h.b16 %v384
    %v1535 = vunpack.c.l.b16 %v385
    %v1536 = vunpack.c.h.b16 %v385
    %v1537 = vunpack.c.l.b16 %v386
    %v1538 = vunpack.c.h.b16 %v386
    %v1539 = vunpack.c.l.b16 %v387
    %v1540 = vunpack.c.h.b16 %v387
    %v1541 = vunpack.c.l.b16 %v388
    %v1542 = vunpack.c.h.b16 %v388
    %v1543 = vunpack.c.l.b16 %v389
    %v1544 = vunpack.c.h.b16 %v389
    %v1545 = vunpack.c.l.b16 %v390
    %v1546 = vunpack.c.h.b16 %v390
    %v1547 = vunpack.c.l.b16 %v391
    %v1548 = vunpack.c.h.b16 %v391
    %v1549 = vunpack.c.l.b16 %v392
    %v1550 = vunpack.c.h.b16 %v392
    %v1551 = vunpack.c.l.b16 %v393
    %v1552 = vunpack.c.h.b16 %v393
    %v1553 = vunpack.c.l.b16 %v394
    %v1554 = vunpack.c.h.b16 %v394
    %v1555 = vunpack.c.l.b16 %v395
    %v1556 = vunpack.c.h.b16 %v395
    %v1557 = vunpack.c.l.b16 %v396
    %v1558 = vunpack.c.h.b16 %v396
    %v1559 = vunpack.c.l.b16 %v397
    %v1560 = vunpack.c.h.b16 %v397
    %v1561 = vunpack.c.l.b16 %v398
    %v1562 = vunpack.c.h.b16 %v398
    %v1563 = vunpack.c.l.b16 %v399
    %v1564 = vunpack.c.h.b16 %v399
    %v1565 = vunpack.c.l.b16 %v400
    %v1566 = vunpack.c.h.b16 %v400
    %v1567 = vunpack.c.l.b16 %v401
    %v1568 = vunpack.c.h.b16 %v401
    %v1569 = vunpack.c.l.b16 %v402
    %v1570 = vunpack.c.h.b16 %v402
    %v1571 = vunpack.c.l.b16 %v403
    %v1572 = vunpack.c.h.b16 %v403
    %v1573 = vunpack.c.l.b16 %v404
    %v1574 = vunpack.c.h.b16 %v404
    %v1575 = vunpack.c.l.b16 %v405
    %v1576 = vunpack.c.h.b16 %v405
    %v1577 = vunpack.c.l.b16 %v406
    %v1578 = vunpack.c.h.b16 %v406
    %v1579 = vunpack.c.l.b16 %v407
    %v1580 = vunpack.c.h.b16 %v407
    %v1581 = vunpack.c.l.b16 %v408
    %v1582 = vunpack.c.h.b16 %v408
    %v1583 = vunpack.c.l.b16 %v409
    %v1584 = vunpack.c.h.b16 %v409
    %v1585 = vunpack.c.l.b16 %v410
    %v1586 = vunpack.c.h.b16 %v410
    %v1587 = vunpack.c.l.b16 %v411
    %v1588 = vunpack.c.h.b16 %v411
    %v1589 = vunpack.c.l.b16 %v412
    %v1590 = vunpack.c.h.b16 %v412
    %v1591 = vunpack.c.l.b16 %v413
    %v1592 = vunpack.c.h.b16 %v413
    %v1593 = vunpack.c.l.b16 %v414
    %v1594 = vunpack.c.h.b16 %v414
    %v1595 = vunpack.c.l.b16 %v415
    %v1596 = vunpack.c.h.b16 %v415
    %v1597 = vunpack.c.l.b16 %v416
    %v1598 = vunpack.c.h.b16 %v416
    %v1599 = vunpack.c.l.b16 %v417
    %v1600 = vunpack.c.h.b16 %v417
    %v1601 = vunpack.c.l.b16 %v418
    %v1602 = vunpack.c.h.b16 %v418
    %v1603 = vunpack.c.l.b16 %v419
    %v1604 = vunpack.c.h.b16 %v419
    %v1605 = vunpack.c.l.b16 %v420
    %v1606 = vunpack.c.h.b16 %v420
    %v1607 = vunpack.c.l.b16 %v421
    %v1608 = vunpack.c.h.b16 %v421
    %v1609 = vunpack.c.l.b16 %v422
    %v1610 = vunpack.c.h.b16 %v422
    %v1611 = vunpack.c.l.b16 %v423
    %v1612 = vunpack.c.h.b16 %v423
    %v1613 = vunpack.c.l.b16 %v424
    %v1614 = vunpack.c.h.b16 %v424
    %v1615 = vunpack.c.l.b16 %v425
    %v1616 = vunpack.c.h.b16 %v425
    %v1617 = vunpack.c.l.b16 %v426
    %v1618 = vunpack.c.h.b16 %v426
    %v1619 = vunpack.c.l.b16 %v427
    %v1620 = vunpack.c.h.b16 %v427
    %v1621 = vunpack.c.l.b16 %v428
    %v1622 = vunpack.c.h.b16 %v428
    %v1623 = vunpack.c.l.b16 %v429
    %v1624 = vunpack.c.h.b16 %v429
    %v1625 = vunpack.c.l.b16 %v430
    %v1626 = vunpack.c.h.b16 %v430
    %v1627 = vunpack.c.l.b16 %v431
    %v1628 = vunpack.c.h.b16 %v431
    %v1629 = vunpack.c.l.b16 %v432
    %v1630 = vunpack.c.h.b16 %v432
    %v1631 = vunpack.c.l.b16 %v433
    %v1632 = vunpack.c.h.b16 %v433
    %v1633 = vunpack.c.l.b16 %v434
    %v1634 = vunpack.c.h.b16 %v434
    %v1635 = vunpack.c.l.b16 %v435
    %v1636 = vunpack.c.h.b16 %v435
    %v1637 = vunpack.c.l.b16 %v436
    %v1638 = vunpack.c.h.b16 %v436
    %v1639 = vunpack.c.l.b16 %v437
    %v1640 = vunpack.c.h.b16 %v437
    %v1641 = vunpack.c.l.b16 %v438
    %v1642 = vunpack.c.h.b16 %v438
    %v1643 = vunpack.c.l.b16 %v439
    %v1644 = vunpack.c.h.b16 %v439
    %v1645 = vunpack.c.l.b16 %v440
    %v1646 = vunpack.c.h.b16 %v440
    %v1647 = vunpack.c.l.b16 %v441
    %v1648 = vunpack.c.h.b16 %v441
    %v1649 = vunpack.c.l.b16 %v442
    %v1650 = vunpack.c.h.b16 %v442
    %v1651 = vunpack.c.l.b16 %v443
    %v1652 = vunpack.c.h.b16 %v443
    %v1653 = vunpack.c.l.b16 %v444
    %v1654 = vunpack.c.h.b16 %v444
    %v1655 = vunpack.c.l.b16 %v445
    %v1656 = vunpack.c.h.b16 %v445
    %v1657 = vunpack.c.l.b16 %v446
    %v1658 = vunpack.c.h.b16 %v446
    %v1659 = vunpack.c.l.b16 %v447
    %v1660 = vunpack.c.h.b16 %v447
    %v1661 = vunpack.c.l.b16 %v448
    %v1662 = vunpack.c.h.b16 %v448
    %v1663 = vunpack.c.l.b16 %v449
    %v1664 = vunpack.c.h.b16 %v449
    %v1665 = vunpack.c.l.b16 %v450
    %v1666 = vunpack.c.h.b16 %v450
    %v1667 = vunpack.c.l.b16 %v451
    %v1668 = vunpack.c.h.b16 %v451
    %v1669 = vunpack.c.l.b16 %v452
    %v1670 = vunpack.c.h.b16 %v452
    %v1671 = vunpack.c.l.b16 %v453
    %v1672 = vunpack.c.h.b16 %v453
    %v1673 = vunpack.c.l.b16 %v454
    %v1674 = vunpack.c.h.b16 %v454
    %v1675 = vunpack.c.l.b16 %v455
    %v1676 = vunpack.c.h.b16 %v455
    %v1677 = vunpack.c.l.b16 %v456
    %v1678 = vunpack.c.h.b16 %v456
    %v1679 = vunpack.c.l.b16 %v457
    %v1680 = vunpack.c.h.b16 %v457
    %v1681 = vunpack.c.l.b16 %v458
    %v1682 = vunpack.c.h.b16 %v458
    %v1683 = vunpack.c.l.b16 %v459
    %v1684 = vunpack.c.h.b16 %v459
    %v1685 = vunpack.c.l.b16 %v460
    %v1686 = vunpack.c.h.b16 %v460
    %v1687 = vunpack.c.l.b16 %v461
    %v1688 = vunpack.c.h.b16 %v461
    %v1689 = vunpack.c.l.b16 %v462
    %v1690 = vunpack.c.h.b16 %v462
    %v1691 = vunpack.c.l.b16 %v463
    %v1692 = vunpack.c.h.b16 %v463
    %v1693 = vunpack.c.l.b16 %v464
    %v1694 = vunpack.c.h.b16 %v464
    %v1695 = vunpack.c.l.b16 %v465
    %v1696 = vunpack.c.h.b16 %v465
    %v1697 = vunpack.c.l.b16 %v466
    %v1698 = vunpack.c.h.b16 %v466
    %v1699 = vunpack.c.l.b16 %v467
    %v1700 = vunpack.c.h.b16 %v467
    %v1701 = vunpack.c.l.b16 %v468
    %v1702 = vunpack.c.h.b16 %v468
    %v1703 = vunpack.c.l.b16 %v469
    %v1704 = vunpack.c.h.b16 %v469
    %v1705 = vunpack.c.l.b16 %v470
    %v1706 = vunpack.c.h.b16 %v470
    %v1707 = vunpack.c.l.b16 %v471
    %v1708 = vunpack.c.h.b16 %v471
    %v1709 = vunpack.c.l.b16 %v472
    %v1710 = vunpack.c.h.b16 %v472
    %v1711 = vunpack.c.l.b16 %v473
    %v1712 = vunpack.c.h.b16 %v473
    %v1713 = vunpack.c.l.b16 %v474
    %v1714 = vunpack.c.h.b16 %v474
    %v1715 = vunpack.c.l.b16 %v475
    %v1716 = vunpack.c.h.b16 %v475
    %v1717 = vunpack.c.l.b16 %v476
    %v1718 = vunpack.c.h.b16 %v476
    %v1719 = vunpack.c.l.b16 %v477
    %v1720 = vunpack.c.h.b16 %v477
    %v1721 = vunpack.c.l.b16 %v478
    %v1722 = vunpack.c.h.b16 %v478
    %v1723 = vunpack.c.l.b16 %v479
    %v1724 = vunpack.c.h.b16 %v479
    %v1725 = vunpack.c.l.b16 %v480
    %v1726 = vunpack.c.h.b16 %v480
    %v1727 = vunpack.c.l.b16 %v481
    %v1728 = vunpack.c.h.b16 %v481
    %v1729 = vunpack.c.l.b16 %v482
    %v1730 = vunpack.c.h.b16 %v482
    %v1731 = vunpack.c.l.b16 %v483
    %v1732 = vunpack.c.h.b16 %v483
    %v1733 = vunpack.c.l.b16 %v484
    %v1734 = vunpack.c.h.b16 %v484
    %v1735 = vunpack.c.l.b16 %v485
    %v1736 = vunpack.c.h.b16 %v485
    %v1737 = vunpack.c.l.b16 %v486
    %v1738 = vunpack.c.h.b16 %v486
    %v1739 = vunpack.c.l.b16 %v487
    %v1740 = vunpack.c.h.b16 %v487
    %v1741 = vunpack.c.l.b16 %v488
    %v1742 = vunpack.c.h.b16 %v488
    %v1743 = vunpack.c.l.b16 %v489
    %v1744 = vunpack.c.h.b16 %v489
    %v1745 = vunpack.c.l.b16 %v490
    %v1746 = vunpack.c.h.b16 %v490
    %v1747 = vunpack.c.l.b16 %v491
    %v1748 = vunpack.c.h.b16 %v491
    %v1749 = vunpack.c.l.b16 %v492
    %v1750 = vunpack.c.h.b16 %v492
    %v1751 = vunpack.c.l.b16 %v493
    %v1752 = vunpack.c.h.b16 %v493
    %v1753 = vunpack.c.l.b16 %v494
    %v1754 = vunpack.c.h.b16 %v494
    %v1755 = vunpack.c.l.b16 %v495
    %v1756 = vunpack.c.h.b16 %v495
    %v1757 = vunpack.c.l.b16 %v496
    %v1758 = vunpack.c.h.b16 %v496
    %v1759 = vunpack.c.l.b16 %v497
    %v1760 = vunpack.c.h.b16 %v497
    %v1761 = vunpack.c.l.b16 %v498
    %v1762 = vunpack.c.h.b16 %v498
    %v1763 = vunpack.c.l.b16 %v499
    %v1764 = vunpack.c.h.b16 %v499
    %v1765 = vunpack.c.l.b16 %v500
    %v1766 = vunpack.c.h.b16 %v500
    %v1767 = vunpack.c.l.b16 %v501
    %v1768 = vunpack.c.h.b16 %v501
    %v1769 = vunpack.c.l.b16 %v502
    %v1770 = vunpack.c.h.b16 %v502
    %v1771 = vunpack.c.l.b16 %v503
    %v1772 = vunpack.c.h.b16 %v503
    %v1773 = vunpack.c.l.b16 %v504
    %v1774 = vunpack.c.h.b16 %v504
    %v1775 = vunpack.c.l.b16 %v505
    %v1776 = vunpack.c.h.b16 %v505
    %v1777 = vunpack.c.l.b16 %v506
    %v1778 = vunpack.c.h.b16 %v506
    %v1779 = vunpack.c.l.b16 %v507
    %v1780 = vunpack.c.h.b16 %v507
    %v1781 = vunpack.c.l.b16 %v508
    %v1782 = vunpack.c.h.b16 %v508
    %v1783 = vunpack.c.l.b16 %v509
    %v1784 = vunpack.c.h.b16 %v509
    %v1785 = vunpack.c.l.b16 %v510
    %v1786 = vunpack.c.h.b16 %v510
    %v1787 = vunpack.c.l.b16 %v511
    %v1788 = vunpack.c.h.b16 %v511
    %v1789 = vunpack.c.l.b16 %v512
    %v1790 = vunpack.c.h.b16 %v512
    %v1791 = vunpack.c.l.b16 %v513
    %v1792 = vunpack.c.h.b16 %v513
    %v1793 = vunpack.c.l.b16 %v514
    %v1794 = vunpack.c.h.b16 %v514
    %v1795 = vunpack.c.l.b16 %v515
    %v1796 = vunpack.c.h.b16 %v515
    %v1797 = vunpack.c.l.b16 %v516
    %v1798 = vunpack.c.h.b16 %v516
    %v1799 = vunpack.c.l.b16 %v517
    %v1800 = vunpack.c.h.b16 %v517
    %v1801 = vunpack.c.l.b16 %v518
    %v1802 = vunpack.c.h.b16 %v518
    %v1803 = vunpack.c.l.b16 %v519
    %v1804 = vunpack.c.h.b16 %v519
    %v1805 = vunpack.c.l.b16 %v520
    %v1806 = vunpack.c.h.b16 %v520
    %v1807 = vunpack.c.l.b16 %v521
    %v1808 = vunpack.c.h.b16 %v521
    %v1809 = vunpack.c.l.b16 %v522
    %v1810 = vunpack.c.h.b16 %v522
    %v1811 = vunpack.c.l.b16 %v523
    %v1812 = vunpack.c.h.b16 %v523
    %v1813 = vunpack.c.l.b16 %v524
    %v1814 = vunpack.c.h.b16 %v524
    %v1815 = vunpack.c.l.b16 %v525
    %v1816 = vunpack.c.h.b16 %v525
    %v1817 = vunpack.c.l.b16 %v526
    %v1818 = vunpack.c.h.b16 %v526
    %v1819 = vunpack.c.l.b16 %v527
    %v1820 = vunpack.c.h.b16 %v527
    %v1821 = vunpack.c.l.b16 %v528
    %v1822 = vunpack.c.h.b16 %v528
    %v1823 = vunpack.c.l.b16 %v529
    %v1824 = vunpack.c.h.b16 %v529
    %v1825 = vunpack.c.l.b16 %v530
    %v1826 = vunpack.c.h.b16 %v530
    %v1827 = vunpack.c.l.b16 %v531
    %v1828 = vunpack.c.h.b16 %v531
    %v1829 = vunpack.c.l.b16 %v532
    %v1830 = vunpack.c.h.b16 %v532
    %v1831 = vunpack.c.l.b16 %v533
    %v1832 = vunpack.c.h.b16 %v533
    %v1833 = vunpack.c.l.b16 %v534
    %v1834 = vunpack.c.h.b16 %v534
    %v1835 = vunpack.c.l.b16 %v535
    %v1836 = vunpack.c.h.b16 %v535
    %v1837 = vunpack.c.l.b16 %v536
    %v1838 = vunpack.c.h.b16 %v536
    %v1839 = vunpack.c.l.b16 %v537
    %v1840 = vunpack.c.h.b16 %v537
    %v1841 = vunpack.c.l.b16 %v538
    %v1842 = vunpack.c.h.b16 %v538
    %v1843 = vunpack.c.l.b16 %v539
    %v1844 = vunpack.c.h.b16 %v539
    %v1845 = vunpack.c.l.b16 %v540
    %v1846 = vunpack.c.h.b16 %v540
    %v1847 = vunpack.c.l.b16 %v541
    %v1848 = vunpack.c.h.b16 %v541
    %v1849 = vunpack.c.l.b16 %v542
    %v1850 = vunpack.c.h.b16 %v542
    %v1851 = vunpack.c.l.b16 %v543
    %v1852 = vunpack.c.h.b16 %v543
    %v1853 = vunpack.c.l.b16 %v544
    %v1854 = vunpack.c.h.b16 %v544
    %v1855 = vunpack.c.l.b16 %v545
    %v1856 = vunpack.c.h.b16 %v545
    %v1857 = vunpack.c.l.b16 %v546
    %v1858 = vunpack.c.h.b16 %v546
    %v1859 = vunpack.c.l.b16 %v547
    %v1860 = vunpack.c.h.b16 %v547
    %v1861 = vunpack.c.l.b16 %v548
    %v1862 = vunpack.c.h.b16 %v548
    %v1863 = vunpack.c.l.b16 %v549
    %v1864 = vunpack.c.h.b16 %v549
    %v1865 = vunpack.c.l.b16 %v550
    %v1866 = vunpack.c.h.b16 %v550
    %v1867 = vunpack.c.l.b16 %v551
    %v1868 = vunpack.c.h.b16 %v551
    %v1869 = vunpack.c.l.b16 %v552
    %v1870 = vunpack.c.h.b16 %v552
    %v1871 = vunpack.c.l.b16 %v553
    %v1872 = vunpack.c.h.b16 %v553
    %v1873 = vunpack.c.l.b16 %v554
    %v1874 = vunpack.c.h.b16 %v554
    %v1875 = vunpack.c.l.b16 %v555
    %v1876 = vunpack.c.h.b16 %v555
    %v1877 = vunpack.c.l.b16 %v556
    %v1878 = vunpack.c.h.b16 %v556
    %v1879 = vunpack.c.l.b16 %v557
    %v1880 = vunpack.c.h.b16 %v557
    %v1881 = vunpack.c.l.b16 %v558
    %v1882 = vunpack.c.h.b16 %v558
    %v1883 = vunpack.c.l.b16 %v559
    %v1884 = vunpack.c.h.b16 %v559
    %v1885 = vunpack.c.l.b16 %v560
    %v1886 = vunpack.c.h.b16 %v560
    %v1887 = vunpack.c.l.b16 %v561
    %v1888 = vunpack.c.h.b16 %v561
    %v1889 = vunpack.c.l.b16 %v562
    %v1890 = vunpack.c.h.b16 %v562
    %v1891 = vunpack.c.l.b16 %v563
    %v1892 = vunpack.c.h.b16 %v563
    %v1893 = vunpack.c.l.b16 %v564
    %v1894 = vunpack.c.h.b16 %v564
    %v1895 = vunpack.c.l.b16 %v565
    %v1896 = vunpack.c.h.b16 %v565
    %v1897 = vunpack.c.l.b16 %v566
    %v1898 = vunpack.c.h.b16 %v566
    %v1899 = vunpack.c.l.b16 %v567
    %v1900 = vunpack.c.h.b16 %v567
    %v1901 = vunpack.c.l.b16 %v568
    %v1902 = vunpack.c.h.b16 %v568
    %v1903 = vunpack.c.l.b16 %v569
    %v1904 = vunpack.c.h.b16 %v569
    %v1905 = vunpack.c.l.b16 %v570
    %v1906 = vunpack.c.h.b16 %v570
    %v1907 = vunpack.c.l.b16 %v571
    %v1908 = vunpack.c.h.b16 %v571
    %v1909 = vunpack.c.l.b16 %v572
    %v1910 = vunpack.c.h.b16 %v572
    %v1911 = vunpack.c.l.b16 %v573
    %v1912 = vunpack.c.h.b16 %v573
    %v1913 = vunpack.c.l.b16 %v574
    %v1914 = vunpack.c.h.b16 %v574
    %v1915 = vunpack.c.l.b16 %v575
    %v1916 = vunpack.c.h.b16 %v575
    %v1917 = vunpack.c.l.b16 %v576
    %v1918 = vunpack.c.h.b16 %v576
    %v1919 = vunpack.c.l.b16 %v577
    %v1920 = vunpack.c.h.b16 %v577
    %v1921 = vunpack.c.l.b16 %v578
    %v1922 = vunpack.c.h.b16 %v578
    %v1923 = vunpack.c.l.b16 %v579
    %v1924 = vunpack.c.h.b16 %v579
    %v1925 = vunpack.c.l.b16 %v580
    %v1926 = vunpack.c.h.b16 %v580
    %v1927 = vunpack.c.l.b16 %v581
    %v1928 = vunpack.c.h.b16 %v581
    %v1929 = vunpack.c.l.b16 %v582
    %v1930 = vunpack.c.h.b16 %v582
    %v1931 = vunpack.c.l.b16 %v583
    %v1932 = vunpack.c.h.b16 %v583
    %v1933 = vunpack.c.l.b16 %v584
    %v1934 = vunpack.c.h.b16 %v584
    %v1935 = vunpack.c.l.b16 %v585
    %v1936 = vunpack.c.h.b16 %v585
    %v1937 = vunpack.c.l.b16 %v586
    %v1938 = vunpack.c.h.b16 %v586
    %v1939 = vunpack.c.l.b16 %v587
    %v1940 = vunpack.c.h.b16 %v587
    %v1941 = vunpack.c.l.b16 %v588
    %v1942 = vunpack.c.h.b16 %v588
    %v1943 = vunpack.c.l.b16 %v589
    %v1944 = vunpack.c.h.b16 %v589
    %v1945 = vunpack.c.l.b16 %v590
    %v1946 = vunpack.c.h.b16 %v590
    %v1947 = vunpack.c.l.b16 %v591
    %v1948 = vunpack.c.h.b16 %v591
    %v1949 = vunpack.c.l.b16 %v592
    %v1950 = vunpack.c.h.b16 %v592
    %v1951 = vunpack.c.l.b16 %v593
    %v1952 = vunpack.c.h.b16 %v593
    %v1953 = vunpack.c.l.b16 %v594
    %v1954 = vunpack.c.h.b16 %v594
    %v1955 = vunpack.c.l.b16 %v595
    %v1956 = vunpack.c.h.b16 %v595
    %v1957 = vunpack.c.l.b16 %v596
    %v1958 = vunpack.c.h.b16 %v596
    %v1959 = vpack.c.b16 %v1071, %v1063
    %v1960 = vpack.c.b16 %v1072, %v1064
    %v1961 = vpack.c.b16 %v1073, %v1065
    %v1962 = vpack.c.b16 %v1074, %v1066
    %v1963 = vpack.c.b16 %v1075, %v1067
    %v1964 = vpack.c.b16 %v1076, %v1068
    %v1965 = vpack.c.b16 %v1077, %v1069
    %v1966 = vpack.c.b16 %v1078, %v1070
    %v1967 = vpack.c.b16 %v1087, %v1079
    %v1968 = vpack.c.b16 %v1088, %v1080
    %v1969 = vpack.c.b16 %v1089, %v1081
    %v1970 = vpack.c.b16 %v1090, %v1082
    %v1971 = vpack.c.b16 %v1091, %v1083
    %v1972 = vpack.c.b16 %v1092, %v1084
    %v1973 = vpack.c.b16 %v1093, %v1085
    %v1974 = vpack.c.b16 %v1094, %v1086
    %v1975 = vpack.c.b16 %v1103, %v1095
    %v1976 = vpack.c.b16 %v1104, %v1096
    %v1977 = vpack.c.b16 %v1105, %v1097
    %v1978 = vpack.c.b16 %v1106, %v1098
    %v1979 = vpack.c.b16 %v1107, %v1099
    %v1980 = vpack.c.b16 %v1108, %v1100
    %v1981 = vpack.c.b16 %v1109, %v1101
    %v1982 = vpack.c.b16 %v1110, %v1102
    %v1983 = vpack.c.b16 %v1119, %v1111
    %v1984 = vpack.c.b16 %v1120, %v1112
    %v1985 = vpack.c.b16 %v1121, %v1113
    %v1986 = vpack.c.b16 %v1122, %v1114
    %v1987 = vpack.c.b16 %v1123, %v1115
    %v1988 = vpack.c.b16 %v1124, %v1116
    %v1989 = vpack.c.b16 %v1125, %v1117
    %v1990 = vpack.c.b16 %v1126, %v1118
    %v1991 = vpack.c.b16 %v1135, %v1127
    %v1992 = vpack.c.b16 %v1136, %v1128
    %v1993 = vpack.c.b16 %v1137, %v1129
    %v1994 = vpack.c.b16 %v1138, %v1130
    %v1995 = vpack.c.b16 %v1139, %v1131
    %v1996 = vpack.c.b16 %v1140, %v1132
    %v1997 = vpack.c.b16 %v1141, %v1133
    %v1998 = vpack.c.b16 %v1142, %v1134
    %v1999 = vpack.c.b16 %v1151, %v1143
    %v2000 = vpack.c.b16 %v1152, %v1144
    %v2001 = vpack.c.b16 %v1153, %v1145
    %v2002 = vpack.c.b16 %v1154, %v1146
    %v2003 = vpack.c.b16 %v1155, %v1147
    %v2004 = vpack.c.b16 %v1156, %v1148
    %v2005 = vpack.c.b16 %v1157, %v1149
    %v2006 = vpack.c.b16 %v1158, %v1150
    %v2007 = vpack.c.b16 %v1167, %v1159
    %v2008 = vpack.c.b16 %v1168, %v1160
    %v2009 = vpack.c.b16 %v1169, %v1161
    %v2010 = vpack.c.b16 %v1170, %v1162
    %v2011 = vpack.c.b16 %v1171, %v1163
    %v2012 = vpack.c.b16 %v1172, %v1164
    %v2013 = vpack.c.b16 %v1173, %v1165
    %v2014 = vpack.c.b16 %v1174, %v1166
    %v2015 = vpack.c.b16 %v1183, %v1175
    %v2016 = vpack.c.b16 %v1184, %v1176
    %v2017 = vpack.c.b16 %v1185, %v1177
    %v2018 = vpack.c.b16 %v1186, %v1178
    %v2019 = vpack.c.b16 %v1187, %v1179
    %v2020 = vpack.c.b16 %v1188, %v1180
    %v2021 = vpack.c.b16 %v1189, %v1181
    %v2022 = vpack.c.b16 %v1190, %v1182
    %v2023 = vpack.c.b16 %v1199, %v1191
    %v2024 = vpack.c.b16 %v1200, %v1192
    %v2025 = vpack.c.b16 %v1201, %v1193
    %v2026 = vpack.c.b16 %v1202, %v1194
    %v2027 = vpack.c.b16 %v1203, %v1195
    %v2028 = vpack.c.b16 %v1204, %v1196
    %v2029 = vpack.c.b16 %v1205, %v1197
    %v2030 = vpack.c.b16 %v1206, %v1198
    %v2031 = vpack.c.b16 %v1215, %v1207
    %v2032 = vpack.c.b16 %v1216, %v1208
    %v2033 = vpack.c.b16 %v1217, %v1209
    %v2034 = vpack.c.b16 %v1218, %v1210
    %v2035 = vpack.c.b16 %v1219, %v1211
    %v2036 = vpack.c.b16 %v1220, %v1212
    %v2037 = vpack.c.b16 %v1221, %v1213
    %v2038 = vpack.c.b16 %v1222, %v1214
    %v2039 = vpack.c.b16 %v1231, %v1223
    %v2040 = vpack.c.b16 %v1232, %v1224
    %v2041 = vpack.c.b16 %v1233, %v1225
    %v2042 = vpack.c.b16 %v1234, %v1226
    %v2043 = vpack.c.b16 %v1235, %v1227
    %v2044 = vpack.c.b16 %v1236, %v1228
    %v2045 = vpack.c.b16 %v1237, %v1229
    %v2046 = vpack.c.b16 %v1238, %v1230
    %v2047 = vpack.c.b16 %v1247, %v1239
    %v2048 = vpack.c.b16 %v1248, %v1240
    %v2049 = vpack.c.b16 %v1249, %v1241
    %v2050 = vpack.c.b16 %v1250, %v1242
    %v2051 = vpack.c.b16 %v1251, %v1243
    %v2052 = vpack.c.b16 %v1252, %v1244
    %v2053 = vpack.c.b16 %v1253, %v1245
    %v2054 = vpack.c.b16 %v1254, %v1246
    %v2055 = vpack.c.b16 %v1263, %v1255
    %v2056 = vpack.c.b16 %v1264, %v1256
    %v2057 = vpack.c.b16 %v1265, %v1257
    %v2058 = vpack.c.b16 %v1266, %v1258
    %v2059 = vpack.c.b16 %v1267, %v1259
    %v2060 = vpack.c.b16 %v1268, %v1260
    %v2061 = vpack.c.b16 %v1269, %v1261
    %v2062 = vpack.c.b16 %v1270, %v1262
    %v2063 = vpack.c.b16 %v1279, %v1271
    %v2064 = vpack.c.b16 %v1280, %v1272
    %v2065 = vpack.c.b16 %v1281, %v1273
    %v2066 = vpack.c.b16 %v1282, %v1274
    %v2067 = vpack.c.b16 %v1283, %v1275
    %v2068 = vpack.c.b16 %v1284, %v1276
    %v2069 = vpack.c.b16 %v1285, %v1277
    %v2070 = vpack.c.b16 %v1286, %v1278
    %v2071 = vpack.c.b16 %v1295, %v1287
    %v2072 = vpack.c.b16 %v1296, %v1288
    %v2073 = vpack.c.b16 %v1297, %v1289
    %v2074 = vpack.c.b16 %v1298, %v1290
    %v2075 = vpack.c.b16 %v1299, %v1291
    %v2076 = vpack.c.b16 %v1300, %v1292
    %v2077 = vpack.c.b16 %v1301, %v1293
    %v2078 = vpack.c.b16 %v1302, %v1294
    %v2079 = vpack.c.b16 %v1311, %v1303
    %v2080 = vpack.c.b16 %v1312, %v1304
    %v2081 = vpack.c.b16 %v1313, %v1305
    %v2082 = vpack.c.b16 %v1314, %v1306
    %v2083 = vpack.c.b16 %v1315, %v1307
    %v2084 = vpack.c.b16 %v1316, %v1308
    %v2085 = vpack.c.b16 %v1317, %v1309
    %v2086 = vpack.c.b16 %v1318, %v1310
    %v2087 = vpack.c.b16 %v1327, %v1319
    %v2088 = vpack.c.b16 %v1328, %v1320
    %v2089 = vpack.c.b16 %v1329, %v1321
    %v2090 = vpack.c.b16 %v1330, %v1322
    %v2091 = vpack.c.b16 %v1331, %v1323
    %v2092 = vpack.c.b16 %v1332, %v1324
    %v2093 = vpack.c.b16 %v1333, %v1325
    %v2094 = vpack.c.b16 %v1334, %v1326
    %v2095 = vpack.c.b16 %v1343, %v1335
    %v2096 = vpack.c.b16 %v1344, %v1336
    %v2097 = vpack.c.b16 %v1345, %v1337
    %v2098 = vpack.c.b16 %v1346, %v1338
    %v2099 = vpack.c.b16 %v1347, %v1339
    %v2100 = vpack.c.b16 %v1348, %v1340
    %v2101 = vpack.c.b16 %v1349, %v1341
    %v2102 = vpack.c.b16 %v1350, %v1342
    %v2103 = vpack.c.b16 %v1359, %v1351
    %v2104 = vpack.c.b16 %v1360, %v1352
    %v2105 = vpack.c.b16 %v1361, %v1353
    %v2106 = vpack.c.b16 %v1362, %v1354
    %v2107 = vpack.c.b16 %v1363, %v1355
    %v2108 = vpack.c.b16 %v1364, %v1356
    %v2109 = vpack.c.b16 %v1365, %v1357
    %v2110 = vpack.c.b16 %v1366, %v1358
    %v2111 = vpack.c.b16 %v1375, %v1367
    %v2112 = vpack.c.b16 %v1376, %v1368
    %v2113 = vpack.c.b16 %v1377, %v1369
    %v2114 = vpack.c.b16 %v1378, %v1370
    %v2115 = vpack.c.b16 %v1379, %v1371
    %v2116 = vpack.c.b16 %v1380, %v1372
    %v2117 = vpack.c.b16 %v1381, %v1373
    %v2118 = vpack.c.b16 %v1382, %v1374
    %v2119 = vpack.c.b16 %v1391, %v1383
    %v2120 = vpack.c.b16 %v1392, %v1384
    %v2121 = vpack.c.b16 %v1393, %v1385
    %v2122 = vpack.c.b16 %v1394, %v1386
    %v2123 = vpack.c.b16 %v1395, %v1387
    %v2124 = vpack.c.b16 %v1396, %v1388
    %v2125 = vpack.c.b16 %v1397, %v1389
    %v2126 = vpack.c.b16 %v1398, %v1390
    %v2127 = vpack.c.b16 %v1407, %v1399
    %v2128 = vpack.c.b16 %v1408, %v1400
    %v2129 = vpack.c.b16 %v1409, %v1401
    %v2130 = vpack.c.b16 %v1410, %v1402
    %v2131 = vpack.c.b16 %v1411, %v1403
    %v2132 = vpack.c.b16 %v1412, %v1404
    %v2133 = vpack.c.b16 %v1413, %v1405
    %v2134 = vpack.c.b16 %v1414, %v1406
    %v2135 = vpack.c.b16 %v1423, %v1415
    %v2136 = vpack.c.b16 %v1424, %v1416
    %v2137 = vpack.c.b16 %v1425, %v1417
    %v2138 = vpack.c.b16 %v1426, %v1418
    %v2139 = vpack.c.b16 %v1427, %v1419
    %v2140 = vpack.c.b16 %v1428, %v1420
    %v2141 = vpack.c.b16 %v1429, %v1421
    %v2142 = vpack.c.b16 %v1430, %v1422
    %v2143 = vpack.c.b16 %v1439, %v1431
    %v2144 = vpack.c.b16 %v1440, %v1432
    %v2145 = vpack.c.b16 %v1441, %v1433
    %v2146 = vpack.c.b16 %v1442, %v1434
    %v2147 = vpack.c.b16 %v1443, %v1435
    %v2148 = vpack.c.b16 %v1444, %v1436
    %v2149 = vpack.c.b16 %v1445, %v1437
    %v2150 = vpack.c.b16 %v1446, %v1438
    %v2151 = vpack.c.b16 %v1455, %v1447
    %v2152 = vpack.c.b16 %v1456, %v1448
    %v2153 = vpack.c.b16 %v1457, %v1449
    %v2154 = vpack.c.b16 %v1458, %v1450
    %v2155 = vpack.c.b16 %v1459, %v1451
    %v2156 = vpack.c.b16 %v1460, %v1452
    %v2157 = vpack.c.b16 %v1461, %v1453
    %v2158 = vpack.c.b16 %v1462, %v1454
    %v2159 = vpack.c.b16 %v1471, %v1463
    %v2160 = vpack.c.b16 %v1472, %v1464
    %v2161 = vpack.c.b16 %v1473, %v1465
    %v2162 = vpack.c.b16 %v1474, %v1466
    %v2163 = vpack.c.b16 %v1475, %v1467
    %v2164 = vpack.c.b16 %v1476, %v1468
    %v2165 = vpack.c.b16 %v1477, %v1469
    %v2166 = vpack.c.b16 %v1478, %v1470
    %v2167 = vpack.c.b16 %v1487, %v1479
    %v2168 = vpack.c.b16 %v1488, %v1480
    %v2169 = vpack.c.b16 %v1489, %v1481
    %v2170 = vpack.c.b16 %v1490, %v1482
    %v2171 = vpack.c.b16 %v1491, %v1483
    %v2172 = vpack.c.b16 %v1492, %v1484
    %v2173 = vpack.c.b16 %v1493, %v1485
    %v2174 = vpack.c.b16 %v1494, %v1486
    %v2175 = vpack.c.b16 %v1503, %v1495
    %v2176 = vpack.c.b16 %v1504, %v1496
    %v2177 = vpack.c.b16 %v1505, %v1497
    %v2178 = vpack.c.b16 %v1506, %v1498
    %v2179 = vpack.c.b16 %v1507, %v1499
    %v2180 = vpack.c.b16 %v1508, %v1500
    %v2181 = vpack.c.b16 %v1509, %v1501
    %v2182 = vpack.c.b16 %v1510, %v1502
    %v2183 = vpack.c.b16 %v1519, %v1511
    %v2184 = vpack.c.b16 %v1520, %v1512
    %v2185 = vpack.c.b16 %v1521, %v1513
    %v2186 = vpack.c.b16 %v1522, %v1514
    %v2187 = vpack.c.b16 %v1523, %v1515
    %v2188 = vpack.c.b16 %v1524, %v1516
    %v2189 = vpack.c.b16 %v1525, %v1517
    %v2190 = vpack.c.b16 %v1526, %v1518
    %v2191 = vpack.c.b16 %v1535, %v1527
    %v2192 = vpack.c.b16 %v1536, %v1528
    %v2193 = vpack.c.b16 %v1537, %v1529
    %v2194 = vpack.c.b16 %v1538, %v1530
    %v2195 = vpack.c.b16 %v1539, %v1531
    %v2196 = vpack.c.b16 %v1540, %v1532
    %v2197 = vpack.c.b16 %v1541, %v1533
    %v2198 = vpack.c.b16 %v1542, %v1534
    %v2199 = vpack.c.b16 %v1551, %v1543
    %v2200 = vpack.c.b16 %v1552, %v1544
    %v2201 = vpack.c.b16 %v1553, %v1545
    %v2202 = vpack.c.b16 %v1554, %v1546
    %v2203 = vpack.c.b16 %v1555, %v1547
    %v2204 = vpack.c.b16 %v1556, %v1548
    %v2205 = vpack.c.b16 %v1557, %v1549
    %v2206 = vpack.c.b16 %v1558, %v1550
    %v2207 = vpack.c.b16 %v1567, %v1559
    %v2208 = vpack.c.b16 %v1568, %v1560
    %v2209 = vpack.c.b16 %v1569, %v1561
    %v2210 = vpack.c.b16 %v1570, %v1562
    %v2211 = vpack.c.b16 %v1571, %v1563
    %v2212 = vpack.c.b16 %v1572, %v1564
    %v2213 = vpack.c.b16 %v1573, %v1565
    %v2214 = vpack.c.b16 %v1574, %v1566
    %v2215 = vpack.c.b16 %v1583, %v1575
    %v2216 = vpack.c.b16 %v1584, %v1576
    %v2217 = vpack.c.b16 %v1585, %v1577
    %v2218 = vpack.c.b16 %v1586, %v1578
    %v2219 = vpack.c.b16 %v1587, %v1579
    %v2220 = vpack.c.b16 %v1588, %v1580
    %v2221 = vpack.c.b16 %v1589, %v1581
    %v2222 = vpack.c.b16 %v1590, %v1582
    %v2223 = vpack.c.b16 %v1599, %v1591
    %v2224 = vpack.c.b16 %v1600, %v1592
    %v2225 = vpack.c.b16 %v1601, %v1593
    %v2226 = vpack.c.b16 %v1602, %v1594
    %v2227 = vpack.c.b16 %v1603, %v1595
    %v2228 = vpack.c.b16 %v1604, %v1596
    %v2229 = vpack.c.b16 %v1605, %v1597
    %v2230 = vpack.c.b16 %v1606, %v1598
    %v2231 = vpack.c.b16 %v1615, %v1607
    %v2232 = vpack.c.b16 %v1616, %v1608
    %v2233 = vpack.c.b16 %v1617, %v1609
    %v2234 = vpack.c.b16 %v1618, %v1610
    %v2235 = vpack.c.b16 %v1619, %v1611
    %v2236 = vpack.c.b16 %v1620, %v1612
    %v2237 = vpack.c.b16 %v1621, %v1613
    %v2238 = vpack.c.b16 %v1622, %v1614
    %v2239 = vpack.c.b16 %v1631, %v1623
    %v2240 = vpack.c.b16 %v1632, %v1624
    %v2241 = vpack.c.b16 %v1633, %v1625
    %v2242 = vpack.c.b16 %v1634, %v1626
    %v2243 = vpack.c.b16 %v1635, %v1627
    %v2244 = vpack.c.b16 %v1636, %v1628
    %v2245 = vpack.c.b16 %v1637, %v1629
    %v2246 = vpack.c.b16 %v1638, %v1630
    %v2247 = vpack.c.b16 %v1647, %v1639
    %v2248 = vpack.c.b16 %v1648, %v1640
    %v2249 = vpack.c.b16 %v1649, %v1641
    %v2250 = vpack.c.b16 %v1650, %v1642
    %v2251 = vpack.c.b16 %v1651, %v1643
    %v2252 = vpack.c.b16 %v1652, %v1644
    %v2253 = vpack.c.b16 %v1653, %v1645
    %v2254 = vpack.c.b16 %v1654, %v1646
    %v2255 = vpack.c.b16 %v1663, %v1655
    %v2256 = vpack.c.b16 %v1664, %v1656
    %v2257 = vpack.c.b16 %v1665, %v1657
    %v2258 = vpack.c.b16 %v1666, %v1658
    %v2259 = vpack.c.b16 %v1667, %v1659
    %v2260 = vpack.c.b16 %v1668, %v1660
    %v2261 = vpack.c.b16 %v1669, %v1661
    %v2262 = vpack.c.b16 %v1670, %v1662
    %v2263 = vpack.c.b16 %v1679, %v1671
    %v2264 = vpack.c.b16 %v1680, %v1672
    %v2265 = vpack.c.b16 %v1681, %v1673
    %v2266 = vpack.c.b16 %v1682, %v1674
    %v2267 = vpack.c.b16 %v1683, %v1675
    %v2268 = vpack.c.b16 %v1684, %v1676
    %v2269 = vpack.c.b16 %v1685, %v1677
    %v2270 = vpack.c.b16 %v1686, %v1678
    %v2271 = vpack.c.b16 %v1695, %v1687
    %v2272 = vpack.c.b16 %v1696, %v1688
    %v2273 = vpack.c.b16 %v1697, %v1689
    %v2274 = vpack.c.b16 %v1698, %v1690
    %v2275 = vpack.c.b16 %v1699, %v1691
    %v2276 = vpack.c.b16 %v1700, %v1692
    %v2277 = vpack.c.b16 %v1701, %v1693
    %v2278 = vpack.c.b16 %v1702, %v1694
    %v2279 = vpack.c.b16 %v1711, %v1703
    %v2280 = vpack.c.b16 %v1712, %v1704
    %v2281 = vpack.c.b16 %v1713, %v1705
    %v2282 = vpack.c.b16 %v1714, %v1706
    %v2283 = vpack.c.b16 %v1715, %v1707
    %v2284 = vpack.c.b16 %v1716, %v1708
    %v2285 = vpack.c.b16 %v1717, %v1709
    %v2286 = vpack.c.b16 %v1718, %v1710
    %v2287 = vpack.c.b16 %v1727, %v1719
    %v2288 = vpack.c.b16 %v1728, %v1720
    %v2289 = vpack.c.b16 %v1729, %v1721
    %v2290 = vpack.c.b16 %v1730, %v1722
    %v2291 = vpack.c.b16 %v1731, %v1723
    %v2292 = vpack.c.b16 %v1732, %v1724
    %v2293 = vpack.c.b16 %v1733, %v1725
    %v2294 = vpack.c.b16 %v1734, %v1726
    %v2295 = vpack.c.b16 %v1743, %v1735
    %v2296 = vpack.c.b16 %v1744, %v1736
    %v2297 = vpack.c.b16 %v1745, %v1737
    %v2298 = vpack.c.b16 %v1746, %v1738
    %v2299 = vpack.c.b16 %v1747, %v1739
    %v2300 = vpack.c.b16 %v1748, %v1740
    %v2301 = vpack.c.b16 %v1749, %v1741
    %v2302 = vpack.c.b16 %v1750, %v1742
    %v2303 = vpack.c.b16 %v1759, %v1751
    %v2304 = vpack.c.b16 %v1760, %v1752
    %v2305 = vpack.c.b16 %v1761, %v1753
    %v2306 = vpack.c.b16 %v1762, %v1754
    %v2307 = vpack.c.b16 %v1763, %v1755
    %v2308 = vpack.c.b16 %v1764, %v1756
    %v2309 = vpack.c.b16 %v1765, %v1757
    %v2310 = vpack.c.b16 %v1766, %v1758
    %v2311 = vpack.c.b16 %v1775, %v1767
    %v2312 = vpack.c.b16 %v1776, %v1768
    %v2313 = vpack.c.b16 %v1777, %v1769
    %v2314 = vpack.c.b16 %v1778, %v1770
    %v2315 = vpack.c.b16 %v1779, %v1771
    %v2316 = vpack.c.b16 %v1780, %v1772
    %v2317 = vpack.c.b16 %v1781, %v1773
    %v2318 = vpack.c.b16 %v1782, %v1774
    %v2319 = vpack.c.b16 %v1791, %v1783
    %v2320 = vpack.c.b16 %v1792, %v1784
    %v2321 = vpack.c.b16 %v1793, %v1785
    %v2322 = vpack.c.b16 %v1794, %v1786
    %v2323 = vpack.c.b16 %v1795, %v1787
    %v2324 = vpack.c.b16 %v1796, %v1788
    %v2325 = vpack.c.b16 %v1797, %v1789
    %v2326 = vpack.c.b16 %v1798, %v1790
    %v2327 = vpack.c.b16 %v1807, %v1799
    %v2328 = vpack.c.b16 %v1808, %v1800
    %v2329 = vpack.c.b16 %v1809, %v1801
    %v2330 = vpack.c.b16 %v1810, %v1802
    %v2331 = vpack.c.b16 %v1811, %v1803
    %v2332 = vpack.c.b16 %v1812, %v1804
    %v2333 = vpack.c.b16 %v1813, %v1805
    %v2334 = vpack.c.b16 %v1814, %v1806
    %v2335 = vpack.c.b16 %v1823, %v1815
    %v2336 = vpack.c.b16 %v1824, %v1816
    %v2337 = vpack.c.b16 %v1825, %v1817
    %v2338 = vpack.c.b16 %v1826, %v1818
    %v2339 = vpack.c.b16 %v1827, %v1819
    %v2340 = vpack.c.b16 %v1828, %v1820
    %v2341 = vpack.c.b16 %v1829, %v1821
    %v2342 = vpack.c.b16 %v1830, %v1822
    %v2343 = vpack.c.b16 %v1839, %v1831
    %v2344 = vpack.c.b16 %v1840, %v1832
    %v2345 = vpack.c.b16 %v1841, %v1833
    %v2346 = vpack.c.b16 %v1842, %v1834
    %v2347 = vpack.c.b16 %v1843, %v1835
    %v2348 = vpack.c.b16 %v1844, %v1836
    %v2349 = vpack.c.b16 %v1845, %v1837
    %v2350 = vpack.c.b16 %v1846, %v1838
    %v2351 = vpack.c.b16 %v1855, %v1847
    %v2352 = vpack.c.b16 %v1856, %v1848
    %v2353 = vpack.c.b16 %v1857, %v1849
    %v2354 = vpack.c.b16 %v1858, %v1850
    %v2355 = vpack.c.b16 %v1859, %v1851
    %v2356 = vpack.c.b16 %v1860, %v1852
    %v2357 = vpack.c.b16 %v1861, %v1853
    %v2358 = vpack.c.b16 %v1862, %v1854
    %v2359 = vpack.c.b16 %v1871, %v1863
    %v2360 = vpack.c.b16 %v1872, %v1864
    %v2361 = vpack.c.b16 %v1873, %v1865
    %v2362 = vpack.c.b16 %v1874, %v1866
    %v2363 = vpack.c.b16 %v1875, %v1867
    %v2364 = vpack.c.b16 %v1876, %v1868
    %v2365 = vpack.c.b16 %v1877, %v1869
    %v2366 = vpack.c.b16 %v1878, %v1870
    %v2367 = vpack.c.b16 %v1887, %v1879
    %v2368 = vpack.c.b16 %v1888, %v1880
    %v2369 = vpack.c.b16 %v1889, %v1881
    %v2370 = vpack.c.b16 %v1890, %v1882
    %v2371 = vpack.c.b16 %v1891, %v1883
    %v2372 = vpack.c.b16 %v1892, %v1884
    %v2373 = vpack.c.b16 %v1893, %v1885
    %v2374 = vpack.c.b16 %v1894, %v1886
    %v2375 = vpack.c.b16 %v1903, %v1895
    %v2376 = vpack.c.b16 %v1904, %v1896
    %v2377 = vpack.c.b16 %v1905, %v1897
    %v2378 = vpack.c.b16 %v1906, %v1898
    %v2379 = vpack.c.b16 %v1907, %v1899
    %v2380 = vpack.c.b16 %v1908, %v1900
    %v2381 = vpack.c.b16 %v1909, %v1901
    %v2382 = vpack.c.b16 %v1910, %v1902
    %v2383 = vpack.c.b16 %v1919, %v1911
    %v2384 = vpack.c.b16 %v1920, %v1912
    %v2385 = vpack.c.b16 %v1921, %v1913
    %v2386 = vpack.c.b16 %v1922, %v1914
    %v2387 = vpack.c.b16 %v1923, %v1915
    %v2388 = vpack.c.b16 %v1924, %v1916
    %v2389 = vpack.c.b16 %v1925, %v1917
    %v2390 = vpack.c.b16 %v1926, %v1918
    %v2391 = vpack.c.b16 %v1935, %v1927
    %v2392 = vpack.c.b16 %v1936, %v1928
    %v2393 = vpack.c.b16 %v1937, %v1929
    %v2394 = vpack.c.b16 %v1938, %v1930
    %v2395 = vpack.c.b16 %v1939, %v1931
    %v2396 = vpack.c.b16 %v1940, %v1932
    %v2397 = vpack.c.b16 %v1941, %v1933
    %v2398 = vpack.c.b16 %v1942, %v1934
    %v2399 = vpack.c.b16 %v1951, %v1943
    %v2400 = vpack.c.b16 %v1952, %v1944
    %v2401 = vpack.c.b16 %v1953, %v1945
    %v2402 = vpack.c.b16 %v1954, %v1946
    %v2403 = vpack.c.b16 %v1955, %v1947
    %v2404 = vpack.c.b16 %v1956, %v1948
    %v2405 = vpack.c.b16 %v1957, %v1949
    %v2406 = vpack.c.b16 %v1958, %v1950
    %2855 = vmatpush.bf16.msra.mxu0 %v2015
    %2856 = vmatpush.bf16.msra.mxu0 %v2007
    %2857 = vmatpush.bf16.msra.mxu0 %v1999
    %2858 = vmatpush.bf16.msra.mxu0 %v1991
    %2859 = vmatpush.bf16.msra.mxu0 %v1983
    %2860 = vmatpush.bf16.msra.mxu0 %v1975
    %2861 = vmatpush.bf16.msra.mxu0 %v1967
    %2862 = vmatpush.bf16.msra.mxu0 %v1959
    %2863 = vmatmul.bf16.gmra.mxu0 %v142
    %v2864 = vpop.f32.mrf.mxu0
    %v2865 = vadd.f32 %v599, %v2864
    %v2866 = vpop.f32.mrf.mxu0
    %2867 = vdwg.mxu0
    %2868 = vmatpush.bf16.msra.mxu0 %v2079
    %2869 = vmatpush.bf16.msra.mxu0 %v2071
    %2870 = vmatpush.bf16.msra.mxu0 %v2063
    %2871 = vmatpush.bf16.msra.mxu0 %v2055
    %2872 = vmatpush.bf16.msra.mxu0 %v2047
    %2873 = vmatpush.bf16.msra.mxu0 %v2039
    %2874 = vmatpush.bf16.msra.mxu0 %v2031
    %2875 = vmatpush.bf16.msra.mxu0 %v2023
    %2876 = vmatmul.bf16.gmra.mxu0 %v143
    %v2877 = vpop.f32.mrf.mxu0
    %v2878 = vadd.f32 %v2865, %v2877
    %v2879 = vpop.f32.mrf.mxu0
    %2880 = vdwg.mxu0
    %2881 = vmatpush.bf16.msra.mxu0 %v2143
    %2882 = vmatpush.bf16.msra.mxu0 %v2135
    %2883 = vmatpush.bf16.msra.mxu0 %v2127
    %2884 = vmatpush.bf16.msra.mxu0 %v2119
    %2885 = vmatpush.bf16.msra.mxu0 %v2111
    %2886 = vmatpush.bf16.msra.mxu0 %v2103
    %2887 = vmatpush.bf16.msra.mxu0 %v2095
    %2888 = vmatpush.bf16.msra.mxu0 %v2087
    %2889 = vmatmul.bf16.gmra.mxu0 %v144
    %v2890 = vpop.f32.mrf.mxu0
    %v2891 = vadd.f32 %v2878, %v2890
    %v2892 = vpop.f32.mrf.mxu0
    %2893 = vdwg.mxu0
    %2894 = vmatpush.bf16.msra.mxu0 %v2207
    %2895 = vmatpush.bf16.msra.mxu0 %v2199
    %2896 = vmatpush.bf16.msra.mxu0 %v2191
    %2897 = vmatpush.bf16.msra.mxu0 %v2183
    %2898 = vmatpush.bf16.msra.mxu0 %v2175
    %2899 = vmatpush.bf16.msra.mxu0 %v2167
    %2900 = vmatpush.bf16.msra.mxu0 %v2159
    %2901 = vmatpush.bf16.msra.mxu0 %v2151
    %2902 = vmatmul.bf16.gmra.mxu0 %v145
    %v2903 = vpop.f32.mrf.mxu0
    %v2904 = vadd.f32 %v2891, %v2903
    %v2905 = vpop.f32.mrf.mxu0
    %2906 = vdwg.mxu0
    %2907 = vmatpush.bf16.msra.mxu0 %v2271
    %2908 = vmatpush.bf16.msra.mxu0 %v2263
    %2909 = vmatpush.bf16.msra.mxu0 %v2255
    %2910 = vmatpush.bf16.msra.mxu0 %v2247
    %2911 = vmatpush.bf16.msra.mxu0 %v2239
    %2912 = vmatpush.bf16.msra.mxu0 %v2231
    %2913 = vmatpush.bf16.msra.mxu0 %v2223
    %2914 = vmatpush.bf16.msra.mxu0 %v2215
    %2915 = vmatmul.bf16.gmra.mxu0 %v146
    %v2916 = vpop.f32.mrf.mxu0
    %v2917 = vadd.f32 %v2904, %v2916
    %v2918 = vpop.f32.mrf.mxu0
    %2919 = vdwg.mxu0
    %2920 = vmatpush.bf16.msra.mxu0 %v2335
    %2921 = vmatpush.bf16.msra.mxu0 %v2327
    %2922 = vmatpush.bf16.msra.mxu0 %v2319
    %2923 = vmatpush.bf16.msra.mxu0 %v2311
    %2924 = vmatpush.bf16.msra.mxu0 %v2303
    %2925 = vmatpush.bf16.msra.mxu0 %v2295
    %2926 = vmatpush.bf16.msra.mxu0 %v2287
    %2927 = vmatpush.bf16.msra.mxu0 %v2279
    %2928 = vmatmul.bf16.gmra.mxu0 %v147
    %v2929 = vpop.f32.mrf.mxu0
    %v2930 = vadd.f32 %v2917, %v2929
    %v2931 = vpop.f32.mrf.mxu0
    %2932 = vdwg.mxu0
    %2933 = vmatpush.bf16.msra.mxu0 %v2399
    %2934 = vmatpush.bf16.msra.mxu0 %v2391
    %2935 = vmatpush.bf16.msra.mxu0 %v2383
    %2936 = vmatpush.bf16.msra.mxu0 %v2375
    %2937 = vmatpush.bf16.msra.mxu0 %v2367
    %2938 = vmatpush.bf16.msra.mxu0 %v2359
    %2939 = vmatpush.bf16.msra.mxu0 %v2351
    %2940 = vmatpush.bf16.msra.mxu0 %v2343
    %2941 = vmatmul.bf16.gmra.mxu0 %v148
    %v2942 = vpop.f32.mrf.mxu0
    %v2943 = vadd.f32 %v2930, %v2942
    %v2944 = vpop.f32.mrf.mxu0
    %2945 = vdwg.mxu0
    %2946 = vmatpush.bf16.msra.mxu0 %v2016
    %2947 = vmatpush.bf16.msra.mxu0 %v2008
    %2948 = vmatpush.bf16.msra.mxu0 %v2000
    %2949 = vmatpush.bf16.msra.mxu0 %v1992
    %2950 = vmatpush.bf16.msra.mxu0 %v1984
    %2951 = vmatpush.bf16.msra.mxu0 %v1976
    %2952 = vmatpush.bf16.msra.mxu0 %v1968
    %2953 = vmatpush.bf16.msra.mxu0 %v1960
    %2954 = vmatmul.bf16.gmra.mxu0 %v142
    %v2955 = vpop.f32.mrf.mxu0
    %v2956 = vadd.f32 %v600, %v2955
    %v2957 = vpop.f32.mrf.mxu0
    %2958 = vdwg.mxu0
    %2959 = vmatpush.bf16.msra.mxu0 %v2080
    %2960 = vmatpush.bf16.msra.mxu0 %v2072
    %2961 = vmatpush.bf16.msra.mxu0 %v2064
    %2962 = vmatpush.bf16.msra.mxu0 %v2056
    %2963 = vmatpush.bf16.msra.mxu0 %v2048
    %2964 = vmatpush.bf16.msra.mxu0 %v2040
    %2965 = vmatpush.bf16.msra.mxu0 %v2032
    %2966 = vmatpush.bf16.msra.mxu0 %v2024
    %2967 = vmatmul.bf16.gmra.mxu0 %v143
    %v2968 = vpop.f32.mrf.mxu0
    %v2969 = vadd.f32 %v2956, %v2968
    %v2970 = vpop.f32.mrf.mxu0
    %2971 = vdwg.mxu0
    %2972 = vmatpush.bf16.msra.mxu0 %v2144
    %2973 = vmatpush.bf16.msra.mxu0 %v2136
    %2974 = vmatpush.bf16.msra.mxu0 %v2128
    %2975 = vmatpush.bf16.msra.mxu0 %v2120
    %2976 = vmatpush.bf16.msra.mxu0 %v2112
    %2977 = vmatpush.bf16.msra.mxu0 %v2104
    %2978 = vmatpush.bf16.msra.mxu0 %v2096
    %2979 = vmatpush.bf16.msra.mxu0 %v2088
    %2980 = vmatmul.bf16.gmra.mxu0 %v144
    %v2981 = vpop.f32.mrf.mxu0
    %v2982 = vadd.f32 %v2969, %v2981
    %v2983 = vpop.f32.mrf.mxu0
    %2984 = vdwg.mxu0
    %2985 = vmatpush.bf16.msra.mxu0 %v2208
    %2986 = vmatpush.bf16.msra.mxu0 %v2200
    %2987 = vmatpush.bf16.msra.mxu0 %v2192
    %2988 = vmatpush.bf16.msra.mxu0 %v2184
    %2989 = vmatpush.bf16.msra.mxu0 %v2176
    %2990 = vmatpush.bf16.msra.mxu0 %v2168
    %2991 = vmatpush.bf16.msra.mxu0 %v2160
    %2992 = vmatpush.bf16.msra.mxu0 %v2152
    %2993 = vmatmul.bf16.gmra.mxu0 %v145
    %v2994 = vpop.f32.mrf.mxu0
    %v2995 = vadd.f32 %v2982, %v2994
    %v2996 = vpop.f32.mrf.mxu0
    %2997 = vdwg.mxu0
    %2998 = vmatpush.bf16.msra.mxu0 %v2272
    %2999 = vmatpush.bf16.msra.mxu0 %v2264
    %3000 = vmatpush.bf16.msra.mxu0 %v2256
    %3001 = vmatpush.bf16.msra.mxu0 %v2248
    %3002 = vmatpush.bf16.msra.mxu0 %v2240
    %3003 = vmatpush.bf16.msra.mxu0 %v2232
    %3004 = vmatpush.bf16.msra.mxu0 %v2224
    %3005 = vmatpush.bf16.msra.mxu0 %v2216
    %3006 = vmatmul.bf16.gmra.mxu0 %v146
    %v3007 = vpop.f32.mrf.mxu0
    %v3008 = vadd.f32 %v2995, %v3007
    %v3009 = vpop.f32.mrf.mxu0
    %3010 = vdwg.mxu0
    %3011 = vmatpush.bf16.msra.mxu0 %v2336
    %3012 = vmatpush.bf16.msra.mxu0 %v2328
    %3013 = vmatpush.bf16.msra.mxu0 %v2320
    %3014 = vmatpush.bf16.msra.mxu0 %v2312
    %3015 = vmatpush.bf16.msra.mxu0 %v2304
    %3016 = vmatpush.bf16.msra.mxu0 %v2296
    %3017 = vmatpush.bf16.msra.mxu0 %v2288
    %3018 = vmatpush.bf16.msra.mxu0 %v2280
    %3019 = vmatmul.bf16.gmra.mxu0 %v147
    %v3020 = vpop.f32.mrf.mxu0
    %v3021 = vadd.f32 %v3008, %v3020
    %v3022 = vpop.f32.mrf.mxu0
    %3023 = vdwg.mxu0
    %3024 = vmatpush.bf16.msra.mxu0 %v2400
    %3025 = vmatpush.bf16.msra.mxu0 %v2392
    %3026 = vmatpush.bf16.msra.mxu0 %v2384
    %3027 = vmatpush.bf16.msra.mxu0 %v2376
    %3028 = vmatpush.bf16.msra.mxu0 %v2368
    %3029 = vmatpush.bf16.msra.mxu0 %v2360
    %3030 = vmatpush.bf16.msra.mxu0 %v2352
    %3031 = vmatpush.bf16.msra.mxu0 %v2344
    %3032 = vmatmul.bf16.gmra.mxu0 %v148
    %v3033 = vpop.f32.mrf.mxu0
    %v3034 = vadd.f32 %v3021, %v3033
    %v3035 = vpop.f32.mrf.mxu0
    %3036 = vdwg.mxu0
    %3037 = vmatpush.bf16.msra.mxu0 %v2017
    %3038 = vmatpush.bf16.msra.mxu0 %v2009
    %3039 = vmatpush.bf16.msra.mxu0 %v2001
    %3040 = vmatpush.bf16.msra.mxu0 %v1993
    %3041 = vmatpush.bf16.msra.mxu0 %v1985
    %3042 = vmatpush.bf16.msra.mxu0 %v1977
    %3043 = vmatpush.bf16.msra.mxu0 %v1969
    %3044 = vmatpush.bf16.msra.mxu0 %v1961
    %3045 = vmatmul.bf16.gmra.mxu0 %v142
    %v3046 = vpop.f32.mrf.mxu0
    %v3047 = vadd.f32 %v601, %v3046
    %v3048 = vpop.f32.mrf.mxu0
    %3049 = vdwg.mxu0
    %3050 = vmatpush.bf16.msra.mxu0 %v2081
    %3051 = vmatpush.bf16.msra.mxu0 %v2073
    %3052 = vmatpush.bf16.msra.mxu0 %v2065
    %3053 = vmatpush.bf16.msra.mxu0 %v2057
    %3054 = vmatpush.bf16.msra.mxu0 %v2049
    %3055 = vmatpush.bf16.msra.mxu0 %v2041
    %3056 = vmatpush.bf16.msra.mxu0 %v2033
    %3057 = vmatpush.bf16.msra.mxu0 %v2025
    %3058 = vmatmul.bf16.gmra.mxu0 %v143
    %v3059 = vpop.f32.mrf.mxu0
    %v3060 = vadd.f32 %v3047, %v3059
    %v3061 = vpop.f32.mrf.mxu0
    %3062 = vdwg.mxu0
    %3063 = vmatpush.bf16.msra.mxu0 %v2145
    %3064 = vmatpush.bf16.msra.mxu0 %v2137
    %3065 = vmatpush.bf16.msra.mxu0 %v2129
    %3066 = vmatpush.bf16.msra.mxu0 %v2121
    %3067 = vmatpush.bf16.msra.mxu0 %v2113
    %3068 = vmatpush.bf16.msra.mxu0 %v2105
    %3069 = vmatpush.bf16.msra.mxu0 %v2097
    %3070 = vmatpush.bf16.msra.mxu0 %v2089
    %3071 = vmatmul.bf16.gmra.mxu0 %v144
    %v3072 = vpop.f32.mrf.mxu0
    %v3073 = vadd.f32 %v3060, %v3072
    %v3074 = vpop.f32.mrf.mxu0
    %3075 = vdwg.mxu0
    %3076 = vmatpush.bf16.msra.mxu0 %v2209
    %3077 = vmatpush.bf16.msra.mxu0 %v2201
    %3078 = vmatpush.bf16.msra.mxu0 %v2193
    %3079 = vmatpush.bf16.msra.mxu0 %v2185
    %3080 = vmatpush.bf16.msra.mxu0 %v2177
    %3081 = vmatpush.bf16.msra.mxu0 %v2169
    %3082 = vmatpush.bf16.msra.mxu0 %v2161
    %3083 = vmatpush.bf16.msra.mxu0 %v2153
    %3084 = vmatmul.bf16.gmra.mxu0 %v145
    %v3085 = vpop.f32.mrf.mxu0
    %v3086 = vadd.f32 %v3073, %v3085
    %v3087 = vpop.f32.mrf.mxu0
    %3088 = vdwg.mxu0
    %3089 = vmatpush.bf16.msra.mxu0 %v2273
    %3090 = vmatpush.bf16.msra.mxu0 %v2265
    %3091 = vmatpush.bf16.msra.mxu0 %v2257
    %3092 = vmatpush.bf16.msra.mxu0 %v2249
    %3093 = vmatpush.bf16.msra.mxu0 %v2241
    %3094 = vmatpush.bf16.msra.mxu0 %v2233
    %3095 = vmatpush.bf16.msra.mxu0 %v2225
    %3096 = vmatpush.bf16.msra.mxu0 %v2217
    %3097 = vmatmul.bf16.gmra.mxu0 %v146
    %v3098 = vpop.f32.mrf.mxu0
    %v3099 = vadd.f32 %v3086, %v3098
    %v3100 = vpop.f32.mrf.mxu0
    %3101 = vdwg.mxu0
    %3102 = vmatpush.bf16.msra.mxu0 %v2337
    %3103 = vmatpush.bf16.msra.mxu0 %v2329
    %3104 = vmatpush.bf16.msra.mxu0 %v2321
    %3105 = vmatpush.bf16.msra.mxu0 %v2313
    %3106 = vmatpush.bf16.msra.mxu0 %v2305
    %3107 = vmatpush.bf16.msra.mxu0 %v2297
    %3108 = vmatpush.bf16.msra.mxu0 %v2289
    %3109 = vmatpush.bf16.msra.mxu0 %v2281
    %3110 = vmatmul.bf16.gmra.mxu0 %v147
    %v3111 = vpop.f32.mrf.mxu0
    %v3112 = vadd.f32 %v3099, %v3111
    %v3113 = vpop.f32.mrf.mxu0
    %3114 = vdwg.mxu0
    %3115 = vmatpush.bf16.msra.mxu0 %v2401
    %3116 = vmatpush.bf16.msra.mxu0 %v2393
    %3117 = vmatpush.bf16.msra.mxu0 %v2385
    %3118 = vmatpush.bf16.msra.mxu0 %v2377
    %3119 = vmatpush.bf16.msra.mxu0 %v2369
    %3120 = vmatpush.bf16.msra.mxu0 %v2361
    %3121 = vmatpush.bf16.msra.mxu0 %v2353
    %3122 = vmatpush.bf16.msra.mxu0 %v2345
    %3123 = vmatmul.bf16.gmra.mxu0 %v148
    %v3124 = vpop.f32.mrf.mxu0
    %v3125 = vadd.f32 %v3112, %v3124
    %v3126 = vpop.f32.mrf.mxu0
    %3127 = vdwg.mxu0
    %3128 = vmatpush.bf16.msra.mxu0 %v2018
    %3129 = vmatpush.bf16.msra.mxu0 %v2010
    %3130 = vmatpush.bf16.msra.mxu0 %v2002
    %3131 = vmatpush.bf16.msra.mxu0 %v1994
    %3132 = vmatpush.bf16.msra.mxu0 %v1986
    %3133 = vmatpush.bf16.msra.mxu0 %v1978
    %3134 = vmatpush.bf16.msra.mxu0 %v1970
    %3135 = vmatpush.bf16.msra.mxu0 %v1962
    %3136 = vmatmul.bf16.gmra.mxu0 %v142
    %v3137 = vpop.f32.mrf.mxu0
    %v3138 = vadd.f32 %v602, %v3137
    %v3139 = vpop.f32.mrf.mxu0
    %3140 = vdwg.mxu0
    %3141 = vmatpush.bf16.msra.mxu0 %v2082
    %3142 = vmatpush.bf16.msra.mxu0 %v2074
    %3143 = vmatpush.bf16.msra.mxu0 %v2066
    %3144 = vmatpush.bf16.msra.mxu0 %v2058
    %3145 = vmatpush.bf16.msra.mxu0 %v2050
    %3146 = vmatpush.bf16.msra.mxu0 %v2042
    %3147 = vmatpush.bf16.msra.mxu0 %v2034
    %3148 = vmatpush.bf16.msra.mxu0 %v2026
    %3149 = vmatmul.bf16.gmra.mxu0 %v143
    %v3150 = vpop.f32.mrf.mxu0
    %v3151 = vadd.f32 %v3138, %v3150
    %v3152 = vpop.f32.mrf.mxu0
    %3153 = vdwg.mxu0
    %3154 = vmatpush.bf16.msra.mxu0 %v2146
    %3155 = vmatpush.bf16.msra.mxu0 %v2138
    %3156 = vmatpush.bf16.msra.mxu0 %v2130
    %3157 = vmatpush.bf16.msra.mxu0 %v2122
    %3158 = vmatpush.bf16.msra.mxu0 %v2114
    %3159 = vmatpush.bf16.msra.mxu0 %v2106
    %3160 = vmatpush.bf16.msra.mxu0 %v2098
    %3161 = vmatpush.bf16.msra.mxu0 %v2090
    %3162 = vmatmul.bf16.gmra.mxu0 %v144
    %v3163 = vpop.f32.mrf.mxu0
    %v3164 = vadd.f32 %v3151, %v3163
    %v3165 = vpop.f32.mrf.mxu0
    %3166 = vdwg.mxu0
    %3167 = vmatpush.bf16.msra.mxu0 %v2210
    %3168 = vmatpush.bf16.msra.mxu0 %v2202
    %3169 = vmatpush.bf16.msra.mxu0 %v2194
    %3170 = vmatpush.bf16.msra.mxu0 %v2186
    %3171 = vmatpush.bf16.msra.mxu0 %v2178
    %3172 = vmatpush.bf16.msra.mxu0 %v2170
    %3173 = vmatpush.bf16.msra.mxu0 %v2162
    %3174 = vmatpush.bf16.msra.mxu0 %v2154
    %3175 = vmatmul.bf16.gmra.mxu0 %v145
    %v3176 = vpop.f32.mrf.mxu0
    %v3177 = vadd.f32 %v3164, %v3176
    %v3178 = vpop.f32.mrf.mxu0
    %3179 = vdwg.mxu0
    %3180 = vmatpush.bf16.msra.mxu0 %v2274
    %3181 = vmatpush.bf16.msra.mxu0 %v2266
    %3182 = vmatpush.bf16.msra.mxu0 %v2258
    %3183 = vmatpush.bf16.msra.mxu0 %v2250
    %3184 = vmatpush.bf16.msra.mxu0 %v2242
    %3185 = vmatpush.bf16.msra.mxu0 %v2234
    %3186 = vmatpush.bf16.msra.mxu0 %v2226
    %3187 = vmatpush.bf16.msra.mxu0 %v2218
    %3188 = vmatmul.bf16.gmra.mxu0 %v146
    %v3189 = vpop.f32.mrf.mxu0
    %v3190 = vadd.f32 %v3177, %v3189
    %v3191 = vpop.f32.mrf.mxu0
    %3192 = vdwg.mxu0
    %3193 = vmatpush.bf16.msra.mxu0 %v2338
    %3194 = vmatpush.bf16.msra.mxu0 %v2330
    %3195 = vmatpush.bf16.msra.mxu0 %v2322
    %3196 = vmatpush.bf16.msra.mxu0 %v2314
    %3197 = vmatpush.bf16.msra.mxu0 %v2306
    %3198 = vmatpush.bf16.msra.mxu0 %v2298
    %3199 = vmatpush.bf16.msra.mxu0 %v2290
    %3200 = vmatpush.bf16.msra.mxu0 %v2282
    %3201 = vmatmul.bf16.gmra.mxu0 %v147
    %v3202 = vpop.f32.mrf.mxu0
    %v3203 = vadd.f32 %v3190, %v3202
    %v3204 = vpop.f32.mrf.mxu0
    %3205 = vdwg.mxu0
    %3206 = vmatpush.bf16.msra.mxu0 %v2402
    %3207 = vmatpush.bf16.msra.mxu0 %v2394
    %3208 = vmatpush.bf16.msra.mxu0 %v2386
    %3209 = vmatpush.bf16.msra.mxu0 %v2378
    %3210 = vmatpush.bf16.msra.mxu0 %v2370
    %3211 = vmatpush.bf16.msra.mxu0 %v2362
    %3212 = vmatpush.bf16.msra.mxu0 %v2354
    %3213 = vmatpush.bf16.msra.mxu0 %v2346
    %3214 = vmatmul.bf16.gmra.mxu0 %v148
    %v3215 = vpop.f32.mrf.mxu0
    %v3216 = vadd.f32 %v3203, %v3215
    %v3217 = vpop.f32.mrf.mxu0
    %3218 = vdwg.mxu0
    %3219 = vmatpush.bf16.msra.mxu0 %v2019
    %3220 = vmatpush.bf16.msra.mxu0 %v2011
    %3221 = vmatpush.bf16.msra.mxu0 %v2003
    %3222 = vmatpush.bf16.msra.mxu0 %v1995
    %3223 = vmatpush.bf16.msra.mxu0 %v1987
    %3224 = vmatpush.bf16.msra.mxu0 %v1979
    %3225 = vmatpush.bf16.msra.mxu0 %v1971
    %3226 = vmatpush.bf16.msra.mxu0 %v1963
    %3227 = vmatmul.bf16.gmra.mxu0 %v142
    %v3228 = vpop.f32.mrf.mxu0
    %v3229 = vadd.f32 %v603, %v3228
    %v3230 = vpop.f32.mrf.mxu0
    %3231 = vdwg.mxu0
    %3232 = vmatpush.bf16.msra.mxu0 %v2083
    %3233 = vmatpush.bf16.msra.mxu0 %v2075
    %3234 = vmatpush.bf16.msra.mxu0 %v2067
    %3235 = vmatpush.bf16.msra.mxu0 %v2059
    %3236 = vmatpush.bf16.msra.mxu0 %v2051
    %3237 = vmatpush.bf16.msra.mxu0 %v2043
    %3238 = vmatpush.bf16.msra.mxu0 %v2035
    %3239 = vmatpush.bf16.msra.mxu0 %v2027
    %3240 = vmatmul.bf16.gmra.mxu0 %v143
    %v3241 = vpop.f32.mrf.mxu0
    %v3242 = vadd.f32 %v3229, %v3241
    %v3243 = vpop.f32.mrf.mxu0
    %3244 = vdwg.mxu0
    %3245 = vmatpush.bf16.msra.mxu0 %v2147
    %3246 = vmatpush.bf16.msra.mxu0 %v2139
    %3247 = vmatpush.bf16.msra.mxu0 %v2131
    %3248 = vmatpush.bf16.msra.mxu0 %v2123
    %3249 = vmatpush.bf16.msra.mxu0 %v2115
    %3250 = vmatpush.bf16.msra.mxu0 %v2107
    %3251 = vmatpush.bf16.msra.mxu0 %v2099
    %3252 = vmatpush.bf16.msra.mxu0 %v2091
    %3253 = vmatmul.bf16.gmra.mxu0 %v144
    %v3254 = vpop.f32.mrf.mxu0
    %v3255 = vadd.f32 %v3242, %v3254
    %v3256 = vpop.f32.mrf.mxu0
    %3257 = vdwg.mxu0
    %3258 = vmatpush.bf16.msra.mxu0 %v2211
    %3259 = vmatpush.bf16.msra.mxu0 %v2203
    %3260 = vmatpush.bf16.msra.mxu0 %v2195
    %3261 = vmatpush.bf16.msra.mxu0 %v2187
    %3262 = vmatpush.bf16.msra.mxu0 %v2179
    %3263 = vmatpush.bf16.msra.mxu0 %v2171
    %3264 = vmatpush.bf16.msra.mxu0 %v2163
    %3265 = vmatpush.bf16.msra.mxu0 %v2155
    %3266 = vmatmul.bf16.gmra.mxu0 %v145
    %v3267 = vpop.f32.mrf.mxu0
    %v3268 = vadd.f32 %v3255, %v3267
    %v3269 = vpop.f32.mrf.mxu0
    %3270 = vdwg.mxu0
    %3271 = vmatpush.bf16.msra.mxu0 %v2275
    %3272 = vmatpush.bf16.msra.mxu0 %v2267
    %3273 = vmatpush.bf16.msra.mxu0 %v2259
    %3274 = vmatpush.bf16.msra.mxu0 %v2251
    %3275 = vmatpush.bf16.msra.mxu0 %v2243
    %3276 = vmatpush.bf16.msra.mxu0 %v2235
    %3277 = vmatpush.bf16.msra.mxu0 %v2227
    %3278 = vmatpush.bf16.msra.mxu0 %v2219
    %3279 = vmatmul.bf16.gmra.mxu0 %v146
    %v3280 = vpop.f32.mrf.mxu0
    %v3281 = vadd.f32 %v3268, %v3280
    %v3282 = vpop.f32.mrf.mxu0
    %3283 = vdwg.mxu0
    %3284 = vmatpush.bf16.msra.mxu0 %v2339
    %3285 = vmatpush.bf16.msra.mxu0 %v2331
    %3286 = vmatpush.bf16.msra.mxu0 %v2323
    %3287 = vmatpush.bf16.msra.mxu0 %v2315
    %3288 = vmatpush.bf16.msra.mxu0 %v2307
    %3289 = vmatpush.bf16.msra.mxu0 %v2299
    %3290 = vmatpush.bf16.msra.mxu0 %v2291
    %3291 = vmatpush.bf16.msra.mxu0 %v2283
    %3292 = vmatmul.bf16.gmra.mxu0 %v147
    %v3293 = vpop.f32.mrf.mxu0
    %v3294 = vadd.f32 %v3281, %v3293
    %v3295 = vpop.f32.mrf.mxu0
    %3296 = vdwg.mxu0
    %3297 = vmatpush.bf16.msra.mxu0 %v2403
    %3298 = vmatpush.bf16.msra.mxu0 %v2395
    %3299 = vmatpush.bf16.msra.mxu0 %v2387
    %3300 = vmatpush.bf16.msra.mxu0 %v2379
    %3301 = vmatpush.bf16.msra.mxu0 %v2371
    %3302 = vmatpush.bf16.msra.mxu0 %v2363
    %3303 = vmatpush.bf16.msra.mxu0 %v2355
    %3304 = vmatpush.bf16.msra.mxu0 %v2347
    %3305 = vmatmul.bf16.gmra.mxu0 %v148
    %v3306 = vpop.f32.mrf.mxu0
    %v3307 = vadd.f32 %v3294, %v3306
    %v3308 = vpop.f32.mrf.mxu0
    %3309 = vdwg.mxu0
    %3310 = vmatpush.bf16.msra.mxu0 %v2020
    %3311 = vmatpush.bf16.msra.mxu0 %v2012
    %3312 = vmatpush.bf16.msra.mxu0 %v2004
    %3313 = vmatpush.bf16.msra.mxu0 %v1996
    %3314 = vmatpush.bf16.msra.mxu0 %v1988
    %3315 = vmatpush.bf16.msra.mxu0 %v1980
    %3316 = vmatpush.bf16.msra.mxu0 %v1972
    %3317 = vmatpush.bf16.msra.mxu0 %v1964
    %3318 = vmatmul.bf16.gmra.mxu0 %v142
    %v3319 = vpop.f32.mrf.mxu0
    %v3320 = vadd.f32 %v604, %v3319
    %v3321 = vpop.f32.mrf.mxu0
    %3322 = vdwg.mxu0
    %3323 = vmatpush.bf16.msra.mxu0 %v2084
    %3324 = vmatpush.bf16.msra.mxu0 %v2076
    %3325 = vmatpush.bf16.msra.mxu0 %v2068
    %3326 = vmatpush.bf16.msra.mxu0 %v2060
    %3327 = vmatpush.bf16.msra.mxu0 %v2052
    %3328 = vmatpush.bf16.msra.mxu0 %v2044
    %3329 = vmatpush.bf16.msra.mxu0 %v2036
    %3330 = vmatpush.bf16.msra.mxu0 %v2028
    %3331 = vmatmul.bf16.gmra.mxu0 %v143
    %v3332 = vpop.f32.mrf.mxu0
    %v3333 = vadd.f32 %v3320, %v3332
    %v3334 = vpop.f32.mrf.mxu0
    %3335 = vdwg.mxu0
    %3336 = vmatpush.bf16.msra.mxu0 %v2148
    %3337 = vmatpush.bf16.msra.mxu0 %v2140
    %3338 = vmatpush.bf16.msra.mxu0 %v2132
    %3339 = vmatpush.bf16.msra.mxu0 %v2124
    %3340 = vmatpush.bf16.msra.mxu0 %v2116
    %3341 = vmatpush.bf16.msra.mxu0 %v2108
    %3342 = vmatpush.bf16.msra.mxu0 %v2100
    %3343 = vmatpush.bf16.msra.mxu0 %v2092
    %3344 = vmatmul.bf16.gmra.mxu0 %v144
    %v3345 = vpop.f32.mrf.mxu0
    %v3346 = vadd.f32 %v3333, %v3345
    %v3347 = vpop.f32.mrf.mxu0
    %3348 = vdwg.mxu0
    %3349 = vmatpush.bf16.msra.mxu0 %v2212
    %3350 = vmatpush.bf16.msra.mxu0 %v2204
    %3351 = vmatpush.bf16.msra.mxu0 %v2196
    %3352 = vmatpush.bf16.msra.mxu0 %v2188
    %3353 = vmatpush.bf16.msra.mxu0 %v2180
    %3354 = vmatpush.bf16.msra.mxu0 %v2172
    %3355 = vmatpush.bf16.msra.mxu0 %v2164
    %3356 = vmatpush.bf16.msra.mxu0 %v2156
    %3357 = vmatmul.bf16.gmra.mxu0 %v145
    %v3358 = vpop.f32.mrf.mxu0
    %v3359 = vadd.f32 %v3346, %v3358
    %v3360 = vpop.f32.mrf.mxu0
    %3361 = vdwg.mxu0
    %3362 = vmatpush.bf16.msra.mxu0 %v2276
    %3363 = vmatpush.bf16.msra.mxu0 %v2268
    %3364 = vmatpush.bf16.msra.mxu0 %v2260
    %3365 = vmatpush.bf16.msra.mxu0 %v2252
    %3366 = vmatpush.bf16.msra.mxu0 %v2244
    %3367 = vmatpush.bf16.msra.mxu0 %v2236
    %3368 = vmatpush.bf16.msra.mxu0 %v2228
    %3369 = vmatpush.bf16.msra.mxu0 %v2220
    %3370 = vmatmul.bf16.gmra.mxu0 %v146
    %v3371 = vpop.f32.mrf.mxu0
    %v3372 = vadd.f32 %v3359, %v3371
    %v3373 = vpop.f32.mrf.mxu0
    %3374 = vdwg.mxu0
    %3375 = vmatpush.bf16.msra.mxu0 %v2340
    %3376 = vmatpush.bf16.msra.mxu0 %v2332
    %3377 = vmatpush.bf16.msra.mxu0 %v2324
    %3378 = vmatpush.bf16.msra.mxu0 %v2316
    %3379 = vmatpush.bf16.msra.mxu0 %v2308
    %3380 = vmatpush.bf16.msra.mxu0 %v2300
    %3381 = vmatpush.bf16.msra.mxu0 %v2292
    %3382 = vmatpush.bf16.msra.mxu0 %v2284
    %3383 = vmatmul.bf16.gmra.mxu0 %v147
    %v3384 = vpop.f32.mrf.mxu0
    %v3385 = vadd.f32 %v3372, %v3384
    %v3386 = vpop.f32.mrf.mxu0
    %3387 = vdwg.mxu0
    %3388 = vmatpush.bf16.msra.mxu0 %v2404
    %3389 = vmatpush.bf16.msra.mxu0 %v2396
    %3390 = vmatpush.bf16.msra.mxu0 %v2388
    %3391 = vmatpush.bf16.msra.mxu0 %v2380
    %3392 = vmatpush.bf16.msra.mxu0 %v2372
    %3393 = vmatpush.bf16.msra.mxu0 %v2364
    %3394 = vmatpush.bf16.msra.mxu0 %v2356
    %3395 = vmatpush.bf16.msra.mxu0 %v2348
    %3396 = vmatmul.bf16.gmra.mxu0 %v148
    %v3397 = vpop.f32.mrf.mxu0
    %v3398 = vadd.f32 %v3385, %v3397
    %v3399 = vpop.f32.mrf.mxu0
    %3400 = vdwg.mxu0
    %3401 = vmatpush.bf16.msra.mxu0 %v2021
    %3402 = vmatpush.bf16.msra.mxu0 %v2013
    %3403 = vmatpush.bf16.msra.mxu0 %v2005
    %3404 = vmatpush.bf16.msra.mxu0 %v1997
    %3405 = vmatpush.bf16.msra.mxu0 %v1989
    %3406 = vmatpush.bf16.msra.mxu0 %v1981
    %3407 = vmatpush.bf16.msra.mxu0 %v1973
    %3408 = vmatpush.bf16.msra.mxu0 %v1965
    %3409 = vmatmul.bf16.gmra.mxu0 %v142
    %v3410 = vpop.f32.mrf.mxu0
    %v3411 = vadd.f32 %v605, %v3410
    %v3412 = vpop.f32.mrf.mxu0
    %3413 = vdwg.mxu0
    %3414 = vmatpush.bf16.msra.mxu0 %v2085
    %3415 = vmatpush.bf16.msra.mxu0 %v2077
    %3416 = vmatpush.bf16.msra.mxu0 %v2069
    %3417 = vmatpush.bf16.msra.mxu0 %v2061
    %3418 = vmatpush.bf16.msra.mxu0 %v2053
    %3419 = vmatpush.bf16.msra.mxu0 %v2045
    %3420 = vmatpush.bf16.msra.mxu0 %v2037
    %3421 = vmatpush.bf16.msra.mxu0 %v2029
    %3422 = vmatmul.bf16.gmra.mxu0 %v143
    %v3423 = vpop.f32.mrf.mxu0
    %v3424 = vadd.f32 %v3411, %v3423
    %v3425 = vpop.f32.mrf.mxu0
    %3426 = vdwg.mxu0
    %3427 = vmatpush.bf16.msra.mxu0 %v2149
    %3428 = vmatpush.bf16.msra.mxu0 %v2141
    %3429 = vmatpush.bf16.msra.mxu0 %v2133
    %3430 = vmatpush.bf16.msra.mxu0 %v2125
    %3431 = vmatpush.bf16.msra.mxu0 %v2117
    %3432 = vmatpush.bf16.msra.mxu0 %v2109
    %3433 = vmatpush.bf16.msra.mxu0 %v2101
    %3434 = vmatpush.bf16.msra.mxu0 %v2093
    %3435 = vmatmul.bf16.gmra.mxu0 %v144
    %v3436 = vpop.f32.mrf.mxu0
    %v3437 = vadd.f32 %v3424, %v3436
    %v3438 = vpop.f32.mrf.mxu0
    %3439 = vdwg.mxu0
    %3440 = vmatpush.bf16.msra.mxu0 %v2213
    %3441 = vmatpush.bf16.msra.mxu0 %v2205
    %3442 = vmatpush.bf16.msra.mxu0 %v2197
    %3443 = vmatpush.bf16.msra.mxu0 %v2189
    %3444 = vmatpush.bf16.msra.mxu0 %v2181
    %3445 = vmatpush.bf16.msra.mxu0 %v2173
    %3446 = vmatpush.bf16.msra.mxu0 %v2165
    %3447 = vmatpush.bf16.msra.mxu0 %v2157
    %3448 = vmatmul.bf16.gmra.mxu0 %v145
    %v3449 = vpop.f32.mrf.mxu0
    %v3450 = vadd.f32 %v3437, %v3449
    %v3451 = vpop.f32.mrf.mxu0
    %3452 = vdwg.mxu0
    %3453 = vmatpush.bf16.msra.mxu0 %v2277
    %3454 = vmatpush.bf16.msra.mxu0 %v2269
    %3455 = vmatpush.bf16.msra.mxu0 %v2261
    %3456 = vmatpush.bf16.msra.mxu0 %v2253
    %3457 = vmatpush.bf16.msra.mxu0 %v2245
    %3458 = vmatpush.bf16.msra.mxu0 %v2237
    %3459 = vmatpush.bf16.msra.mxu0 %v2229
    %3460 = vmatpush.bf16.msra.mxu0 %v2221
    %3461 = vmatmul.bf16.gmra.mxu0 %v146
    %v3462 = vpop.f32.mrf.mxu0
    %v3463 = vadd.f32 %v3450, %v3462
    %v3464 = vpop.f32.mrf.mxu0
    %3465 = vdwg.mxu0
    %3466 = vmatpush.bf16.msra.mxu0 %v2341
    %3467 = vmatpush.bf16.msra.mxu0 %v2333
    %3468 = vmatpush.bf16.msra.mxu0 %v2325
    %3469 = vmatpush.bf16.msra.mxu0 %v2317
    %3470 = vmatpush.bf16.msra.mxu0 %v2309
    %3471 = vmatpush.bf16.msra.mxu0 %v2301
    %3472 = vmatpush.bf16.msra.mxu0 %v2293
    %3473 = vmatpush.bf16.msra.mxu0 %v2285
    %3474 = vmatmul.bf16.gmra.mxu0 %v147
    %v3475 = vpop.f32.mrf.mxu0
    %v3476 = vadd.f32 %v3463, %v3475
    %v3477 = vpop.f32.mrf.mxu0
    %3478 = vdwg.mxu0
    %3479 = vmatpush.bf16.msra.mxu0 %v2405
    %3480 = vmatpush.bf16.msra.mxu0 %v2397
    %3481 = vmatpush.bf16.msra.mxu0 %v2389
    %3482 = vmatpush.bf16.msra.mxu0 %v2381
    %3483 = vmatpush.bf16.msra.mxu0 %v2373
    %3484 = vmatpush.bf16.msra.mxu0 %v2365
    %3485 = vmatpush.bf16.msra.mxu0 %v2357
    %3486 = vmatpush.bf16.msra.mxu0 %v2349
    %3487 = vmatmul.bf16.gmra.mxu0 %v148
    %v3488 = vpop.f32.mrf.mxu0
    %v3489 = vadd.f32 %v3476, %v3488
    %v3490 = vpop.f32.mrf.mxu0
    %3491 = vdwg.mxu0
    %3492 = vmatpush.bf16.msra.mxu0 %v2022
    %3493 = vmatpush.bf16.msra.mxu0 %v2014
    %3494 = vmatpush.bf16.msra.mxu0 %v2006
    %3495 = vmatpush.bf16.msra.mxu0 %v1998
    %3496 = vmatpush.bf16.msra.mxu0 %v1990
    %3497 = vmatpush.bf16.msra.mxu0 %v1982
    %3498 = vmatpush.bf16.msra.mxu0 %v1974
    %3499 = vmatpush.bf16.msra.mxu0 %v1966
    %3500 = vmatmul.bf16.gmra.mxu0 %v142
    %v3501 = vpop.f32.mrf.mxu0
    %v3502 = vadd.f32 %v606, %v3501
    %v3503 = vpop.f32.mrf.mxu0
    %3504 = vdwg.mxu0
    %3505 = vmatpush.bf16.msra.mxu0 %v2086
    %3506 = vmatpush.bf16.msra.mxu0 %v2078
    %3507 = vmatpush.bf16.msra.mxu0 %v2070
    %3508 = vmatpush.bf16.msra.mxu0 %v2062
    %3509 = vmatpush.bf16.msra.mxu0 %v2054
    %3510 = vmatpush.bf16.msra.mxu0 %v2046
    %3511 = vmatpush.bf16.msra.mxu0 %v2038
    %3512 = vmatpush.bf16.msra.mxu0 %v2030
    %3513 = vmatmul.bf16.gmra.mxu0 %v143
    %v3514 = vpop.f32.mrf.mxu0
    %v3515 = vadd.f32 %v3502, %v3514
    %v3516 = vpop.f32.mrf.mxu0
    %3517 = vdwg.mxu0
    %3518 = vmatpush.bf16.msra.mxu0 %v2150
    %3519 = vmatpush.bf16.msra.mxu0 %v2142
    %3520 = vmatpush.bf16.msra.mxu0 %v2134
    %3521 = vmatpush.bf16.msra.mxu0 %v2126
    %3522 = vmatpush.bf16.msra.mxu0 %v2118
    %3523 = vmatpush.bf16.msra.mxu0 %v2110
    %3524 = vmatpush.bf16.msra.mxu0 %v2102
    %3525 = vmatpush.bf16.msra.mxu0 %v2094
    %3526 = vmatmul.bf16.gmra.mxu0 %v144
    %v3527 = vpop.f32.mrf.mxu0
    %v3528 = vadd.f32 %v3515, %v3527
    %v3529 = vpop.f32.mrf.mxu0
    %3530 = vdwg.mxu0
    %3531 = vmatpush.bf16.msra.mxu0 %v2214
    %3532 = vmatpush.bf16.msra.mxu0 %v2206
    %3533 = vmatpush.bf16.msra.mxu0 %v2198
    %3534 = vmatpush.bf16.msra.mxu0 %v2190
    %3535 = vmatpush.bf16.msra.mxu0 %v2182
    %3536 = vmatpush.bf16.msra.mxu0 %v2174
    %3537 = vmatpush.bf16.msra.mxu0 %v2166
    %3538 = vmatpush.bf16.msra.mxu0 %v2158
    %3539 = vmatmul.bf16.gmra.mxu0 %v145
    %v3540 = vpop.f32.mrf.mxu0
    %v3541 = vadd.f32 %v3528, %v3540
    %v3542 = vpop.f32.mrf.mxu0
    %3543 = vdwg.mxu0
    %3544 = vmatpush.bf16.msra.mxu0 %v2278
    %3545 = vmatpush.bf16.msra.mxu0 %v2270
    %3546 = vmatpush.bf16.msra.mxu0 %v2262
    %3547 = vmatpush.bf16.msra.mxu0 %v2254
    %3548 = vmatpush.bf16.msra.mxu0 %v2246
    %3549 = vmatpush.bf16.msra.mxu0 %v2238
    %3550 = vmatpush.bf16.msra.mxu0 %v2230
    %3551 = vmatpush.bf16.msra.mxu0 %v2222
    %3552 = vmatmul.bf16.gmra.mxu0 %v146
    %v3553 = vpop.f32.mrf.mxu0
    %v3554 = vadd.f32 %v3541, %v3553
    %v3555 = vpop.f32.mrf.mxu0
    %3556 = vdwg.mxu0
    %3557 = vmatpush.bf16.msra.mxu0 %v2342
    %3558 = vmatpush.bf16.msra.mxu0 %v2334
    %3559 = vmatpush.bf16.msra.mxu0 %v2326
    %3560 = vmatpush.bf16.msra.mxu0 %v2318
    %3561 = vmatpush.bf16.msra.mxu0 %v2310
    %3562 = vmatpush.bf16.msra.mxu0 %v2302
    %3563 = vmatpush.bf16.msra.mxu0 %v2294
    %3564 = vmatpush.bf16.msra.mxu0 %v2286
    %3565 = vmatmul.bf16.gmra.mxu0 %v147
    %v3566 = vpop.f32.mrf.mxu0
    %v3567 = vadd.f32 %v3554, %v3566
    %v3568 = vpop.f32.mrf.mxu0
    %3569 = vdwg.mxu0
    %3570 = vmatpush.bf16.msra.mxu0 %v2406
    %3571 = vmatpush.bf16.msra.mxu0 %v2398
    %3572 = vmatpush.bf16.msra.mxu0 %v2390
    %3573 = vmatpush.bf16.msra.mxu0 %v2382
    %3574 = vmatpush.bf16.msra.mxu0 %v2374
    %3575 = vmatpush.bf16.msra.mxu0 %v2366
    %3576 = vmatpush.bf16.msra.mxu0 %v2358
    %3577 = vmatpush.bf16.msra.mxu0 %v2350
    %3578 = vmatmul.bf16.gmra.mxu0 %v148
    %v3579 = vpop.f32.mrf.mxu0
    %v3580 = vadd.f32 %v3567, %v3579
    %v3581 = vpop.f32.mrf.mxu0
    %3582 = vdwg.mxu0
    %vm3583 = vcmp.gt.f32.partialorder %v2943, 0.0
    %vm3584 = vcmp.gt.f32.partialorder %v3034, 0.0
    %vm3585 = vcmp.gt.f32.partialorder %v3125, 0.0
    %vm3586 = vcmp.gt.f32.partialorder %v3216, 0.0
    %vm3587 = vcmp.gt.f32.partialorder %v3307, 0.0
    %vm3588 = vcmp.gt.f32.partialorder %v3398, 0.0
    %vm3589 = vcmp.gt.f32.partialorder %v3489, 0.0
    %vm3590 = vcmp.gt.f32.partialorder %v3580, 0.0
    %v3591 = vmul.f32 %v2943, 0.2
    %v3592 = vmul.f32 %v3034, 0.2
    %v3593 = vmul.f32 %v3125, 0.2
    %v3594 = vmul.f32 %v3216, 0.2
    %v3595 = vmul.f32 %v3307, 0.2
    %v3596 = vmul.f32 %v3398, 0.2
    %v3597 = vmul.f32 %v3489, 0.2
    %v3598 = vmul.f32 %v3580, 0.2
    %v3599 = vsel %vm3583, %v2943, %v3591
    %v3600 = vsel %vm3584, %v3034, %v3592
    %v3601 = vsel %vm3585, %v3125, %v3593
    %v3602 = vsel %vm3586, %v3216, %v3594
    %v3603 = vsel %vm3587, %v3307, %v3595
    %v3604 = vsel %vm3588, %v3398, %v3596
    %v3605 = vsel %vm3589, %v3489, %v3597
    %v3606 = vsel %vm3590, %v3580, %v3598
    %v3607 = vpack.c.bf16 %v3599, %v3599
    %v3608 = vpack.c.bf16 %v3600, %v3600
    %v3609 = vpack.c.bf16 %v3601, %v3601
    %v3610 = vpack.c.bf16 %v3602, %v3602
    %v3611 = vpack.c.bf16 %v3603, %v3603
    %v3612 = vpack.c.bf16 %v3604, %v3604
    %v3613 = vpack.c.bf16 %v3605, %v3605
    %v3614 = vpack.c.bf16 %v3606, %v3606
    %v3615 = vld [vmem:[#allocation7] sm:$0xff]
    %v3616 = vld [vmem:[#allocation7 + $0x8] sm:$0xff]
    %v3617 = vld [vmem:[#allocation7 + $0x10] sm:$0xff]
    %v3618 = vld [vmem:[#allocation7 + $0x18] sm:$0xff]
    %v3619 = vld [vmem:[#allocation7 + $0x20] sm:$0xff]
    %v3620 = vld [vmem:[#allocation7 + $0x28] sm:$0xff]
    %v3621 = vld [vmem:[#allocation7 + $0x30] sm:$0xff]
    %v3622 = vld [vmem:[#allocation7 + $0x38] sm:$0xff]
    %v3623 = vld [vmem:[#allocation7 + $0x40] sm:$0xff]
    %v3624 = vld [vmem:[#allocation7 + $0x48] sm:$0xff]
    %v3625 = vld [vmem:[#allocation7 + $0x50] sm:$0xff]
    %v3626 = vld [vmem:[#allocation7 + $0x58] sm:$0xff]
    %v3627 = vld [vmem:[#allocation7 + $0x60] sm:$0xff]
    %v3628 = vld [vmem:[#allocation7 + $0x68] sm:$0xff]
    %v3629 = vld [vmem:[#allocation7 + $0x70] sm:$0xff]
    %v3630 = vld [vmem:[#allocation7 + $0x78] sm:$0xff]
    %v3631 = vld [vmem:[#allocation7 + $0x80] sm:$0xff]
    %v3632 = vld [vmem:[#allocation7 + $0x88] sm:$0xff]
    %v3633 = vld [vmem:[#allocation7 + $0x90] sm:$0xff]
    %v3634 = vld [vmem:[#allocation7 + $0x98] sm:$0xff]
    %v3635 = vld [vmem:[#allocation7 + $0xa0] sm:$0xff]
    %v3636 = vld [vmem:[#allocation7 + $0xa8] sm:$0xff]
    %v3637 = vld [vmem:[#allocation7 + $0xb0] sm:$0xff]
    %v3638 = vld [vmem:[#allocation7 + $0xb8] sm:$0xff]
    %v3639 = vld [vmem:[#allocation7 + $0xc0] sm:$0xff]
    %v3640 = vld [vmem:[#allocation7 + $0xc8] sm:$0xff]
    %v3641 = vld [vmem:[#allocation7 + $0xd0] sm:$0xff]
    %v3642 = vld [vmem:[#allocation7 + $0xd8] sm:$0xff]
    %v3643 = vld [vmem:[#allocation7 + $0xe0] sm:$0xff]
    %v3644 = vld [vmem:[#allocation7 + $0xe8] sm:$0xff]
    %v3645 = vld [vmem:[#allocation7 + $0xf0] sm:$0xff]
    %v3646 = vld [vmem:[#allocation7 + $0xf8] sm:$0xff]
    %v3647 = vld [vmem:[#allocation7 + $0x100] sm:$0xff]
    %v3648 = vld [vmem:[#allocation7 + $0x108] sm:$0xff]
    %v3649 = vld [vmem:[#allocation7 + $0x110] sm:$0xff]
    %v3650 = vld [vmem:[#allocation7 + $0x118] sm:$0xff]
    %v3651 = vld [vmem:[#allocation7 + $0x120] sm:$0xff]
    %v3652 = vld [vmem:[#allocation7 + $0x128] sm:$0xff]
    %v3653 = vld [vmem:[#allocation7 + $0x130] sm:$0xff]
    %v3654 = vld [vmem:[#allocation7 + $0x138] sm:$0xff]
    %v3655 = vld [vmem:[#allocation7 + $0x140] sm:$0xff]
    %v3656 = vld [vmem:[#allocation7 + $0x148] sm:$0xff]
    %v3657 = vld [vmem:[#allocation7 + $0x150] sm:$0xff]
    %v3658 = vld [vmem:[#allocation7 + $0x158] sm:$0xff]
    %v3659 = vld [vmem:[#allocation7 + $0x160] sm:$0xff]
    %v3660 = vld [vmem:[#allocation7 + $0x168] sm:$0xff]
    %v3661 = vld [vmem:[#allocation7 + $0x170] sm:$0xff]
    %v3662 = vld [vmem:[#allocation7 + $0x178] sm:$0xff]
    %v3663 = vld [vmem:[#allocation7 + $0x180] sm:$0xff]
    %v3664 = vld [vmem:[#allocation7 + $0x188] sm:$0xff]
    %v3665 = vld [vmem:[#allocation7 + $0x190] sm:$0xff]
    %v3666 = vld [vmem:[#allocation7 + $0x198] sm:$0xff]
    %v3667 = vld [vmem:[#allocation7 + $0x1a0] sm:$0xff]
    %v3668 = vld [vmem:[#allocation7 + $0x1a8] sm:$0xff]
    %v3669 = vld [vmem:[#allocation7 + $0x1b0] sm:$0xff]
    %v3670 = vld [vmem:[#allocation7 + $0x1b8] sm:$0xff]
    %v3671 = vld [vmem:[#allocation7 + $0x1c0] sm:$0xff]
    %v3672 = vld [vmem:[#allocation7 + $0x1c8] sm:$0xff]
    %v3673 = vld [vmem:[#allocation7 + $0x1d0] sm:$0xff]
    %v3674 = vld [vmem:[#allocation7 + $0x1d8] sm:$0xff]
    %v3675 = vld [vmem:[#allocation7 + $0x1e0] sm:$0xff]
    %v3676 = vld [vmem:[#allocation7 + $0x1e8] sm:$0xff]
    %v3677 = vld [vmem:[#allocation7 + $0x1f0] sm:$0xff]
    %v3678 = vld [vmem:[#allocation7 + $0x1f8] sm:$0xff]
    %v3679 = vld [vmem:[#allocation7 + $0x200] sm:$0xff]
    %v3680 = vld [vmem:[#allocation7 + $0x208] sm:$0xff]
    %v3681 = vld [vmem:[#allocation7 + $0x210] sm:$0xff]
    %v3682 = vld [vmem:[#allocation7 + $0x218] sm:$0xff]
    %v3683 = vld [vmem:[#allocation7 + $0x220] sm:$0xff]
    %v3684 = vld [vmem:[#allocation7 + $0x228] sm:$0xff]
    %v3685 = vld [vmem:[#allocation7 + $0x230] sm:$0xff]
    %v3686 = vld [vmem:[#allocation7 + $0x238] sm:$0xff]
    %v3687 = vld [vmem:[#allocation7 + $0x240] sm:$0xff]
    %v3688 = vld [vmem:[#allocation7 + $0x248] sm:$0xff]
    %v3689 = vld [vmem:[#allocation7 + $0x250] sm:$0xff]
    %v3690 = vld [vmem:[#allocation7 + $0x258] sm:$0xff]
    %v3691 = vld [vmem:[#allocation7 + $0x260] sm:$0xff]
    %v3692 = vld [vmem:[#allocation7 + $0x268] sm:$0xff]
    %v3693 = vld [vmem:[#allocation7 + $0x270] sm:$0xff]
    %v3694 = vld [vmem:[#allocation7 + $0x278] sm:$0xff]
    %v3695 = vld [vmem:[#allocation7 + $0x280] sm:$0xff]
    %v3696 = vld [vmem:[#allocation7 + $0x288] sm:$0xff]
    %v3697 = vld [vmem:[#allocation7 + $0x290] sm:$0xff]
    %v3698 = vld [vmem:[#allocation7 + $0x298] sm:$0xff]
    %v3699 = vld [vmem:[#allocation7 + $0x2a0] sm:$0xff]
    %v3700 = vld [vmem:[#allocation7 + $0x2a8] sm:$0xff]
    %v3701 = vld [vmem:[#allocation7 + $0x2b0] sm:$0xff]
    %v3702 = vld [vmem:[#allocation7 + $0x2b8] sm:$0xff]
    %v3703 = vld [vmem:[#allocation7 + $0x2c0] sm:$0xff]
    %v3704 = vld [vmem:[#allocation7 + $0x2c8] sm:$0xff]
    %v3705 = vld [vmem:[#allocation7 + $0x2d0] sm:$0xff]
    %v3706 = vld [vmem:[#allocation7 + $0x2d8] sm:$0xff]
    %v3707 = vld [vmem:[#allocation7 + $0x2e0] sm:$0xff]
    %v3708 = vld [vmem:[#allocation7 + $0x2e8] sm:$0xff]
    %v3709 = vld [vmem:[#allocation7 + $0x2f0] sm:$0xff]
    %v3710 = vld [vmem:[#allocation7 + $0x2f8] sm:$0xff]
    %v3711 = vld [vmem:[#allocation7 + $0x300] sm:$0xff]
    %v3712 = vld [vmem:[#allocation7 + $0x308] sm:$0xff]
    %v3713 = vld [vmem:[#allocation7 + $0x310] sm:$0xff]
    %v3714 = vld [vmem:[#allocation7 + $0x318] sm:$0xff]
    %v3715 = vld [vmem:[#allocation7 + $0x320] sm:$0xff]
    %v3716 = vld [vmem:[#allocation7 + $0x328] sm:$0xff]
    %v3717 = vld [vmem:[#allocation7 + $0x330] sm:$0xff]
    %v3718 = vld [vmem:[#allocation7 + $0x338] sm:$0xff]
    %v3719 = vld [vmem:[#allocation7 + $0x340] sm:$0xff]
    %v3720 = vld [vmem:[#allocation7 + $0x348] sm:$0xff]
    %v3721 = vld [vmem:[#allocation7 + $0x350] sm:$0xff]
    %v3722 = vld [vmem:[#allocation7 + $0x358] sm:$0xff]
    %v3723 = vld [vmem:[#allocation7 + $0x360] sm:$0xff]
    %v3724 = vld [vmem:[#allocation7 + $0x368] sm:$0xff]
    %v3725 = vld [vmem:[#allocation7 + $0x370] sm:$0xff]
    %v3726 = vld [vmem:[#allocation7 + $0x378] sm:$0xff]
    %v3727 = vld [vmem:[#allocation7 + $0x380] sm:$0xff]
    %v3728 = vld [vmem:[#allocation7 + $0x388] sm:$0xff]
    %v3729 = vld [vmem:[#allocation7 + $0x390] sm:$0xff]
    %v3730 = vld [vmem:[#allocation7 + $0x398] sm:$0xff]
    %v3731 = vld [vmem:[#allocation7 + $0x3a0] sm:$0xff]
    %v3732 = vld [vmem:[#allocation7 + $0x3a8] sm:$0xff]
    %v3733 = vld [vmem:[#allocation7 + $0x3b0] sm:$0xff]
    %v3734 = vld [vmem:[#allocation7 + $0x3b8] sm:$0xff]
    %v3735 = vld [vmem:[#allocation7 + $0x3c0] sm:$0xff]
    %v3736 = vld [vmem:[#allocation7 + $0x3c8] sm:$0xff]
    %v3737 = vld [vmem:[#allocation7 + $0x3d0] sm:$0xff]
    %v3738 = vld [vmem:[#allocation7 + $0x3d8] sm:$0xff]
    %v3739 = vld [vmem:[#allocation7 + $0x3e0] sm:$0xff]
    %v3740 = vld [vmem:[#allocation7 + $0x3e8] sm:$0xff]
    %v3741 = vld [vmem:[#allocation7 + $0x3f0] sm:$0xff]
    %v3742 = vld [vmem:[#allocation7 + $0x3f8] sm:$0xff]
    %v3743 = vld [vmem:[#allocation7 + $0x400] sm:$0xff]
    %v3744 = vld [vmem:[#allocation7 + $0x408] sm:$0xff]
    %v3745 = vld [vmem:[#allocation7 + $0x410] sm:$0xff]
    %v3746 = vld [vmem:[#allocation7 + $0x418] sm:$0xff]
    %v3747 = vld [vmem:[#allocation7 + $0x420] sm:$0xff]
    %v3748 = vld [vmem:[#allocation7 + $0x428] sm:$0xff]
    %v3749 = vld [vmem:[#allocation7 + $0x430] sm:$0xff]
    %v3750 = vld [vmem:[#allocation7 + $0x438] sm:$0xff]
    %v3751 = vld [vmem:[#allocation7 + $0x440] sm:$0xff]
    %v3752 = vld [vmem:[#allocation7 + $0x448] sm:$0xff]
    %v3753 = vld [vmem:[#allocation7 + $0x450] sm:$0xff]
    %v3754 = vld [vmem:[#allocation7 + $0x458] sm:$0xff]
    %v3755 = vld [vmem:[#allocation7 + $0x460] sm:$0xff]
    %v3756 = vld [vmem:[#allocation7 + $0x468] sm:$0xff]
    %v3757 = vld [vmem:[#allocation7 + $0x470] sm:$0xff]
    %v3758 = vld [vmem:[#allocation7 + $0x478] sm:$0xff]
    %v3759 = vld [vmem:[#allocation7 + $0x480] sm:$0xff]
    %v3760 = vld [vmem:[#allocation7 + $0x488] sm:$0xff]
    %v3761 = vld [vmem:[#allocation7 + $0x490] sm:$0xff]
    %v3762 = vld [vmem:[#allocation7 + $0x498] sm:$0xff]
    %v3763 = vld [vmem:[#allocation7 + $0x4a0] sm:$0xff]
    %v3764 = vld [vmem:[#allocation7 + $0x4a8] sm:$0xff]
    %v3765 = vld [vmem:[#allocation7 + $0x4b0] sm:$0xff]
    %v3766 = vld [vmem:[#allocation7 + $0x4b8] sm:$0xff]
    %v3767 = vld [vmem:[#allocation7 + $0x4c0] sm:$0xff]
    %v3768 = vld [vmem:[#allocation7 + $0x4c8] sm:$0xff]
    %v3769 = vld [vmem:[#allocation7 + $0x4d0] sm:$0xff]
    %v3770 = vld [vmem:[#allocation7 + $0x4d8] sm:$0xff]
    %v3771 = vld [vmem:[#allocation7 + $0x4e0] sm:$0xff]
    %v3772 = vld [vmem:[#allocation7 + $0x4e8] sm:$0xff]
    %v3773 = vld [vmem:[#allocation7 + $0x4f0] sm:$0xff]
    %v3774 = vld [vmem:[#allocation7 + $0x4f8] sm:$0xff]
    %v3775 = vld [vmem:[#allocation7 + $0x500] sm:$0xff]
    %v3776 = vld [vmem:[#allocation7 + $0x508] sm:$0xff]
    %v3777 = vld [vmem:[#allocation7 + $0x510] sm:$0xff]
    %v3778 = vld [vmem:[#allocation7 + $0x518] sm:$0xff]
    %v3779 = vld [vmem:[#allocation7 + $0x520] sm:$0xff]
    %v3780 = vld [vmem:[#allocation7 + $0x528] sm:$0xff]
    %v3781 = vld [vmem:[#allocation7 + $0x530] sm:$0xff]
    %v3782 = vld [vmem:[#allocation7 + $0x538] sm:$0xff]
    %v3783 = vld [vmem:[#allocation7 + $0x540] sm:$0xff]
    %v3784 = vld [vmem:[#allocation7 + $0x548] sm:$0xff]
    %v3785 = vld [vmem:[#allocation7 + $0x550] sm:$0xff]
    %v3786 = vld [vmem:[#allocation7 + $0x558] sm:$0xff]
    %v3787 = vld [vmem:[#allocation7 + $0x560] sm:$0xff]
    %v3788 = vld [vmem:[#allocation7 + $0x568] sm:$0xff]
    %v3789 = vld [vmem:[#allocation7 + $0x570] sm:$0xff]
    %v3790 = vld [vmem:[#allocation7 + $0x578] sm:$0xff]
    %v3791 = vld [vmem:[#allocation7 + $0x580] sm:$0xff]
    %v3792 = vld [vmem:[#allocation7 + $0x588] sm:$0xff]
    %v3793 = vld [vmem:[#allocation7 + $0x590] sm:$0xff]
    %v3794 = vld [vmem:[#allocation7 + $0x598] sm:$0xff]
    %v3795 = vld [vmem:[#allocation7 + $0x5a0] sm:$0xff]
    %v3796 = vld [vmem:[#allocation7 + $0x5a8] sm:$0xff]
    %v3797 = vld [vmem:[#allocation7 + $0x5b0] sm:$0xff]
    %v3798 = vld [vmem:[#allocation7 + $0x5b8] sm:$0xff]
    %v3799 = vld [vmem:[#allocation7 + $0x5c0] sm:$0xff]
    %v3800 = vld [vmem:[#allocation7 + $0x5c8] sm:$0xff]
    %v3801 = vld [vmem:[#allocation7 + $0x5d0] sm:$0xff]
    %v3802 = vld [vmem:[#allocation7 + $0x5d8] sm:$0xff]
    %v3803 = vld [vmem:[#allocation7 + $0x5e0] sm:$0xff]
    %v3804 = vld [vmem:[#allocation7 + $0x5e8] sm:$0xff]
    %v3805 = vld [vmem:[#allocation7 + $0x5f0] sm:$0xff]
    %v3806 = vld [vmem:[#allocation7 + $0x5f8] sm:$0xff]
    %v3807 = vld [vmem:[#allocation7 + $0x600] sm:$0xff]
    %v3808 = vld [vmem:[#allocation7 + $0x608] sm:$0xff]
    %v3809 = vld [vmem:[#allocation7 + $0x610] sm:$0xff]
    %v3810 = vld [vmem:[#allocation7 + $0x618] sm:$0xff]
    %v3811 = vld [vmem:[#allocation7 + $0x620] sm:$0xff]
    %v3812 = vld [vmem:[#allocation7 + $0x628] sm:$0xff]
    %v3813 = vld [vmem:[#allocation7 + $0x630] sm:$0xff]
    %v3814 = vld [vmem:[#allocation7 + $0x638] sm:$0xff]
    %v3815 = vld [vmem:[#allocation7 + $0x640] sm:$0xff]
    %v3816 = vld [vmem:[#allocation7 + $0x648] sm:$0xff]
    %v3817 = vld [vmem:[#allocation7 + $0x650] sm:$0xff]
    %v3818 = vld [vmem:[#allocation7 + $0x658] sm:$0xff]
    %v3819 = vld [vmem:[#allocation7 + $0x660] sm:$0xff]
    %v3820 = vld [vmem:[#allocation7 + $0x668] sm:$0xff]
    %v3821 = vld [vmem:[#allocation7 + $0x670] sm:$0xff]
    %v3822 = vld [vmem:[#allocation7 + $0x678] sm:$0xff]
    %v3823 = vld [vmem:[#allocation7 + $0x680] sm:$0xff]
    %v3824 = vld [vmem:[#allocation7 + $0x688] sm:$0xff]
    %v3825 = vld [vmem:[#allocation7 + $0x690] sm:$0xff]
    %v3826 = vld [vmem:[#allocation7 + $0x698] sm:$0xff]
    %v3827 = vld [vmem:[#allocation7 + $0x6a0] sm:$0xff]
    %v3828 = vld [vmem:[#allocation7 + $0x6a8] sm:$0xff]
    %v3829 = vld [vmem:[#allocation7 + $0x6b0] sm:$0xff]
    %v3830 = vld [vmem:[#allocation7 + $0x6b8] sm:$0xff]
    %v3831 = vld [vmem:[#allocation7 + $0x6c0] sm:$0xff]
    %v3832 = vld [vmem:[#allocation7 + $0x6c8] sm:$0xff]
    %v3833 = vld [vmem:[#allocation7 + $0x6d0] sm:$0xff]
    %v3834 = vld [vmem:[#allocation7 + $0x6d8] sm:$0xff]
    %v3835 = vld [vmem:[#allocation7 + $0x6e0] sm:$0xff]
    %v3836 = vld [vmem:[#allocation7 + $0x6e8] sm:$0xff]
    %v3837 = vld [vmem:[#allocation7 + $0x6f0] sm:$0xff]
    %v3838 = vld [vmem:[#allocation7 + $0x6f8] sm:$0xff]
    %v3839 = vld [vmem:[#allocation7 + $0x700] sm:$0xff]
    %v3840 = vld [vmem:[#allocation7 + $0x708] sm:$0xff]
    %v3841 = vld [vmem:[#allocation7 + $0x710] sm:$0xff]
    %v3842 = vld [vmem:[#allocation7 + $0x718] sm:$0xff]
    %v3843 = vld [vmem:[#allocation7 + $0x720] sm:$0xff]
    %v3844 = vld [vmem:[#allocation7 + $0x728] sm:$0xff]
    %v3845 = vld [vmem:[#allocation7 + $0x730] sm:$0xff]
    %v3846 = vld [vmem:[#allocation7 + $0x738] sm:$0xff]
    %v3847 = vld [vmem:[#allocation7 + $0x740] sm:$0xff]
    %v3848 = vld [vmem:[#allocation7 + $0x748] sm:$0xff]
    %v3849 = vld [vmem:[#allocation7 + $0x750] sm:$0xff]
    %v3850 = vld [vmem:[#allocation7 + $0x758] sm:$0xff]
    %v3851 = vld [vmem:[#allocation7 + $0x760] sm:$0xff]
    %v3852 = vld [vmem:[#allocation7 + $0x768] sm:$0xff]
    %v3853 = vld [vmem:[#allocation7 + $0x770] sm:$0xff]
    %v3854 = vld [vmem:[#allocation7 + $0x778] sm:$0xff]
    %v3855 = vld [vmem:[#allocation7 + $0x780] sm:$0xff]
    %v3856 = vld [vmem:[#allocation7 + $0x788] sm:$0xff]
    %v3857 = vld [vmem:[#allocation7 + $0x790] sm:$0xff]
    %v3858 = vld [vmem:[#allocation7 + $0x798] sm:$0xff]
    %v3859 = vld [vmem:[#allocation7 + $0x7a0] sm:$0xff]
    %v3860 = vld [vmem:[#allocation7 + $0x7a8] sm:$0xff]
    %v3861 = vld [vmem:[#allocation7 + $0x7b0] sm:$0xff]
    %v3862 = vld [vmem:[#allocation7 + $0x7b8] sm:$0xff]
    %v3863 = vld [vmem:[#allocation7 + $0x7c0] sm:$0xff]
    %v3864 = vld [vmem:[#allocation7 + $0x7c8] sm:$0xff]
    %v3865 = vld [vmem:[#allocation7 + $0x7d0] sm:$0xff]
    %v3866 = vld [vmem:[#allocation7 + $0x7d8] sm:$0xff]
    %v3867 = vld [vmem:[#allocation7 + $0x7e0] sm:$0xff]
    %v3868 = vld [vmem:[#allocation7 + $0x7e8] sm:$0xff]
    %v3869 = vld [vmem:[#allocation7 + $0x7f0] sm:$0xff]
    %v3870 = vld [vmem:[#allocation7 + $0x7f8] sm:$0xff]
    %v3871 = vld [vmem:[#allocation8] sm:$0xf]
    %v3873 = vperm.slane %v3871, 0
    %v3874 = vperm.slane %v3871, 1
    %v3875 = vperm.slane %v3871, 2
    %v3876 = vperm.slane %v3871, 3
    %v4137 = vunpack.c.l.b16 %v3615
    %v4138 = vunpack.c.h.b16 %v3615
    %v4139 = vunpack.c.l.b16 %v3616
    %v4140 = vunpack.c.h.b16 %v3616
    %v4141 = vunpack.c.l.b16 %v3617
    %v4142 = vunpack.c.h.b16 %v3617
    %v4143 = vunpack.c.l.b16 %v3618
    %v4144 = vunpack.c.h.b16 %v3618
    %v4145 = vunpack.c.l.b16 %v3619
    %v4146 = vunpack.c.h.b16 %v3619
    %v4147 = vunpack.c.l.b16 %v3620
    %v4148 = vunpack.c.h.b16 %v3620
    %v4149 = vunpack.c.l.b16 %v3621
    %v4150 = vunpack.c.h.b16 %v3621
    %v4151 = vunpack.c.l.b16 %v3622
    %v4152 = vunpack.c.h.b16 %v3622
    %v4153 = vunpack.c.l.b16 %v3623
    %v4154 = vunpack.c.h.b16 %v3623
    %v4155 = vunpack.c.l.b16 %v3624
    %v4156 = vunpack.c.h.b16 %v3624
    %v4157 = vunpack.c.l.b16 %v3625
    %v4158 = vunpack.c.h.b16 %v3625
    %v4159 = vunpack.c.l.b16 %v3626
    %v4160 = vunpack.c.h.b16 %v3626
    %v4161 = vunpack.c.l.b16 %v3627
    %v4162 = vunpack.c.h.b16 %v3627
    %v4163 = vunpack.c.l.b16 %v3628
    %v4164 = vunpack.c.h.b16 %v3628
    %v4165 = vunpack.c.l.b16 %v3629
    %v4166 = vunpack.c.h.b16 %v3629
    %v4167 = vunpack.c.l.b16 %v3630
    %v4168 = vunpack.c.h.b16 %v3630
    %v4169 = vunpack.c.l.b16 %v3631
    %v4170 = vunpack.c.h.b16 %v3631
    %v4171 = vunpack.c.l.b16 %v3632
    %v4172 = vunpack.c.h.b16 %v3632
    %v4173 = vunpack.c.l.b16 %v3633
    %v4174 = vunpack.c.h.b16 %v3633
    %v4175 = vunpack.c.l.b16 %v3634
    %v4176 = vunpack.c.h.b16 %v3634
    %v4177 = vunpack.c.l.b16 %v3635
    %v4178 = vunpack.c.h.b16 %v3635
    %v4179 = vunpack.c.l.b16 %v3636
    %v4180 = vunpack.c.h.b16 %v3636
    %v4181 = vunpack.c.l.b16 %v3637
    %v4182 = vunpack.c.h.b16 %v3637
    %v4183 = vunpack.c.l.b16 %v3638
    %v4184 = vunpack.c.h.b16 %v3638
    %v4185 = vunpack.c.l.b16 %v3639
    %v4186 = vunpack.c.h.b16 %v3639
    %v4187 = vunpack.c.l.b16 %v3640
    %v4188 = vunpack.c.h.b16 %v3640
    %v4189 = vunpack.c.l.b16 %v3641
    %v4190 = vunpack.c.h.b16 %v3641
    %v4191 = vunpack.c.l.b16 %v3642
    %v4192 = vunpack.c.h.b16 %v3642
    %v4193 = vunpack.c.l.b16 %v3643
    %v4194 = vunpack.c.h.b16 %v3643
    %v4195 = vunpack.c.l.b16 %v3644
    %v4196 = vunpack.c.h.b16 %v3644
    %v4197 = vunpack.c.l.b16 %v3645
    %v4198 = vunpack.c.h.b16 %v3645
    %v4199 = vunpack.c.l.b16 %v3646
    %v4200 = vunpack.c.h.b16 %v3646
    %v4201 = vunpack.c.l.b16 %v3647
    %v4202 = vunpack.c.h.b16 %v3647
    %v4203 = vunpack.c.l.b16 %v3648
    %v4204 = vunpack.c.h.b16 %v3648
    %v4205 = vunpack.c.l.b16 %v3649
    %v4206 = vunpack.c.h.b16 %v3649
    %v4207 = vunpack.c.l.b16 %v3650
    %v4208 = vunpack.c.h.b16 %v3650
    %v4209 = vunpack.c.l.b16 %v3651
    %v4210 = vunpack.c.h.b16 %v3651
    %v4211 = vunpack.c.l.b16 %v3652
    %v4212 = vunpack.c.h.b16 %v3652
    %v4213 = vunpack.c.l.b16 %v3653
    %v4214 = vunpack.c.h.b16 %v3653
    %v4215 = vunpack.c.l.b16 %v3654
    %v4216 = vunpack.c.h.b16 %v3654
    %v4217 = vunpack.c.l.b16 %v3655
    %v4218 = vunpack.c.h.b16 %v3655
    %v4219 = vunpack.c.l.b16 %v3656
    %v4220 = vunpack.c.h.b16 %v3656
    %v4221 = vunpack.c.l.b16 %v3657
    %v4222 = vunpack.c.h.b16 %v3657
    %v4223 = vunpack.c.l.b16 %v3658
    %v4224 = vunpack.c.h.b16 %v3658
    %v4225 = vunpack.c.l.b16 %v3659
    %v4226 = vunpack.c.h.b16 %v3659
    %v4227 = vunpack.c.l.b16 %v3660
    %v4228 = vunpack.c.h.b16 %v3660
    %v4229 = vunpack.c.l.b16 %v3661
    %v4230 = vunpack.c.h.b16 %v3661
    %v4231 = vunpack.c.l.b16 %v3662
    %v4232 = vunpack.c.h.b16 %v3662
    %v4233 = vunpack.c.l.b16 %v3663
    %v4234 = vunpack.c.h.b16 %v3663
    %v4235 = vunpack.c.l.b16 %v3664
    %v4236 = vunpack.c.h.b16 %v3664
    %v4237 = vunpack.c.l.b16 %v3665
    %v4238 = vunpack.c.h.b16 %v3665
    %v4239 = vunpack.c.l.b16 %v3666
    %v4240 = vunpack.c.h.b16 %v3666
    %v4241 = vunpack.c.l.b16 %v3667
    %v4242 = vunpack.c.h.b16 %v3667
    %v4243 = vunpack.c.l.b16 %v3668
    %v4244 = vunpack.c.h.b16 %v3668
    %v4245 = vunpack.c.l.b16 %v3669
    %v4246 = vunpack.c.h.b16 %v3669
    %v4247 = vunpack.c.l.b16 %v3670
    %v4248 = vunpack.c.h.b16 %v3670
    %v4249 = vunpack.c.l.b16 %v3671
    %v4250 = vunpack.c.h.b16 %v3671
    %v4251 = vunpack.c.l.b16 %v3672
    %v4252 = vunpack.c.h.b16 %v3672
    %v4253 = vunpack.c.l.b16 %v3673
    %v4254 = vunpack.c.h.b16 %v3673
    %v4255 = vunpack.c.l.b16 %v3674
    %v4256 = vunpack.c.h.b16 %v3674
    %v4257 = vunpack.c.l.b16 %v3675
    %v4258 = vunpack.c.h.b16 %v3675
    %v4259 = vunpack.c.l.b16 %v3676
    %v4260 = vunpack.c.h.b16 %v3676
    %v4261 = vunpack.c.l.b16 %v3677
    %v4262 = vunpack.c.h.b16 %v3677
    %v4263 = vunpack.c.l.b16 %v3678
    %v4264 = vunpack.c.h.b16 %v3678
    %v4265 = vunpack.c.l.b16 %v3679
    %v4266 = vunpack.c.h.b16 %v3679
    %v4267 = vunpack.c.l.b16 %v3680
    %v4268 = vunpack.c.h.b16 %v3680
    %v4269 = vunpack.c.l.b16 %v3681
    %v4270 = vunpack.c.h.b16 %v3681
    %v4271 = vunpack.c.l.b16 %v3682
    %v4272 = vunpack.c.h.b16 %v3682
    %v4273 = vunpack.c.l.b16 %v3683
    %v4274 = vunpack.c.h.b16 %v3683
    %v4275 = vunpack.c.l.b16 %v3684
    %v4276 = vunpack.c.h.b16 %v3684
    %v4277 = vunpack.c.l.b16 %v3685
    %v4278 = vunpack.c.h.b16 %v3685
    %v4279 = vunpack.c.l.b16 %v3686
    %v4280 = vunpack.c.h.b16 %v3686
    %v4281 = vunpack.c.l.b16 %v3687
    %v4282 = vunpack.c.h.b16 %v3687
    %v4283 = vunpack.c.l.b16 %v3688
    %v4284 = vunpack.c.h.b16 %v3688
    %v4285 = vunpack.c.l.b16 %v3689
    %v4286 = vunpack.c.h.b16 %v3689
    %v4287 = vunpack.c.l.b16 %v3690
    %v4288 = vunpack.c.h.b16 %v3690
    %v4289 = vunpack.c.l.b16 %v3691
    %v4290 = vunpack.c.h.b16 %v3691
    %v4291 = vunpack.c.l.b16 %v3692
    %v4292 = vunpack.c.h.b16 %v3692
    %v4293 = vunpack.c.l.b16 %v3693
    %v4294 = vunpack.c.h.b16 %v3693
    %v4295 = vunpack.c.l.b16 %v3694
    %v4296 = vunpack.c.h.b16 %v3694
    %v4297 = vunpack.c.l.b16 %v3695
    %v4298 = vunpack.c.h.b16 %v3695
    %v4299 = vunpack.c.l.b16 %v3696
    %v4300 = vunpack.c.h.b16 %v3696
    %v4301 = vunpack.c.l.b16 %v3697
    %v4302 = vunpack.c.h.b16 %v3697
    %v4303 = vunpack.c.l.b16 %v3698
    %v4304 = vunpack.c.h.b16 %v3698
    %v4305 = vunpack.c.l.b16 %v3699
    %v4306 = vunpack.c.h.b16 %v3699
    %v4307 = vunpack.c.l.b16 %v3700
    %v4308 = vunpack.c.h.b16 %v3700
    %v4309 = vunpack.c.l.b16 %v3701
    %v4310 = vunpack.c.h.b16 %v3701
    %v4311 = vunpack.c.l.b16 %v3702
    %v4312 = vunpack.c.h.b16 %v3702
    %v4313 = vunpack.c.l.b16 %v3703
    %v4314 = vunpack.c.h.b16 %v3703
    %v4315 = vunpack.c.l.b16 %v3704
    %v4316 = vunpack.c.h.b16 %v3704
    %v4317 = vunpack.c.l.b16 %v3705
    %v4318 = vunpack.c.h.b16 %v3705
    %v4319 = vunpack.c.l.b16 %v3706
    %v4320 = vunpack.c.h.b16 %v3706
    %v4321 = vunpack.c.l.b16 %v3707
    %v4322 = vunpack.c.h.b16 %v3707
    %v4323 = vunpack.c.l.b16 %v3708
    %v4324 = vunpack.c.h.b16 %v3708
    %v4325 = vunpack.c.l.b16 %v3709
    %v4326 = vunpack.c.h.b16 %v3709
    %v4327 = vunpack.c.l.b16 %v3710
    %v4328 = vunpack.c.h.b16 %v3710
    %v4329 = vunpack.c.l.b16 %v3711
    %v4330 = vunpack.c.h.b16 %v3711
    %v4331 = vunpack.c.l.b16 %v3712
    %v4332 = vunpack.c.h.b16 %v3712
    %v4333 = vunpack.c.l.b16 %v3713
    %v4334 = vunpack.c.h.b16 %v3713
    %v4335 = vunpack.c.l.b16 %v3714
    %v4336 = vunpack.c.h.b16 %v3714
    %v4337 = vunpack.c.l.b16 %v3715
    %v4338 = vunpack.c.h.b16 %v3715
    %v4339 = vunpack.c.l.b16 %v3716
    %v4340 = vunpack.c.h.b16 %v3716
    %v4341 = vunpack.c.l.b16 %v3717
    %v4342 = vunpack.c.h.b16 %v3717
    %v4343 = vunpack.c.l.b16 %v3718
    %v4344 = vunpack.c.h.b16 %v3718
    %v4345 = vunpack.c.l.b16 %v3719
    %v4346 = vunpack.c.h.b16 %v3719
    %v4347 = vunpack.c.l.b16 %v3720
    %v4348 = vunpack.c.h.b16 %v3720
    %v4349 = vunpack.c.l.b16 %v3721
    %v4350 = vunpack.c.h.b16 %v3721
    %v4351 = vunpack.c.l.b16 %v3722
    %v4352 = vunpack.c.h.b16 %v3722
    %v4353 = vunpack.c.l.b16 %v3723
    %v4354 = vunpack.c.h.b16 %v3723
    %v4355 = vunpack.c.l.b16 %v3724
    %v4356 = vunpack.c.h.b16 %v3724
    %v4357 = vunpack.c.l.b16 %v3725
    %v4358 = vunpack.c.h.b16 %v3725
    %v4359 = vunpack.c.l.b16 %v3726
    %v4360 = vunpack.c.h.b16 %v3726
    %v4361 = vunpack.c.l.b16 %v3727
    %v4362 = vunpack.c.h.b16 %v3727
    %v4363 = vunpack.c.l.b16 %v3728
    %v4364 = vunpack.c.h.b16 %v3728
    %v4365 = vunpack.c.l.b16 %v3729
    %v4366 = vunpack.c.h.b16 %v3729
    %v4367 = vunpack.c.l.b16 %v3730
    %v4368 = vunpack.c.h.b16 %v3730
    %v4369 = vunpack.c.l.b16 %v3731
    %v4370 = vunpack.c.h.b16 %v3731
    %v4371 = vunpack.c.l.b16 %v3732
    %v4372 = vunpack.c.h.b16 %v3732
    %v4373 = vunpack.c.l.b16 %v3733
    %v4374 = vunpack.c.h.b16 %v3733
    %v4375 = vunpack.c.l.b16 %v3734
    %v4376 = vunpack.c.h.b16 %v3734
    %v4377 = vunpack.c.l.b16 %v3735
    %v4378 = vunpack.c.h.b16 %v3735
    %v4379 = vunpack.c.l.b16 %v3736
    %v4380 = vunpack.c.h.b16 %v3736
    %v4381 = vunpack.c.l.b16 %v3737
    %v4382 = vunpack.c.h.b16 %v3737
    %v4383 = vunpack.c.l.b16 %v3738
    %v4384 = vunpack.c.h.b16 %v3738
    %v4385 = vunpack.c.l.b16 %v3739
    %v4386 = vunpack.c.h.b16 %v3739
    %v4387 = vunpack.c.l.b16 %v3740
    %v4388 = vunpack.c.h.b16 %v3740
    %v4389 = vunpack.c.l.b16 %v3741
    %v4390 = vunpack.c.h.b16 %v3741
    %v4391 = vunpack.c.l.b16 %v3742
    %v4392 = vunpack.c.h.b16 %v3742
    %v4393 = vunpack.c.l.b16 %v3743
    %v4394 = vunpack.c.h.b16 %v3743
    %v4395 = vunpack.c.l.b16 %v3744
    %v4396 = vunpack.c.h.b16 %v3744
    %v4397 = vunpack.c.l.b16 %v3745
    %v4398 = vunpack.c.h.b16 %v3745
    %v4399 = vunpack.c.l.b16 %v3746
    %v4400 = vunpack.c.h.b16 %v3746
    %v4401 = vunpack.c.l.b16 %v3747
    %v4402 = vunpack.c.h.b16 %v3747
    %v4403 = vunpack.c.l.b16 %v3748
    %v4404 = vunpack.c.h.b16 %v3748
    %v4405 = vunpack.c.l.b16 %v3749
    %v4406 = vunpack.c.h.b16 %v3749
    %v4407 = vunpack.c.l.b16 %v3750
    %v4408 = vunpack.c.h.b16 %v3750
    %v4409 = vunpack.c.l.b16 %v3751
    %v4410 = vunpack.c.h.b16 %v3751
    %v4411 = vunpack.c.l.b16 %v3752
    %v4412 = vunpack.c.h.b16 %v3752
    %v4413 = vunpack.c.l.b16 %v3753
    %v4414 = vunpack.c.h.b16 %v3753
    %v4415 = vunpack.c.l.b16 %v3754
    %v4416 = vunpack.c.h.b16 %v3754
    %v4417 = vunpack.c.l.b16 %v3755
    %v4418 = vunpack.c.h.b16 %v3755
    %v4419 = vunpack.c.l.b16 %v3756
    %v4420 = vunpack.c.h.b16 %v3756
    %v4421 = vunpack.c.l.b16 %v3757
    %v4422 = vunpack.c.h.b16 %v3757
    %v4423 = vunpack.c.l.b16 %v3758
    %v4424 = vunpack.c.h.b16 %v3758
    %v4425 = vunpack.c.l.b16 %v3759
    %v4426 = vunpack.c.h.b16 %v3759
    %v4427 = vunpack.c.l.b16 %v3760
    %v4428 = vunpack.c.h.b16 %v3760
    %v4429 = vunpack.c.l.b16 %v3761
    %v4430 = vunpack.c.h.b16 %v3761
    %v4431 = vunpack.c.l.b16 %v3762
    %v4432 = vunpack.c.h.b16 %v3762
    %v4433 = vunpack.c.l.b16 %v3763
    %v4434 = vunpack.c.h.b16 %v3763
    %v4435 = vunpack.c.l.b16 %v3764
    %v4436 = vunpack.c.h.b16 %v3764
    %v4437 = vunpack.c.l.b16 %v3765
    %v4438 = vunpack.c.h.b16 %v3765
    %v4439 = vunpack.c.l.b16 %v3766
    %v4440 = vunpack.c.h.b16 %v3766
    %v4441 = vunpack.c.l.b16 %v3767
    %v4442 = vunpack.c.h.b16 %v3767
    %v4443 = vunpack.c.l.b16 %v3768
    %v4444 = vunpack.c.h.b16 %v3768
    %v4445 = vunpack.c.l.b16 %v3769
    %v4446 = vunpack.c.h.b16 %v3769
    %v4447 = vunpack.c.l.b16 %v3770
    %v4448 = vunpack.c.h.b16 %v3770
    %v4449 = vunpack.c.l.b16 %v3771
    %v4450 = vunpack.c.h.b16 %v3771
    %v4451 = vunpack.c.l.b16 %v3772
    %v4452 = vunpack.c.h.b16 %v3772
    %v4453 = vunpack.c.l.b16 %v3773
    %v4454 = vunpack.c.h.b16 %v3773
    %v4455 = vunpack.c.l.b16 %v3774
    %v4456 = vunpack.c.h.b16 %v3774
    %v4457 = vunpack.c.l.b16 %v3775
    %v4458 = vunpack.c.h.b16 %v3775
    %v4459 = vunpack.c.l.b16 %v3776
    %v4460 = vunpack.c.h.b16 %v3776
    %v4461 = vunpack.c.l.b16 %v3777
    %v4462 = vunpack.c.h.b16 %v3777
    %v4463 = vunpack.c.l.b16 %v3778
    %v4464 = vunpack.c.h.b16 %v3778
    %v4465 = vunpack.c.l.b16 %v3779
    %v4466 = vunpack.c.h.b16 %v3779
    %v4467 = vunpack.c.l.b16 %v3780
    %v4468 = vunpack.c.h.b16 %v3780
    %v4469 = vunpack.c.l.b16 %v3781
    %v4470 = vunpack.c.h.b16 %v3781
    %v4471 = vunpack.c.l.b16 %v3782
    %v4472 = vunpack.c.h.b16 %v3782
    %v4473 = vunpack.c.l.b16 %v3783
    %v4474 = vunpack.c.h.b16 %v3783
    %v4475 = vunpack.c.l.b16 %v3784
    %v4476 = vunpack.c.h.b16 %v3784
    %v4477 = vunpack.c.l.b16 %v3785
    %v4478 = vunpack.c.h.b16 %v3785
    %v4479 = vunpack.c.l.b16 %v3786
    %v4480 = vunpack.c.h.b16 %v3786
    %v4481 = vunpack.c.l.b16 %v3787
    %v4482 = vunpack.c.h.b16 %v3787
    %v4483 = vunpack.c.l.b16 %v3788
    %v4484 = vunpack.c.h.b16 %v3788
    %v4485 = vunpack.c.l.b16 %v3789
    %v4486 = vunpack.c.h.b16 %v3789
    %v4487 = vunpack.c.l.b16 %v3790
    %v4488 = vunpack.c.h.b16 %v3790
    %v4489 = vunpack.c.l.b16 %v3791
    %v4490 = vunpack.c.h.b16 %v3791
    %v4491 = vunpack.c.l.b16 %v3792
    %v4492 = vunpack.c.h.b16 %v3792
    %v4493 = vunpack.c.l.b16 %v3793
    %v4494 = vunpack.c.h.b16 %v3793
    %v4495 = vunpack.c.l.b16 %v3794
    %v4496 = vunpack.c.h.b16 %v3794
    %v4497 = vunpack.c.l.b16 %v3795
    %v4498 = vunpack.c.h.b16 %v3795
    %v4499 = vunpack.c.l.b16 %v3796
    %v4500 = vunpack.c.h.b16 %v3796
    %v4501 = vunpack.c.l.b16 %v3797
    %v4502 = vunpack.c.h.b16 %v3797
    %v4503 = vunpack.c.l.b16 %v3798
    %v4504 = vunpack.c.h.b16 %v3798
    %v4505 = vunpack.c.l.b16 %v3799
    %v4506 = vunpack.c.h.b16 %v3799
    %v4507 = vunpack.c.l.b16 %v3800
    %v4508 = vunpack.c.h.b16 %v3800
    %v4509 = vunpack.c.l.b16 %v3801
    %v4510 = vunpack.c.h.b16 %v3801
    %v4511 = vunpack.c.l.b16 %v3802
    %v4512 = vunpack.c.h.b16 %v3802
    %v4513 = vunpack.c.l.b16 %v3803
    %v4514 = vunpack.c.h.b16 %v3803
    %v4515 = vunpack.c.l.b16 %v3804
    %v4516 = vunpack.c.h.b16 %v3804
    %v4517 = vunpack.c.l.b16 %v3805
    %v4518 = vunpack.c.h.b16 %v3805
    %v4519 = vunpack.c.l.b16 %v3806
    %v4520 = vunpack.c.h.b16 %v3806
    %v4521 = vunpack.c.l.b16 %v3807
    %v4522 = vunpack.c.h.b16 %v3807
    %v4523 = vunpack.c.l.b16 %v3808
    %v4524 = vunpack.c.h.b16 %v3808
    %v4525 = vunpack.c.l.b16 %v3809
    %v4526 = vunpack.c.h.b16 %v3809
    %v4527 = vunpack.c.l.b16 %v3810
    %v4528 = vunpack.c.h.b16 %v3810
    %v4529 = vunpack.c.l.b16 %v3811
    %v4530 = vunpack.c.h.b16 %v3811
    %v4531 = vunpack.c.l.b16 %v3812
    %v4532 = vunpack.c.h.b16 %v3812
    %v4533 = vunpack.c.l.b16 %v3813
    %v4534 = vunpack.c.h.b16 %v3813
    %v4535 = vunpack.c.l.b16 %v3814
    %v4536 = vunpack.c.h.b16 %v3814
    %v4537 = vunpack.c.l.b16 %v3815
    %v4538 = vunpack.c.h.b16 %v3815
    %v4539 = vunpack.c.l.b16 %v3816
    %v4540 = vunpack.c.h.b16 %v3816
    %v4541 = vunpack.c.l.b16 %v3817
    %v4542 = vunpack.c.h.b16 %v3817
    %v4543 = vunpack.c.l.b16 %v3818
    %v4544 = vunpack.c.h.b16 %v3818
    %v4545 = vunpack.c.l.b16 %v3819
    %v4546 = vunpack.c.h.b16 %v3819
    %v4547 = vunpack.c.l.b16 %v3820
    %v4548 = vunpack.c.h.b16 %v3820
    %v4549 = vunpack.c.l.b16 %v3821
    %v4550 = vunpack.c.h.b16 %v3821
    %v4551 = vunpack.c.l.b16 %v3822
    %v4552 = vunpack.c.h.b16 %v3822
    %v4553 = vunpack.c.l.b16 %v3823
    %v4554 = vunpack.c.h.b16 %v3823
    %v4555 = vunpack.c.l.b16 %v3824
    %v4556 = vunpack.c.h.b16 %v3824
    %v4557 = vunpack.c.l.b16 %v3825
    %v4558 = vunpack.c.h.b16 %v3825
    %v4559 = vunpack.c.l.b16 %v3826
    %v4560 = vunpack.c.h.b16 %v3826
    %v4561 = vunpack.c.l.b16 %v3827
    %v4562 = vunpack.c.h.b16 %v3827
    %v4563 = vunpack.c.l.b16 %v3828
    %v4564 = vunpack.c.h.b16 %v3828
    %v4565 = vunpack.c.l.b16 %v3829
    %v4566 = vunpack.c.h.b16 %v3829
    %v4567 = vunpack.c.l.b16 %v3830
    %v4568 = vunpack.c.h.b16 %v3830
    %v4569 = vunpack.c.l.b16 %v3831
    %v4570 = vunpack.c.h.b16 %v3831
    %v4571 = vunpack.c.l.b16 %v3832
    %v4572 = vunpack.c.h.b16 %v3832
    %v4573 = vunpack.c.l.b16 %v3833
    %v4574 = vunpack.c.h.b16 %v3833
    %v4575 = vunpack.c.l.b16 %v3834
    %v4576 = vunpack.c.h.b16 %v3834
    %v4577 = vunpack.c.l.b16 %v3835
    %v4578 = vunpack.c.h.b16 %v3835
    %v4579 = vunpack.c.l.b16 %v3836
    %v4580 = vunpack.c.h.b16 %v3836
    %v4581 = vunpack.c.l.b16 %v3837
    %v4582 = vunpack.c.h.b16 %v3837
    %v4583 = vunpack.c.l.b16 %v3838
    %v4584 = vunpack.c.h.b16 %v3838
    %v4585 = vunpack.c.l.b16 %v3839
    %v4586 = vunpack.c.h.b16 %v3839
    %v4587 = vunpack.c.l.b16 %v3840
    %v4588 = vunpack.c.h.b16 %v3840
    %v4589 = vunpack.c.l.b16 %v3841
    %v4590 = vunpack.c.h.b16 %v3841
    %v4591 = vunpack.c.l.b16 %v3842
    %v4592 = vunpack.c.h.b16 %v3842
    %v4593 = vunpack.c.l.b16 %v3843
    %v4594 = vunpack.c.h.b16 %v3843
    %v4595 = vunpack.c.l.b16 %v3844
    %v4596 = vunpack.c.h.b16 %v3844
    %v4597 = vunpack.c.l.b16 %v3845
    %v4598 = vunpack.c.h.b16 %v3845
    %v4599 = vunpack.c.l.b16 %v3846
    %v4600 = vunpack.c.h.b16 %v3846
    %v4601 = vunpack.c.l.b16 %v3847
    %v4602 = vunpack.c.h.b16 %v3847
    %v4603 = vunpack.c.l.b16 %v3848
    %v4604 = vunpack.c.h.b16 %v3848
    %v4605 = vunpack.c.l.b16 %v3849
    %v4606 = vunpack.c.h.b16 %v3849
    %v4607 = vunpack.c.l.b16 %v3850
    %v4608 = vunpack.c.h.b16 %v3850
    %v4609 = vunpack.c.l.b16 %v3851
    %v4610 = vunpack.c.h.b16 %v3851
    %v4611 = vunpack.c.l.b16 %v3852
    %v4612 = vunpack.c.h.b16 %v3852
    %v4613 = vunpack.c.l.b16 %v3853
    %v4614 = vunpack.c.h.b16 %v3853
    %v4615 = vunpack.c.l.b16 %v3854
    %v4616 = vunpack.c.h.b16 %v3854
    %v4617 = vunpack.c.l.b16 %v3855
    %v4618 = vunpack.c.h.b16 %v3855
    %v4619 = vunpack.c.l.b16 %v3856
    %v4620 = vunpack.c.h.b16 %v3856
    %v4621 = vunpack.c.l.b16 %v3857
    %v4622 = vunpack.c.h.b16 %v3857
    %v4623 = vunpack.c.l.b16 %v3858
    %v4624 = vunpack.c.h.b16 %v3858
    %v4625 = vunpack.c.l.b16 %v3859
    %v4626 = vunpack.c.h.b16 %v3859
    %v4627 = vunpack.c.l.b16 %v3860
    %v4628 = vunpack.c.h.b16 %v3860
    %v4629 = vunpack.c.l.b16 %v3861
    %v4630 = vunpack.c.h.b16 %v3861
    %v4631 = vunpack.c.l.b16 %v3862
    %v4632 = vunpack.c.h.b16 %v3862
    %v4633 = vunpack.c.l.b16 %v3863
    %v4634 = vunpack.c.h.b16 %v3863
    %v4635 = vunpack.c.l.b16 %v3864
    %v4636 = vunpack.c.h.b16 %v3864
    %v4637 = vunpack.c.l.b16 %v3865
    %v4638 = vunpack.c.h.b16 %v3865
    %v4639 = vunpack.c.l.b16 %v3866
    %v4640 = vunpack.c.h.b16 %v3866
    %v4641 = vunpack.c.l.b16 %v3867
    %v4642 = vunpack.c.h.b16 %v3867
    %v4643 = vunpack.c.l.b16 %v3868
    %v4644 = vunpack.c.h.b16 %v3868
    %v4645 = vunpack.c.l.b16 %v3869
    %v4646 = vunpack.c.h.b16 %v3869
    %v4647 = vunpack.c.l.b16 %v3870
    %v4648 = vunpack.c.h.b16 %v3870
    %v4649 = vpack.c.b16 %v4141, %v4137
    %v4650 = vpack.c.b16 %v4142, %v4138
    %v4651 = vpack.c.b16 %v4143, %v4139
    %v4652 = vpack.c.b16 %v4144, %v4140
    %v4653 = vpack.c.b16 %v4149, %v4145
    %v4654 = vpack.c.b16 %v4150, %v4146
    %v4655 = vpack.c.b16 %v4151, %v4147
    %v4656 = vpack.c.b16 %v4152, %v4148
    %v4657 = vpack.c.b16 %v4157, %v4153
    %v4658 = vpack.c.b16 %v4158, %v4154
    %v4659 = vpack.c.b16 %v4159, %v4155
    %v4660 = vpack.c.b16 %v4160, %v4156
    %v4661 = vpack.c.b16 %v4165, %v4161
    %v4662 = vpack.c.b16 %v4166, %v4162
    %v4663 = vpack.c.b16 %v4167, %v4163
    %v4664 = vpack.c.b16 %v4168, %v4164
    %v4665 = vpack.c.b16 %v4173, %v4169
    %v4666 = vpack.c.b16 %v4174, %v4170
    %v4667 = vpack.c.b16 %v4175, %v4171
    %v4668 = vpack.c.b16 %v4176, %v4172
    %v4669 = vpack.c.b16 %v4181, %v4177
    %v4670 = vpack.c.b16 %v4182, %v4178
    %v4671 = vpack.c.b16 %v4183, %v4179
    %v4672 = vpack.c.b16 %v4184, %v4180
    %v4673 = vpack.c.b16 %v4189, %v4185
    %v4674 = vpack.c.b16 %v4190, %v4186
    %v4675 = vpack.c.b16 %v4191, %v4187
    %v4676 = vpack.c.b16 %v4192, %v4188
    %v4677 = vpack.c.b16 %v4197, %v4193
    %v4678 = vpack.c.b16 %v4198, %v4194
    %v4679 = vpack.c.b16 %v4199, %v4195
    %v4680 = vpack.c.b16 %v4200, %v4196
    %v4681 = vpack.c.b16 %v4205, %v4201
    %v4682 = vpack.c.b16 %v4206, %v4202
    %v4683 = vpack.c.b16 %v4207, %v4203
    %v4684 = vpack.c.b16 %v4208, %v4204
    %v4685 = vpack.c.b16 %v4213, %v4209
    %v4686 = vpack.c.b16 %v4214, %v4210
    %v4687 = vpack.c.b16 %v4215, %v4211
    %v4688 = vpack.c.b16 %v4216, %v4212
    %v4689 = vpack.c.b16 %v4221, %v4217
    %v4690 = vpack.c.b16 %v4222, %v4218
    %v4691 = vpack.c.b16 %v4223, %v4219
    %v4692 = vpack.c.b16 %v4224, %v4220
    %v4693 = vpack.c.b16 %v4229, %v4225
    %v4694 = vpack.c.b16 %v4230, %v4226
    %v4695 = vpack.c.b16 %v4231, %v4227
    %v4696 = vpack.c.b16 %v4232, %v4228
    %v4697 = vpack.c.b16 %v4237, %v4233
    %v4698 = vpack.c.b16 %v4238, %v4234
    %v4699 = vpack.c.b16 %v4239, %v4235
    %v4700 = vpack.c.b16 %v4240, %v4236
    %v4701 = vpack.c.b16 %v4245, %v4241
    %v4702 = vpack.c.b16 %v4246, %v4242
    %v4703 = vpack.c.b16 %v4247, %v4243
    %v4704 = vpack.c.b16 %v4248, %v4244
    %v4705 = vpack.c.b16 %v4253, %v4249
    %v4706 = vpack.c.b16 %v4254, %v4250
    %v4707 = vpack.c.b16 %v4255, %v4251
    %v4708 = vpack.c.b16 %v4256, %v4252
    %v4709 = vpack.c.b16 %v4261, %v4257
    %v4710 = vpack.c.b16 %v4262, %v4258
    %v4711 = vpack.c.b16 %v4263, %v4259
    %v4712 = vpack.c.b16 %v4264, %v4260
    %v4713 = vpack.c.b16 %v4269, %v4265
    %v4714 = vpack.c.b16 %v4270, %v4266
    %v4715 = vpack.c.b16 %v4271, %v4267
    %v4716 = vpack.c.b16 %v4272, %v4268
    %v4717 = vpack.c.b16 %v4277, %v4273
    %v4718 = vpack.c.b16 %v4278, %v4274
    %v4719 = vpack.c.b16 %v4279, %v4275
    %v4720 = vpack.c.b16 %v4280, %v4276
    %v4721 = vpack.c.b16 %v4285, %v4281
    %v4722 = vpack.c.b16 %v4286, %v4282
    %v4723 = vpack.c.b16 %v4287, %v4283
    %v4724 = vpack.c.b16 %v4288, %v4284
    %v4725 = vpack.c.b16 %v4293, %v4289
    %v4726 = vpack.c.b16 %v4294, %v4290
    %v4727 = vpack.c.b16 %v4295, %v4291
    %v4728 = vpack.c.b16 %v4296, %v4292
    %v4729 = vpack.c.b16 %v4301, %v4297
    %v4730 = vpack.c.b16 %v4302, %v4298
    %v4731 = vpack.c.b16 %v4303, %v4299
    %v4732 = vpack.c.b16 %v4304, %v4300
    %v4733 = vpack.c.b16 %v4309, %v4305
    %v4734 = vpack.c.b16 %v4310, %v4306
    %v4735 = vpack.c.b16 %v4311, %v4307
    %v4736 = vpack.c.b16 %v4312, %v4308
    %v4737 = vpack.c.b16 %v4317, %v4313
    %v4738 = vpack.c.b16 %v4318, %v4314
    %v4739 = vpack.c.b16 %v4319, %v4315
    %v4740 = vpack.c.b16 %v4320, %v4316
    %v4741 = vpack.c.b16 %v4325, %v4321
    %v4742 = vpack.c.b16 %v4326, %v4322
    %v4743 = vpack.c.b16 %v4327, %v4323
    %v4744 = vpack.c.b16 %v4328, %v4324
    %v4745 = vpack.c.b16 %v4333, %v4329
    %v4746 = vpack.c.b16 %v4334, %v4330
    %v4747 = vpack.c.b16 %v4335, %v4331
    %v4748 = vpack.c.b16 %v4336, %v4332
    %v4749 = vpack.c.b16 %v4341, %v4337
    %v4750 = vpack.c.b16 %v4342, %v4338
    %v4751 = vpack.c.b16 %v4343, %v4339
    %v4752 = vpack.c.b16 %v4344, %v4340
    %v4753 = vpack.c.b16 %v4349, %v4345
    %v4754 = vpack.c.b16 %v4350, %v4346
    %v4755 = vpack.c.b16 %v4351, %v4347
    %v4756 = vpack.c.b16 %v4352, %v4348
    %v4757 = vpack.c.b16 %v4357, %v4353
    %v4758 = vpack.c.b16 %v4358, %v4354
    %v4759 = vpack.c.b16 %v4359, %v4355
    %v4760 = vpack.c.b16 %v4360, %v4356
    %v4761 = vpack.c.b16 %v4365, %v4361
    %v4762 = vpack.c.b16 %v4366, %v4362
    %v4763 = vpack.c.b16 %v4367, %v4363
    %v4764 = vpack.c.b16 %v4368, %v4364
    %v4765 = vpack.c.b16 %v4373, %v4369
    %v4766 = vpack.c.b16 %v4374, %v4370
    %v4767 = vpack.c.b16 %v4375, %v4371
    %v4768 = vpack.c.b16 %v4376, %v4372
    %v4769 = vpack.c.b16 %v4381, %v4377
    %v4770 = vpack.c.b16 %v4382, %v4378
    %v4771 = vpack.c.b16 %v4383, %v4379
    %v4772 = vpack.c.b16 %v4384, %v4380
    %v4773 = vpack.c.b16 %v4389, %v4385
    %v4774 = vpack.c.b16 %v4390, %v4386
    %v4775 = vpack.c.b16 %v4391, %v4387
    %v4776 = vpack.c.b16 %v4392, %v4388
    %v4777 = vpack.c.b16 %v4397, %v4393
    %v4778 = vpack.c.b16 %v4398, %v4394
    %v4779 = vpack.c.b16 %v4399, %v4395
    %v4780 = vpack.c.b16 %v4400, %v4396
    %v4781 = vpack.c.b16 %v4405, %v4401
    %v4782 = vpack.c.b16 %v4406, %v4402
    %v4783 = vpack.c.b16 %v4407, %v4403
    %v4784 = vpack.c.b16 %v4408, %v4404
    %v4785 = vpack.c.b16 %v4413, %v4409
    %v4786 = vpack.c.b16 %v4414, %v4410
    %v4787 = vpack.c.b16 %v4415, %v4411
    %v4788 = vpack.c.b16 %v4416, %v4412
    %v4789 = vpack.c.b16 %v4421, %v4417
    %v4790 = vpack.c.b16 %v4422, %v4418
    %v4791 = vpack.c.b16 %v4423, %v4419
    %v4792 = vpack.c.b16 %v4424, %v4420
    %v4793 = vpack.c.b16 %v4429, %v4425
    %v4794 = vpack.c.b16 %v4430, %v4426
    %v4795 = vpack.c.b16 %v4431, %v4427
    %v4796 = vpack.c.b16 %v4432, %v4428
    %v4797 = vpack.c.b16 %v4437, %v4433
    %v4798 = vpack.c.b16 %v4438, %v4434
    %v4799 = vpack.c.b16 %v4439, %v4435
    %v4800 = vpack.c.b16 %v4440, %v4436
    %v4801 = vpack.c.b16 %v4445, %v4441
    %v4802 = vpack.c.b16 %v4446, %v4442
    %v4803 = vpack.c.b16 %v4447, %v4443
    %v4804 = vpack.c.b16 %v4448, %v4444
    %v4805 = vpack.c.b16 %v4453, %v4449
    %v4806 = vpack.c.b16 %v4454, %v4450
    %v4807 = vpack.c.b16 %v4455, %v4451
    %v4808 = vpack.c.b16 %v4456, %v4452
    %v4809 = vpack.c.b16 %v4461, %v4457
    %v4810 = vpack.c.b16 %v4462, %v4458
    %v4811 = vpack.c.b16 %v4463, %v4459
    %v4812 = vpack.c.b16 %v4464, %v4460
    %v4813 = vpack.c.b16 %v4469, %v4465
    %v4814 = vpack.c.b16 %v4470, %v4466
    %v4815 = vpack.c.b16 %v4471, %v4467
    %v4816 = vpack.c.b16 %v4472, %v4468
    %v4817 = vpack.c.b16 %v4477, %v4473
    %v4818 = vpack.c.b16 %v4478, %v4474
    %v4819 = vpack.c.b16 %v4479, %v4475
    %v4820 = vpack.c.b16 %v4480, %v4476
    %v4821 = vpack.c.b16 %v4485, %v4481
    %v4822 = vpack.c.b16 %v4486, %v4482
    %v4823 = vpack.c.b16 %v4487, %v4483
    %v4824 = vpack.c.b16 %v4488, %v4484
    %v4825 = vpack.c.b16 %v4493, %v4489
    %v4826 = vpack.c.b16 %v4494, %v4490
    %v4827 = vpack.c.b16 %v4495, %v4491
    %v4828 = vpack.c.b16 %v4496, %v4492
    %v4829 = vpack.c.b16 %v4501, %v4497
    %v4830 = vpack.c.b16 %v4502, %v4498
    %v4831 = vpack.c.b16 %v4503, %v4499
    %v4832 = vpack.c.b16 %v4504, %v4500
    %v4833 = vpack.c.b16 %v4509, %v4505
    %v4834 = vpack.c.b16 %v4510, %v4506
    %v4835 = vpack.c.b16 %v4511, %v4507
    %v4836 = vpack.c.b16 %v4512, %v4508
    %v4837 = vpack.c.b16 %v4517, %v4513
    %v4838 = vpack.c.b16 %v4518, %v4514
    %v4839 = vpack.c.b16 %v4519, %v4515
    %v4840 = vpack.c.b16 %v4520, %v4516
    %v4841 = vpack.c.b16 %v4525, %v4521
    %v4842 = vpack.c.b16 %v4526, %v4522
    %v4843 = vpack.c.b16 %v4527, %v4523
    %v4844 = vpack.c.b16 %v4528, %v4524
    %v4845 = vpack.c.b16 %v4533, %v4529
    %v4846 = vpack.c.b16 %v4534, %v4530
    %v4847 = vpack.c.b16 %v4535, %v4531
    %v4848 = vpack.c.b16 %v4536, %v4532
    %v4849 = vpack.c.b16 %v4541, %v4537
    %v4850 = vpack.c.b16 %v4542, %v4538
    %v4851 = vpack.c.b16 %v4543, %v4539
    %v4852 = vpack.c.b16 %v4544, %v4540
    %v4853 = vpack.c.b16 %v4549, %v4545
    %v4854 = vpack.c.b16 %v4550, %v4546
    %v4855 = vpack.c.b16 %v4551, %v4547
    %v4856 = vpack.c.b16 %v4552, %v4548
    %v4857 = vpack.c.b16 %v4557, %v4553
    %v4858 = vpack.c.b16 %v4558, %v4554
    %v4859 = vpack.c.b16 %v4559, %v4555
    %v4860 = vpack.c.b16 %v4560, %v4556
    %v4861 = vpack.c.b16 %v4565, %v4561
    %v4862 = vpack.c.b16 %v4566, %v4562
    %v4863 = vpack.c.b16 %v4567, %v4563
    %v4864 = vpack.c.b16 %v4568, %v4564
    %v4865 = vpack.c.b16 %v4573, %v4569
    %v4866 = vpack.c.b16 %v4574, %v4570
    %v4867 = vpack.c.b16 %v4575, %v4571
    %v4868 = vpack.c.b16 %v4576, %v4572
    %v4869 = vpack.c.b16 %v4581, %v4577
    %v4870 = vpack.c.b16 %v4582, %v4578
    %v4871 = vpack.c.b16 %v4583, %v4579
    %v4872 = vpack.c.b16 %v4584, %v4580
    %v4873 = vpack.c.b16 %v4589, %v4585
    %v4874 = vpack.c.b16 %v4590, %v4586
    %v4875 = vpack.c.b16 %v4591, %v4587
    %v4876 = vpack.c.b16 %v4592, %v4588
    %v4877 = vpack.c.b16 %v4597, %v4593
    %v4878 = vpack.c.b16 %v4598, %v4594
    %v4879 = vpack.c.b16 %v4599, %v4595
    %v4880 = vpack.c.b16 %v4600, %v4596
    %v4881 = vpack.c.b16 %v4605, %v4601
    %v4882 = vpack.c.b16 %v4606, %v4602
    %v4883 = vpack.c.b16 %v4607, %v4603
    %v4884 = vpack.c.b16 %v4608, %v4604
    %v4885 = vpack.c.b16 %v4613, %v4609
    %v4886 = vpack.c.b16 %v4614, %v4610
    %v4887 = vpack.c.b16 %v4615, %v4611
    %v4888 = vpack.c.b16 %v4616, %v4612
    %v4889 = vpack.c.b16 %v4621, %v4617
    %v4890 = vpack.c.b16 %v4622, %v4618
    %v4891 = vpack.c.b16 %v4623, %v4619
    %v4892 = vpack.c.b16 %v4624, %v4620
    %v4893 = vpack.c.b16 %v4629, %v4625
    %v4894 = vpack.c.b16 %v4630, %v4626
    %v4895 = vpack.c.b16 %v4631, %v4627
    %v4896 = vpack.c.b16 %v4632, %v4628
    %v4897 = vpack.c.b16 %v4637, %v4633
    %v4898 = vpack.c.b16 %v4638, %v4634
    %v4899 = vpack.c.b16 %v4639, %v4635
    %v4900 = vpack.c.b16 %v4640, %v4636
    %v4901 = vpack.c.b16 %v4645, %v4641
    %v4902 = vpack.c.b16 %v4646, %v4642
    %v4903 = vpack.c.b16 %v4647, %v4643
    %v4904 = vpack.c.b16 %v4648, %v4644
    %5161 = vmatpush.bf16.msra.mxu0 %v4677
    %5162 = vmatpush.bf16.msra.mxu0 %v4673
    %5163 = vmatpush.bf16.msra.mxu0 %v4669
    %5164 = vmatpush.bf16.msra.mxu0 %v4665
    %5165 = vmatpush.bf16.msra.mxu0 %v4661
    %5166 = vmatpush.bf16.msra.mxu0 %v4657
    %5167 = vmatpush.bf16.msra.mxu0 %v4653
    %5168 = vmatpush.bf16.msra.mxu0 %v4649
    %5169 = vmatmul.bf16.gmra.mxu0 %v3607
    %v5170 = vpop.f32.mrf.mxu0
    %v5171 = vadd.f32 %v3873, %v5170
    %v5172 = vpop.f32.mrf.mxu0
    %5173 = vdwg.mxu0
    %5174 = vmatpush.bf16.msra.mxu0 %v4709
    %5175 = vmatpush.bf16.msra.mxu0 %v4705
    %5176 = vmatpush.bf16.msra.mxu0 %v4701
    %5177 = vmatpush.bf16.msra.mxu0 %v4697
    %5178 = vmatpush.bf16.msra.mxu0 %v4693
    %5179 = vmatpush.bf16.msra.mxu0 %v4689
    %5180 = vmatpush.bf16.msra.mxu0 %v4685
    %5181 = vmatpush.bf16.msra.mxu0 %v4681
    %5182 = vmatmul.bf16.gmra.mxu0 %v3608
    %v5183 = vpop.f32.mrf.mxu0
    %v5184 = vadd.f32 %v5171, %v5183
    %v5185 = vpop.f32.mrf.mxu0
    %5186 = vdwg.mxu0
    %5187 = vmatpush.bf16.msra.mxu0 %v4741
    %5188 = vmatpush.bf16.msra.mxu0 %v4737
    %5189 = vmatpush.bf16.msra.mxu0 %v4733
    %5190 = vmatpush.bf16.msra.mxu0 %v4729
    %5191 = vmatpush.bf16.msra.mxu0 %v4725
    %5192 = vmatpush.bf16.msra.mxu0 %v4721
    %5193 = vmatpush.bf16.msra.mxu0 %v4717
    %5194 = vmatpush.bf16.msra.mxu0 %v4713
    %5195 = vmatmul.bf16.gmra.mxu0 %v3609
    %v5196 = vpop.f32.mrf.mxu0
    %v5197 = vadd.f32 %v5184, %v5196
    %v5198 = vpop.f32.mrf.mxu0
    %5199 = vdwg.mxu0
    %5200 = vmatpush.bf16.msra.mxu0 %v4773
    %5201 = vmatpush.bf16.msra.mxu0 %v4769
    %5202 = vmatpush.bf16.msra.mxu0 %v4765
    %5203 = vmatpush.bf16.msra.mxu0 %v4761
    %5204 = vmatpush.bf16.msra.mxu0 %v4757
    %5205 = vmatpush.bf16.msra.mxu0 %v4753
    %5206 = vmatpush.bf16.msra.mxu0 %v4749
    %5207 = vmatpush.bf16.msra.mxu0 %v4745
    %5208 = vmatmul.bf16.gmra.mxu0 %v3610
    %v5209 = vpop.f32.mrf.mxu0
    %v5210 = vadd.f32 %v5197, %v5209
    %v5211 = vpop.f32.mrf.mxu0
    %5212 = vdwg.mxu0
    %5213 = vmatpush.bf16.msra.mxu0 %v4805
    %5214 = vmatpush.bf16.msra.mxu0 %v4801
    %5215 = vmatpush.bf16.msra.mxu0 %v4797
    %5216 = vmatpush.bf16.msra.mxu0 %v4793
    %5217 = vmatpush.bf16.msra.mxu0 %v4789
    %5218 = vmatpush.bf16.msra.mxu0 %v4785
    %5219 = vmatpush.bf16.msra.mxu0 %v4781
    %5220 = vmatpush.bf16.msra.mxu0 %v4777
    %5221 = vmatmul.bf16.gmra.mxu0 %v3611
    %v5222 = vpop.f32.mrf.mxu0
    %v5223 = vadd.f32 %v5210, %v5222
    %v5224 = vpop.f32.mrf.mxu0
    %5225 = vdwg.mxu0
    %5226 = vmatpush.bf16.msra.mxu0 %v4837
    %5227 = vmatpush.bf16.msra.mxu0 %v4833
    %5228 = vmatpush.bf16.msra.mxu0 %v4829
    %5229 = vmatpush.bf16.msra.mxu0 %v4825
    %5230 = vmatpush.bf16.msra.mxu0 %v4821
    %5231 = vmatpush.bf16.msra.mxu0 %v4817
    %5232 = vmatpush.bf16.msra.mxu0 %v4813
    %5233 = vmatpush.bf16.msra.mxu0 %v4809
    %5234 = vmatmul.bf16.gmra.mxu0 %v3612
    %v5235 = vpop.f32.mrf.mxu0
    %v5236 = vadd.f32 %v5223, %v5235
    %v5237 = vpop.f32.mrf.mxu0
    %5238 = vdwg.mxu0
    %5239 = vmatpush.bf16.msra.mxu0 %v4869
    %5240 = vmatpush.bf16.msra.mxu0 %v4865
    %5241 = vmatpush.bf16.msra.mxu0 %v4861
    %5242 = vmatpush.bf16.msra.mxu0 %v4857
    %5243 = vmatpush.bf16.msra.mxu0 %v4853
    %5244 = vmatpush.bf16.msra.mxu0 %v4849
    %5245 = vmatpush.bf16.msra.mxu0 %v4845
    %5246 = vmatpush.bf16.msra.mxu0 %v4841
    %5247 = vmatmul.bf16.gmra.mxu0 %v3613
    %v5248 = vpop.f32.mrf.mxu0
    %v5249 = vadd.f32 %v5236, %v5248
    %v5250 = vpop.f32.mrf.mxu0
    %5251 = vdwg.mxu0
    %5252 = vmatpush.bf16.msra.mxu0 %v4901
    %5253 = vmatpush.bf16.msra.mxu0 %v4897
    %5254 = vmatpush.bf16.msra.mxu0 %v4893
    %5255 = vmatpush.bf16.msra.mxu0 %v4889
    %5256 = vmatpush.bf16.msra.mxu0 %v4885
    %5257 = vmatpush.bf16.msra.mxu0 %v4881
    %5258 = vmatpush.bf16.msra.mxu0 %v4877
    %5259 = vmatpush.bf16.msra.mxu0 %v4873
    %5260 = vmatmul.bf16.gmra.mxu0 %v3614
    %v5261 = vpop.f32.mrf.mxu0
    %v5262 = vadd.f32 %v5249, %v5261
    %v5263 = vpop.f32.mrf.mxu0
    %5264 = vdwg.mxu0
    %5265 = vmatpush.bf16.msra.mxu0 %v4678
    %5266 = vmatpush.bf16.msra.mxu0 %v4674
    %5267 = vmatpush.bf16.msra.mxu0 %v4670
    %5268 = vmatpush.bf16.msra.mxu0 %v4666
    %5269 = vmatpush.bf16.msra.mxu0 %v4662
    %5270 = vmatpush.bf16.msra.mxu0 %v4658
    %5271 = vmatpush.bf16.msra.mxu0 %v4654
    %5272 = vmatpush.bf16.msra.mxu0 %v4650
    %5273 = vmatmul.bf16.gmra.mxu0 %v3607
    %v5274 = vpop.f32.mrf.mxu0
    %v5275 = vadd.f32 %v3874, %v5274
    %v5276 = vpop.f32.mrf.mxu0
    %5277 = vdwg.mxu0
    %5278 = vmatpush.bf16.msra.mxu0 %v4710
    %5279 = vmatpush.bf16.msra.mxu0 %v4706
    %5280 = vmatpush.bf16.msra.mxu0 %v4702
    %5281 = vmatpush.bf16.msra.mxu0 %v4698
    %5282 = vmatpush.bf16.msra.mxu0 %v4694
    %5283 = vmatpush.bf16.msra.mxu0 %v4690
    %5284 = vmatpush.bf16.msra.mxu0 %v4686
    %5285 = vmatpush.bf16.msra.mxu0 %v4682
    %5286 = vmatmul.bf16.gmra.mxu0 %v3608
    %v5287 = vpop.f32.mrf.mxu0
    %v5288 = vadd.f32 %v5275, %v5287
    %v5289 = vpop.f32.mrf.mxu0
    %5290 = vdwg.mxu0
    %5291 = vmatpush.bf16.msra.mxu0 %v4742
    %5292 = vmatpush.bf16.msra.mxu0 %v4738
    %5293 = vmatpush.bf16.msra.mxu0 %v4734
    %5294 = vmatpush.bf16.msra.mxu0 %v4730
    %5295 = vmatpush.bf16.msra.mxu0 %v4726
    %5296 = vmatpush.bf16.msra.mxu0 %v4722
    %5297 = vmatpush.bf16.msra.mxu0 %v4718
    %5298 = vmatpush.bf16.msra.mxu0 %v4714
    %5299 = vmatmul.bf16.gmra.mxu0 %v3609
    %v5300 = vpop.f32.mrf.mxu0
    %v5301 = vadd.f32 %v5288, %v5300
    %v5302 = vpop.f32.mrf.mxu0
    %5303 = vdwg.mxu0
    %5304 = vmatpush.bf16.msra.mxu0 %v4774
    %5305 = vmatpush.bf16.msra.mxu0 %v4770
    %5306 = vmatpush.bf16.msra.mxu0 %v4766
    %5307 = vmatpush.bf16.msra.mxu0 %v4762
    %5308 = vmatpush.bf16.msra.mxu0 %v4758
    %5309 = vmatpush.bf16.msra.mxu0 %v4754
    %5310 = vmatpush.bf16.msra.mxu0 %v4750
    %5311 = vmatpush.bf16.msra.mxu0 %v4746
    %5312 = vmatmul.bf16.gmra.mxu0 %v3610
    %v5313 = vpop.f32.mrf.mxu0
    %v5314 = vadd.f32 %v5301, %v5313
    %v5315 = vpop.f32.mrf.mxu0
    %5316 = vdwg.mxu0
    %5317 = vmatpush.bf16.msra.mxu0 %v4806
    %5318 = vmatpush.bf16.msra.mxu0 %v4802
    %5319 = vmatpush.bf16.msra.mxu0 %v4798
    %5320 = vmatpush.bf16.msra.mxu0 %v4794
    %5321 = vmatpush.bf16.msra.mxu0 %v4790
    %5322 = vmatpush.bf16.msra.mxu0 %v4786
    %5323 = vmatpush.bf16.msra.mxu0 %v4782
    %5324 = vmatpush.bf16.msra.mxu0 %v4778
    %5325 = vmatmul.bf16.gmra.mxu0 %v3611
    %v5326 = vpop.f32.mrf.mxu0
    %v5327 = vadd.f32 %v5314, %v5326
    %v5328 = vpop.f32.mrf.mxu0
    %5329 = vdwg.mxu0
    %5330 = vmatpush.bf16.msra.mxu0 %v4838
    %5331 = vmatpush.bf16.msra.mxu0 %v4834
    %5332 = vmatpush.bf16.msra.mxu0 %v4830
    %5333 = vmatpush.bf16.msra.mxu0 %v4826
    %5334 = vmatpush.bf16.msra.mxu0 %v4822
    %5335 = vmatpush.bf16.msra.mxu0 %v4818
    %5336 = vmatpush.bf16.msra.mxu0 %v4814
    %5337 = vmatpush.bf16.msra.mxu0 %v4810
    %5338 = vmatmul.bf16.gmra.mxu0 %v3612
    %v5339 = vpop.f32.mrf.mxu0
    %v5340 = vadd.f32 %v5327, %v5339
    %v5341 = vpop.f32.mrf.mxu0
    %5342 = vdwg.mxu0
    %5343 = vmatpush.bf16.msra.mxu0 %v4870
    %5344 = vmatpush.bf16.msra.mxu0 %v4866
    %5345 = vmatpush.bf16.msra.mxu0 %v4862
    %5346 = vmatpush.bf16.msra.mxu0 %v4858
    %5347 = vmatpush.bf16.msra.mxu0 %v4854
    %5348 = vmatpush.bf16.msra.mxu0 %v4850
    %5349 = vmatpush.bf16.msra.mxu0 %v4846
    %5350 = vmatpush.bf16.msra.mxu0 %v4842
    %5351 = vmatmul.bf16.gmra.mxu0 %v3613
    %v5352 = vpop.f32.mrf.mxu0
    %v5353 = vadd.f32 %v5340, %v5352
    %v5354 = vpop.f32.mrf.mxu0
    %5355 = vdwg.mxu0
    %5356 = vmatpush.bf16.msra.mxu0 %v4902
    %5357 = vmatpush.bf16.msra.mxu0 %v4898
    %5358 = vmatpush.bf16.msra.mxu0 %v4894
    %5359 = vmatpush.bf16.msra.mxu0 %v4890
    %5360 = vmatpush.bf16.msra.mxu0 %v4886
    %5361 = vmatpush.bf16.msra.mxu0 %v4882
    %5362 = vmatpush.bf16.msra.mxu0 %v4878
    %5363 = vmatpush.bf16.msra.mxu0 %v4874
    %5364 = vmatmul.bf16.gmra.mxu0 %v3614
    %v5365 = vpop.f32.mrf.mxu0
    %v5366 = vadd.f32 %v5353, %v5365
    %v5367 = vpop.f32.mrf.mxu0
    %5368 = vdwg.mxu0
    %5369 = vmatpush.bf16.msra.mxu0 %v4679
    %5370 = vmatpush.bf16.msra.mxu0 %v4675
    %5371 = vmatpush.bf16.msra.mxu0 %v4671
    %5372 = vmatpush.bf16.msra.mxu0 %v4667
    %5373 = vmatpush.bf16.msra.mxu0 %v4663
    %5374 = vmatpush.bf16.msra.mxu0 %v4659
    %5375 = vmatpush.bf16.msra.mxu0 %v4655
    %5376 = vmatpush.bf16.msra.mxu0 %v4651
    %5377 = vmatmul.bf16.gmra.mxu0 %v3607
    %v5378 = vpop.f32.mrf.mxu0
    %v5379 = vadd.f32 %v3875, %v5378
    %v5380 = vpop.f32.mrf.mxu0
    %5381 = vdwg.mxu0
    %5382 = vmatpush.bf16.msra.mxu0 %v4711
    %5383 = vmatpush.bf16.msra.mxu0 %v4707
    %5384 = vmatpush.bf16.msra.mxu0 %v4703
    %5385 = vmatpush.bf16.msra.mxu0 %v4699
    %5386 = vmatpush.bf16.msra.mxu0 %v4695
    %5387 = vmatpush.bf16.msra.mxu0 %v4691
    %5388 = vmatpush.bf16.msra.mxu0 %v4687
    %5389 = vmatpush.bf16.msra.mxu0 %v4683
    %5390 = vmatmul.bf16.gmra.mxu0 %v3608
    %v5391 = vpop.f32.mrf.mxu0
    %v5392 = vadd.f32 %v5379, %v5391
    %v5393 = vpop.f32.mrf.mxu0
    %5394 = vdwg.mxu0
    %5395 = vmatpush.bf16.msra.mxu0 %v4743
    %5396 = vmatpush.bf16.msra.mxu0 %v4739
    %5397 = vmatpush.bf16.msra.mxu0 %v4735
    %5398 = vmatpush.bf16.msra.mxu0 %v4731
    %5399 = vmatpush.bf16.msra.mxu0 %v4727
    %5400 = vmatpush.bf16.msra.mxu0 %v4723
    %5401 = vmatpush.bf16.msra.mxu0 %v4719
    %5402 = vmatpush.bf16.msra.mxu0 %v4715
    %5403 = vmatmul.bf16.gmra.mxu0 %v3609
    %v5404 = vpop.f32.mrf.mxu0
    %v5405 = vadd.f32 %v5392, %v5404
    %v5406 = vpop.f32.mrf.mxu0
    %5407 = vdwg.mxu0
    %5408 = vmatpush.bf16.msra.mxu0 %v4775
    %5409 = vmatpush.bf16.msra.mxu0 %v4771
    %5410 = vmatpush.bf16.msra.mxu0 %v4767
    %5411 = vmatpush.bf16.msra.mxu0 %v4763
    %5412 = vmatpush.bf16.msra.mxu0 %v4759
    %5413 = vmatpush.bf16.msra.mxu0 %v4755
    %5414 = vmatpush.bf16.msra.mxu0 %v4751
    %5415 = vmatpush.bf16.msra.mxu0 %v4747
    %5416 = vmatmul.bf16.gmra.mxu0 %v3610
    %v5417 = vpop.f32.mrf.mxu0
    %v5418 = vadd.f32 %v5405, %v5417
    %v5419 = vpop.f32.mrf.mxu0
    %5420 = vdwg.mxu0
    %5421 = vmatpush.bf16.msra.mxu0 %v4807
    %5422 = vmatpush.bf16.msra.mxu0 %v4803
    %5423 = vmatpush.bf16.msra.mxu0 %v4799
    %5424 = vmatpush.bf16.msra.mxu0 %v4795
    %5425 = vmatpush.bf16.msra.mxu0 %v4791
    %5426 = vmatpush.bf16.msra.mxu0 %v4787
    %5427 = vmatpush.bf16.msra.mxu0 %v4783
    %5428 = vmatpush.bf16.msra.mxu0 %v4779
    %5429 = vmatmul.bf16.gmra.mxu0 %v3611
    %v5430 = vpop.f32.mrf.mxu0
    %v5431 = vadd.f32 %v5418, %v5430
    %v5432 = vpop.f32.mrf.mxu0
    %5433 = vdwg.mxu0
    %5434 = vmatpush.bf16.msra.mxu0 %v4839
    %5435 = vmatpush.bf16.msra.mxu0 %v4835
    %5436 = vmatpush.bf16.msra.mxu0 %v4831
    %5437 = vmatpush.bf16.msra.mxu0 %v4827
    %5438 = vmatpush.bf16.msra.mxu0 %v4823
    %5439 = vmatpush.bf16.msra.mxu0 %v4819
    %5440 = vmatpush.bf16.msra.mxu0 %v4815
    %5441 = vmatpush.bf16.msra.mxu0 %v4811
    %5442 = vmatmul.bf16.gmra.mxu0 %v3612
    %v5443 = vpop.f32.mrf.mxu0
    %v5444 = vadd.f32 %v5431, %v5443
    %v5445 = vpop.f32.mrf.mxu0
    %5446 = vdwg.mxu0
    %5447 = vmatpush.bf16.msra.mxu0 %v4871
    %5448 = vmatpush.bf16.msra.mxu0 %v4867
    %5449 = vmatpush.bf16.msra.mxu0 %v4863
    %5450 = vmatpush.bf16.msra.mxu0 %v4859
    %5451 = vmatpush.bf16.msra.mxu0 %v4855
    %5452 = vmatpush.bf16.msra.mxu0 %v4851
    %5453 = vmatpush.bf16.msra.mxu0 %v4847
    %5454 = vmatpush.bf16.msra.mxu0 %v4843
    %5455 = vmatmul.bf16.gmra.mxu0 %v3613
    %v5456 = vpop.f32.mrf.mxu0
    %v5457 = vadd.f32 %v5444, %v5456
    %v5458 = vpop.f32.mrf.mxu0
    %5459 = vdwg.mxu0
    %5460 = vmatpush.bf16.msra.mxu0 %v4903
    %5461 = vmatpush.bf16.msra.mxu0 %v4899
    %5462 = vmatpush.bf16.msra.mxu0 %v4895
    %5463 = vmatpush.bf16.msra.mxu0 %v4891
    %5464 = vmatpush.bf16.msra.mxu0 %v4887
    %5465 = vmatpush.bf16.msra.mxu0 %v4883
    %5466 = vmatpush.bf16.msra.mxu0 %v4879
    %5467 = vmatpush.bf16.msra.mxu0 %v4875
    %5468 = vmatmul.bf16.gmra.mxu0 %v3614
    %v5469 = vpop.f32.mrf.mxu0
    %v5470 = vadd.f32 %v5457, %v5469
    %v5471 = vpop.f32.mrf.mxu0
    %5472 = vdwg.mxu0
    %5473 = vmatpush.bf16.msra.mxu0 %v4680
    %5474 = vmatpush.bf16.msra.mxu0 %v4676
    %5475 = vmatpush.bf16.msra.mxu0 %v4672
    %5476 = vmatpush.bf16.msra.mxu0 %v4668
    %5477 = vmatpush.bf16.msra.mxu0 %v4664
    %5478 = vmatpush.bf16.msra.mxu0 %v4660
    %5479 = vmatpush.bf16.msra.mxu0 %v4656
    %5480 = vmatpush.bf16.msra.mxu0 %v4652
    %5481 = vmatmul.bf16.gmra.mxu0 %v3607
    %v5482 = vpop.f32.mrf.mxu0
    %v5483 = vadd.f32 %v3876, %v5482
    %v5484 = vpop.f32.mrf.mxu0
    %5485 = vdwg.mxu0
    %5486 = vmatpush.bf16.msra.mxu0 %v4712
    %5487 = vmatpush.bf16.msra.mxu0 %v4708
    %5488 = vmatpush.bf16.msra.mxu0 %v4704
    %5489 = vmatpush.bf16.msra.mxu0 %v4700
    %5490 = vmatpush.bf16.msra.mxu0 %v4696
    %5491 = vmatpush.bf16.msra.mxu0 %v4692
    %5492 = vmatpush.bf16.msra.mxu0 %v4688
    %5493 = vmatpush.bf16.msra.mxu0 %v4684
    %5494 = vmatmul.bf16.gmra.mxu0 %v3608
    %v5495 = vpop.f32.mrf.mxu0
    %v5496 = vadd.f32 %v5483, %v5495
    %v5497 = vpop.f32.mrf.mxu0
    %5498 = vdwg.mxu0
    %5499 = vmatpush.bf16.msra.mxu0 %v4744
    %5500 = vmatpush.bf16.msra.mxu0 %v4740
    %5501 = vmatpush.bf16.msra.mxu0 %v4736
    %5502 = vmatpush.bf16.msra.mxu0 %v4732
    %5503 = vmatpush.bf16.msra.mxu0 %v4728
    %5504 = vmatpush.bf16.msra.mxu0 %v4724
    %5505 = vmatpush.bf16.msra.mxu0 %v4720
    %5506 = vmatpush.bf16.msra.mxu0 %v4716
    %5507 = vmatmul.bf16.gmra.mxu0 %v3609
    %v5508 = vpop.f32.mrf.mxu0
    %v5509 = vadd.f32 %v5496, %v5508
    %v5510 = vpop.f32.mrf.mxu0
    %5511 = vdwg.mxu0
    %5512 = vmatpush.bf16.msra.mxu0 %v4776
    %5513 = vmatpush.bf16.msra.mxu0 %v4772
    %5514 = vmatpush.bf16.msra.mxu0 %v4768
    %5515 = vmatpush.bf16.msra.mxu0 %v4764
    %5516 = vmatpush.bf16.msra.mxu0 %v4760
    %5517 = vmatpush.bf16.msra.mxu0 %v4756
    %5518 = vmatpush.bf16.msra.mxu0 %v4752
    %5519 = vmatpush.bf16.msra.mxu0 %v4748
    %5520 = vmatmul.bf16.gmra.mxu0 %v3610
    %v5521 = vpop.f32.mrf.mxu0
    %v5522 = vadd.f32 %v5509, %v5521
    %v5523 = vpop.f32.mrf.mxu0
    %5524 = vdwg.mxu0
    %5525 = vmatpush.bf16.msra.mxu0 %v4808
    %5526 = vmatpush.bf16.msra.mxu0 %v4804
    %5527 = vmatpush.bf16.msra.mxu0 %v4800
    %5528 = vmatpush.bf16.msra.mxu0 %v4796
    %5529 = vmatpush.bf16.msra.mxu0 %v4792
    %5530 = vmatpush.bf16.msra.mxu0 %v4788
    %5531 = vmatpush.bf16.msra.mxu0 %v4784
    %5532 = vmatpush.bf16.msra.mxu0 %v4780
    %5533 = vmatmul.bf16.gmra.mxu0 %v3611
    %v5534 = vpop.f32.mrf.mxu0
    %v5535 = vadd.f32 %v5522, %v5534
    %v5536 = vpop.f32.mrf.mxu0
    %5537 = vdwg.mxu0
    %5538 = vmatpush.bf16.msra.mxu0 %v4840
    %5539 = vmatpush.bf16.msra.mxu0 %v4836
    %5540 = vmatpush.bf16.msra.mxu0 %v4832
    %5541 = vmatpush.bf16.msra.mxu0 %v4828
    %5542 = vmatpush.bf16.msra.mxu0 %v4824
    %5543 = vmatpush.bf16.msra.mxu0 %v4820
    %5544 = vmatpush.bf16.msra.mxu0 %v4816
    %5545 = vmatpush.bf16.msra.mxu0 %v4812
    %5546 = vmatmul.bf16.gmra.mxu0 %v3612
    %v5547 = vpop.f32.mrf.mxu0
    %v5548 = vadd.f32 %v5535, %v5547
    %v5549 = vpop.f32.mrf.mxu0
    %5550 = vdwg.mxu0
    %5551 = vmatpush.bf16.msra.mxu0 %v4872
    %5552 = vmatpush.bf16.msra.mxu0 %v4868
    %5553 = vmatpush.bf16.msra.mxu0 %v4864
    %5554 = vmatpush.bf16.msra.mxu0 %v4860
    %5555 = vmatpush.bf16.msra.mxu0 %v4856
    %5556 = vmatpush.bf16.msra.mxu0 %v4852
    %5557 = vmatpush.bf16.msra.mxu0 %v4848
    %5558 = vmatpush.bf16.msra.mxu0 %v4844
    %5559 = vmatmul.bf16.gmra.mxu0 %v3613
    %v5560 = vpop.f32.mrf.mxu0
    %v5561 = vadd.f32 %v5548, %v5560
    %v5562 = vpop.f32.mrf.mxu0
    %5563 = vdwg.mxu0
    %5564 = vmatpush.bf16.msra.mxu0 %v4904
    %5565 = vmatpush.bf16.msra.mxu0 %v4900
    %5566 = vmatpush.bf16.msra.mxu0 %v4896
    %5567 = vmatpush.bf16.msra.mxu0 %v4892
    %5568 = vmatpush.bf16.msra.mxu0 %v4888
    %5569 = vmatpush.bf16.msra.mxu0 %v4884
    %5570 = vmatpush.bf16.msra.mxu0 %v4880
    %5571 = vmatpush.bf16.msra.mxu0 %v4876
    %5572 = vmatmul.bf16.gmra.mxu0 %v3614
    %v5573 = vpop.f32.mrf.mxu0
    %v5574 = vadd.f32 %v5561, %v5573
    %v5575 = vpop.f32.mrf.mxu0
    %5576 = vdwg.mxu0
    %vm5577 = vcmp.gt.f32.partialorder %v5262, 0.0
    %vm5578 = vcmp.gt.f32.partialorder %v5366, 0.0
    %vm5579 = vcmp.gt.f32.partialorder %v5470, 0.0
    %vm5580 = vcmp.gt.f32.partialorder %v5574, 0.0
    %v5581 = vmul.f32 %v5262, 0.2
    %v5582 = vmul.f32 %v5366, 0.2
    %v5583 = vmul.f32 %v5470, 0.2
    %v5584 = vmul.f32 %v5574, 0.2
    %v5585 = vsel %vm5577, %v5262, %v5581
    %v5586 = vsel %vm5578, %v5366, %v5582
    %v5587 = vsel %vm5579, %v5470, %v5583
    %v5588 = vsel %vm5580, %v5574, %v5584
    %v5589 = vpack.c.bf16 %v5585, %v5585
    %v5590 = vpack.c.bf16 %v5586, %v5586
    %v5591 = vpack.c.bf16 %v5587, %v5587
    %v5592 = vpack.c.bf16 %v5588, %v5588
    %v5593 = vld [vmem:[#allocation10] sm:$0xff]
    %v5594 = vld [vmem:[#allocation10 + $0x8] sm:$0xff]
    %v5595 = vld [vmem:[#allocation10 + $0x10] sm:$0xff]
    %v5596 = vld [vmem:[#allocation10 + $0x18] sm:$0xff]
    %v5597 = vld [vmem:[#allocation10 + $0x20] sm:$0xff]
    %v5598 = vld [vmem:[#allocation10 + $0x28] sm:$0xff]
    %v5599 = vld [vmem:[#allocation10 + $0x30] sm:$0xff]
    %v5600 = vld [vmem:[#allocation10 + $0x38] sm:$0xff]
    %v5601 = vld [vmem:[#allocation10 + $0x40] sm:$0xff]
    %v5602 = vld [vmem:[#allocation10 + $0x48] sm:$0xff]
    %v5603 = vld [vmem:[#allocation10 + $0x50] sm:$0xff]
    %v5604 = vld [vmem:[#allocation10 + $0x58] sm:$0xff]
    %v5605 = vld [vmem:[#allocation10 + $0x60] sm:$0xff]
    %v5606 = vld [vmem:[#allocation10 + $0x68] sm:$0xff]
    %v5607 = vld [vmem:[#allocation10 + $0x70] sm:$0xff]
    %v5608 = vld [vmem:[#allocation10 + $0x78] sm:$0xff]
    %v5609 = vld [vmem:[#allocation10 + $0x80] sm:$0xff]
    %v5610 = vld [vmem:[#allocation10 + $0x88] sm:$0xff]
    %v5611 = vld [vmem:[#allocation10 + $0x90] sm:$0xff]
    %v5612 = vld [vmem:[#allocation10 + $0x98] sm:$0xff]
    %v5613 = vld [vmem:[#allocation10 + $0xa0] sm:$0xff]
    %v5614 = vld [vmem:[#allocation10 + $0xa8] sm:$0xff]
    %v5615 = vld [vmem:[#allocation10 + $0xb0] sm:$0xff]
    %v5616 = vld [vmem:[#allocation10 + $0xb8] sm:$0xff]
    %v5617 = vld [vmem:[#allocation10 + $0xc0] sm:$0xff]
    %v5618 = vld [vmem:[#allocation10 + $0xc8] sm:$0xff]
    %v5619 = vld [vmem:[#allocation10 + $0xd0] sm:$0xff]
    %v5620 = vld [vmem:[#allocation10 + $0xd8] sm:$0xff]
    %v5621 = vld [vmem:[#allocation10 + $0xe0] sm:$0xff]
    %v5622 = vld [vmem:[#allocation10 + $0xe8] sm:$0xff]
    %v5623 = vld [vmem:[#allocation10 + $0xf0] sm:$0xff]
    %v5624 = vld [vmem:[#allocation10 + $0xf8] sm:$0xff]
    %v5625 = vld [vmem:[#allocation10 + $0x100] sm:$0xff]
    %v5626 = vld [vmem:[#allocation10 + $0x108] sm:$0xff]
    %v5627 = vld [vmem:[#allocation10 + $0x110] sm:$0xff]
    %v5628 = vld [vmem:[#allocation10 + $0x118] sm:$0xff]
    %v5629 = vld [vmem:[#allocation10 + $0x120] sm:$0xff]
    %v5630 = vld [vmem:[#allocation10 + $0x128] sm:$0xff]
    %v5631 = vld [vmem:[#allocation10 + $0x130] sm:$0xff]
    %v5632 = vld [vmem:[#allocation10 + $0x138] sm:$0xff]
    %v5633 = vld [vmem:[#allocation10 + $0x140] sm:$0xff]
    %v5634 = vld [vmem:[#allocation10 + $0x148] sm:$0xff]
    %v5635 = vld [vmem:[#allocation10 + $0x150] sm:$0xff]
    %v5636 = vld [vmem:[#allocation10 + $0x158] sm:$0xff]
    %v5637 = vld [vmem:[#allocation10 + $0x160] sm:$0xff]
    %v5638 = vld [vmem:[#allocation10 + $0x168] sm:$0xff]
    %v5639 = vld [vmem:[#allocation10 + $0x170] sm:$0xff]
    %v5640 = vld [vmem:[#allocation10 + $0x178] sm:$0xff]
    %v5641 = vld [vmem:[#allocation10 + $0x180] sm:$0xff]
    %v5642 = vld [vmem:[#allocation10 + $0x188] sm:$0xff]
    %v5643 = vld [vmem:[#allocation10 + $0x190] sm:$0xff]
    %v5644 = vld [vmem:[#allocation10 + $0x198] sm:$0xff]
    %v5645 = vld [vmem:[#allocation10 + $0x1a0] sm:$0xff]
    %v5646 = vld [vmem:[#allocation10 + $0x1a8] sm:$0xff]
    %v5647 = vld [vmem:[#allocation10 + $0x1b0] sm:$0xff]
    %v5648 = vld [vmem:[#allocation10 + $0x1b8] sm:$0xff]
    %v5649 = vld [vmem:[#allocation10 + $0x1c0] sm:$0xff]
    %v5650 = vld [vmem:[#allocation10 + $0x1c8] sm:$0xff]
    %v5651 = vld [vmem:[#allocation10 + $0x1d0] sm:$0xff]
    %v5652 = vld [vmem:[#allocation10 + $0x1d8] sm:$0xff]
    %v5653 = vld [vmem:[#allocation10 + $0x1e0] sm:$0xff]
    %v5654 = vld [vmem:[#allocation10 + $0x1e8] sm:$0xff]
    %v5655 = vld [vmem:[#allocation10 + $0x1f0] sm:$0xff]
    %v5656 = vld [vmem:[#allocation10 + $0x1f8] sm:$0xff]
    %v5657 = vld [vmem:[#allocation11] sm:$0x3]
    %v5659 = vperm.slane %v5657, 0
    %v5660 = vperm.slane %v5657, 1
    %v5727 = vunpack.c.l.b16 %v5593
    %v5728 = vunpack.c.h.b16 %v5593
    %v5729 = vunpack.c.l.b16 %v5594
    %v5730 = vunpack.c.h.b16 %v5594
    %v5731 = vunpack.c.l.b16 %v5595
    %v5732 = vunpack.c.h.b16 %v5595
    %v5733 = vunpack.c.l.b16 %v5596
    %v5734 = vunpack.c.h.b16 %v5596
    %v5735 = vunpack.c.l.b16 %v5597
    %v5736 = vunpack.c.h.b16 %v5597
    %v5737 = vunpack.c.l.b16 %v5598
    %v5738 = vunpack.c.h.b16 %v5598
    %v5739 = vunpack.c.l.b16 %v5599
    %v5740 = vunpack.c.h.b16 %v5599
    %v5741 = vunpack.c.l.b16 %v5600
    %v5742 = vunpack.c.h.b16 %v5600
    %v5743 = vunpack.c.l.b16 %v5601
    %v5744 = vunpack.c.h.b16 %v5601
    %v5745 = vunpack.c.l.b16 %v5602
    %v5746 = vunpack.c.h.b16 %v5602
    %v5747 = vunpack.c.l.b16 %v5603
    %v5748 = vunpack.c.h.b16 %v5603
    %v5749 = vunpack.c.l.b16 %v5604
    %v5750 = vunpack.c.h.b16 %v5604
    %v5751 = vunpack.c.l.b16 %v5605
    %v5752 = vunpack.c.h.b16 %v5605
    %v5753 = vunpack.c.l.b16 %v5606
    %v5754 = vunpack.c.h.b16 %v5606
    %v5755 = vunpack.c.l.b16 %v5607
    %v5756 = vunpack.c.h.b16 %v5607
    %v5757 = vunpack.c.l.b16 %v5608
    %v5758 = vunpack.c.h.b16 %v5608
    %v5759 = vunpack.c.l.b16 %v5609
    %v5760 = vunpack.c.h.b16 %v5609
    %v5761 = vunpack.c.l.b16 %v5610
    %v5762 = vunpack.c.h.b16 %v5610
    %v5763 = vunpack.c.l.b16 %v5611
    %v5764 = vunpack.c.h.b16 %v5611
    %v5765 = vunpack.c.l.b16 %v5612
    %v5766 = vunpack.c.h.b16 %v5612
    %v5767 = vunpack.c.l.b16 %v5613
    %v5768 = vunpack.c.h.b16 %v5613
    %v5769 = vunpack.c.l.b16 %v5614
    %v5770 = vunpack.c.h.b16 %v5614
    %v5771 = vunpack.c.l.b16 %v5615
    %v5772 = vunpack.c.h.b16 %v5615
    %v5773 = vunpack.c.l.b16 %v5616
    %v5774 = vunpack.c.h.b16 %v5616
    %v5775 = vunpack.c.l.b16 %v5617
    %v5776 = vunpack.c.h.b16 %v5617
    %v5777 = vunpack.c.l.b16 %v5618
    %v5778 = vunpack.c.h.b16 %v5618
    %v5779 = vunpack.c.l.b16 %v5619
    %v5780 = vunpack.c.h.b16 %v5619
    %v5781 = vunpack.c.l.b16 %v5620
    %v5782 = vunpack.c.h.b16 %v5620
    %v5783 = vunpack.c.l.b16 %v5621
    %v5784 = vunpack.c.h.b16 %v5621
    %v5785 = vunpack.c.l.b16 %v5622
    %v5786 = vunpack.c.h.b16 %v5622
    %v5787 = vunpack.c.l.b16 %v5623
    %v5788 = vunpack.c.h.b16 %v5623
    %v5789 = vunpack.c.l.b16 %v5624
    %v5790 = vunpack.c.h.b16 %v5624
    %v5791 = vunpack.c.l.b16 %v5625
    %v5792 = vunpack.c.h.b16 %v5625
    %v5793 = vunpack.c.l.b16 %v5626
    %v5794 = vunpack.c.h.b16 %v5626
    %v5795 = vunpack.c.l.b16 %v5627
    %v5796 = vunpack.c.h.b16 %v5627
    %v5797 = vunpack.c.l.b16 %v5628
    %v5798 = vunpack.c.h.b16 %v5628
    %v5799 = vunpack.c.l.b16 %v5629
    %v5800 = vunpack.c.h.b16 %v5629
    %v5801 = vunpack.c.l.b16 %v5630
    %v5802 = vunpack.c.h.b16 %v5630
    %v5803 = vunpack.c.l.b16 %v5631
    %v5804 = vunpack.c.h.b16 %v5631
    %v5805 = vunpack.c.l.b16 %v5632
    %v5806 = vunpack.c.h.b16 %v5632
    %v5807 = vunpack.c.l.b16 %v5633
    %v5808 = vunpack.c.h.b16 %v5633
    %v5809 = vunpack.c.l.b16 %v5634
    %v5810 = vunpack.c.h.b16 %v5634
    %v5811 = vunpack.c.l.b16 %v5635
    %v5812 = vunpack.c.h.b16 %v5635
    %v5813 = vunpack.c.l.b16 %v5636
    %v5814 = vunpack.c.h.b16 %v5636
    %v5815 = vunpack.c.l.b16 %v5637
    %v5816 = vunpack.c.h.b16 %v5637
    %v5817 = vunpack.c.l.b16 %v5638
    %v5818 = vunpack.c.h.b16 %v5638
    %v5819 = vunpack.c.l.b16 %v5639
    %v5820 = vunpack.c.h.b16 %v5639
    %v5821 = vunpack.c.l.b16 %v5640
    %v5822 = vunpack.c.h.b16 %v5640
    %v5823 = vunpack.c.l.b16 %v5641
    %v5824 = vunpack.c.h.b16 %v5641
    %v5825 = vunpack.c.l.b16 %v5642
    %v5826 = vunpack.c.h.b16 %v5642
    %v5827 = vunpack.c.l.b16 %v5643
    %v5828 = vunpack.c.h.b16 %v5643
    %v5829 = vunpack.c.l.b16 %v5644
    %v5830 = vunpack.c.h.b16 %v5644
    %v5831 = vunpack.c.l.b16 %v5645
    %v5832 = vunpack.c.h.b16 %v5645
    %v5833 = vunpack.c.l.b16 %v5646
    %v5834 = vunpack.c.h.b16 %v5646
    %v5835 = vunpack.c.l.b16 %v5647
    %v5836 = vunpack.c.h.b16 %v5647
    %v5837 = vunpack.c.l.b16 %v5648
    %v5838 = vunpack.c.h.b16 %v5648
    %v5839 = vunpack.c.l.b16 %v5649
    %v5840 = vunpack.c.h.b16 %v5649
    %v5841 = vunpack.c.l.b16 %v5650
    %v5842 = vunpack.c.h.b16 %v5650
    %v5843 = vunpack.c.l.b16 %v5651
    %v5844 = vunpack.c.h.b16 %v5651
    %v5845 = vunpack.c.l.b16 %v5652
    %v5846 = vunpack.c.h.b16 %v5652
    %v5847 = vunpack.c.l.b16 %v5653
    %v5848 = vunpack.c.h.b16 %v5653
    %v5849 = vunpack.c.l.b16 %v5654
    %v5850 = vunpack.c.h.b16 %v5654
    %v5851 = vunpack.c.l.b16 %v5655
    %v5852 = vunpack.c.h.b16 %v5655
    %v5853 = vunpack.c.l.b16 %v5656
    %v5854 = vunpack.c.h.b16 %v5656
    %v5855 = vpack.c.b16 %v5729, %v5727
    %v5856 = vpack.c.b16 %v5730, %v5728
    %v5857 = vpack.c.b16 %v5733, %v5731
    %v5858 = vpack.c.b16 %v5734, %v5732
    %v5859 = vpack.c.b16 %v5737, %v5735
    %v5860 = vpack.c.b16 %v5738, %v5736
    %v5861 = vpack.c.b16 %v5741, %v5739
    %v5862 = vpack.c.b16 %v5742, %v5740
    %v5863 = vpack.c.b16 %v5745, %v5743
    %v5864 = vpack.c.b16 %v5746, %v5744
    %v5865 = vpack.c.b16 %v5749, %v5747
    %v5866 = vpack.c.b16 %v5750, %v5748
    %v5867 = vpack.c.b16 %v5753, %v5751
    %v5868 = vpack.c.b16 %v5754, %v5752
    %v5869 = vpack.c.b16 %v5757, %v5755
    %v5870 = vpack.c.b16 %v5758, %v5756
    %v5871 = vpack.c.b16 %v5761, %v5759
    %v5872 = vpack.c.b16 %v5762, %v5760
    %v5873 = vpack.c.b16 %v5765, %v5763
    %v5874 = vpack.c.b16 %v5766, %v5764
    %v5875 = vpack.c.b16 %v5769, %v5767
    %v5876 = vpack.c.b16 %v5770, %v5768
    %v5877 = vpack.c.b16 %v5773, %v5771
    %v5878 = vpack.c.b16 %v5774, %v5772
    %v5879 = vpack.c.b16 %v5777, %v5775
    %v5880 = vpack.c.b16 %v5778, %v5776
    %v5881 = vpack.c.b16 %v5781, %v5779
    %v5882 = vpack.c.b16 %v5782, %v5780
    %v5883 = vpack.c.b16 %v5785, %v5783
    %v5884 = vpack.c.b16 %v5786, %v5784
    %v5885 = vpack.c.b16 %v5789, %v5787
    %v5886 = vpack.c.b16 %v5790, %v5788
    %v5887 = vpack.c.b16 %v5793, %v5791
    %v5888 = vpack.c.b16 %v5794, %v5792
    %v5889 = vpack.c.b16 %v5797, %v5795
    %v5890 = vpack.c.b16 %v5798, %v5796
    %v5891 = vpack.c.b16 %v5801, %v5799
    %v5892 = vpack.c.b16 %v5802, %v5800
    %v5893 = vpack.c.b16 %v5805, %v5803
    %v5894 = vpack.c.b16 %v5806, %v5804
    %v5895 = vpack.c.b16 %v5809, %v5807
    %v5896 = vpack.c.b16 %v5810, %v5808
    %v5897 = vpack.c.b16 %v5813, %v5811
    %v5898 = vpack.c.b16 %v5814, %v5812
    %v5899 = vpack.c.b16 %v5817, %v5815
    %v5900 = vpack.c.b16 %v5818, %v5816
    %v5901 = vpack.c.b16 %v5821, %v5819
    %v5902 = vpack.c.b16 %v5822, %v5820
    %v5903 = vpack.c.b16 %v5825, %v5823
    %v5904 = vpack.c.b16 %v5826, %v5824
    %v5905 = vpack.c.b16 %v5829, %v5827
    %v5906 = vpack.c.b16 %v5830, %v5828
    %v5907 = vpack.c.b16 %v5833, %v5831
    %v5908 = vpack.c.b16 %v5834, %v5832
    %v5909 = vpack.c.b16 %v5837, %v5835
    %v5910 = vpack.c.b16 %v5838, %v5836
    %v5911 = vpack.c.b16 %v5841, %v5839
    %v5912 = vpack.c.b16 %v5842, %v5840
    %v5913 = vpack.c.b16 %v5845, %v5843
    %v5914 = vpack.c.b16 %v5846, %v5844
    %v5915 = vpack.c.b16 %v5849, %v5847
    %v5916 = vpack.c.b16 %v5850, %v5848
    %v5917 = vpack.c.b16 %v5853, %v5851
    %v5918 = vpack.c.b16 %v5854, %v5852
    %5983 = vmatpush.bf16.msra.mxu0 %v5869
    %5984 = vmatpush.bf16.msra.mxu0 %v5867
    %5985 = vmatpush.bf16.msra.mxu0 %v5865
    %5986 = vmatpush.bf16.msra.mxu0 %v5863
    %5987 = vmatpush.bf16.msra.mxu0 %v5861
    %5988 = vmatpush.bf16.msra.mxu0 %v5859
    %5989 = vmatpush.bf16.msra.mxu0 %v5857
    %5990 = vmatpush.bf16.msra.mxu0 %v5855
    %5991 = vmatmul.bf16.gmra.mxu0 %v5589
    %v5992 = vpop.f32.mrf.mxu0
    %v5993 = vadd.f32 %v5659, %v5992
    %v5994 = vpop.f32.mrf.mxu0
    %5995 = vdwg.mxu0
    %5996 = vmatpush.bf16.msra.mxu0 %v5885
    %5997 = vmatpush.bf16.msra.mxu0 %v5883
    %5998 = vmatpush.bf16.msra.mxu0 %v5881
    %5999 = vmatpush.bf16.msra.mxu0 %v5879
    %6000 = vmatpush.bf16.msra.mxu0 %v5877
    %6001 = vmatpush.bf16.msra.mxu0 %v5875
    %6002 = vmatpush.bf16.msra.mxu0 %v5873
    %6003 = vmatpush.bf16.msra.mxu0 %v5871
    %6004 = vmatmul.bf16.gmra.mxu0 %v5590
    %v6005 = vpop.f32.mrf.mxu0
    %v6006 = vadd.f32 %v5993, %v6005
    %v6007 = vpop.f32.mrf.mxu0
    %6008 = vdwg.mxu0
    %6009 = vmatpush.bf16.msra.mxu0 %v5901
    %6010 = vmatpush.bf16.msra.mxu0 %v5899
    %6011 = vmatpush.bf16.msra.mxu0 %v5897
    %6012 = vmatpush.bf16.msra.mxu0 %v5895
    %6013 = vmatpush.bf16.msra.mxu0 %v5893
    %6014 = vmatpush.bf16.msra.mxu0 %v5891
    %6015 = vmatpush.bf16.msra.mxu0 %v5889
    %6016 = vmatpush.bf16.msra.mxu0 %v5887
    %6017 = vmatmul.bf16.gmra.mxu0 %v5591
    %v6018 = vpop.f32.mrf.mxu0
    %v6019 = vadd.f32 %v6006, %v6018
    %v6020 = vpop.f32.mrf.mxu0
    %6021 = vdwg.mxu0
    %6022 = vmatpush.bf16.msra.mxu0 %v5917
    %6023 = vmatpush.bf16.msra.mxu0 %v5915
    %6024 = vmatpush.bf16.msra.mxu0 %v5913
    %6025 = vmatpush.bf16.msra.mxu0 %v5911
    %6026 = vmatpush.bf16.msra.mxu0 %v5909
    %6027 = vmatpush.bf16.msra.mxu0 %v5907
    %6028 = vmatpush.bf16.msra.mxu0 %v5905
    %6029 = vmatpush.bf16.msra.mxu0 %v5903
    %6030 = vmatmul.bf16.gmra.mxu0 %v5592
    %v6031 = vpop.f32.mrf.mxu0
    %v6032 = vadd.f32 %v6019, %v6031
    %v6033 = vpop.f32.mrf.mxu0
    %6034 = vdwg.mxu0
    %6035 = vmatpush.bf16.msra.mxu0 %v5870
    %6036 = vmatpush.bf16.msra.mxu0 %v5868
    %6037 = vmatpush.bf16.msra.mxu0 %v5866
    %6038 = vmatpush.bf16.msra.mxu0 %v5864
    %6039 = vmatpush.bf16.msra.mxu0 %v5862
    %6040 = vmatpush.bf16.msra.mxu0 %v5860
    %6041 = vmatpush.bf16.msra.mxu0 %v5858
    %6042 = vmatpush.bf16.msra.mxu0 %v5856
    %6043 = vmatmul.bf16.gmra.mxu0 %v5589
    %v6044 = vpop.f32.mrf.mxu0
    %v6045 = vadd.f32 %v5660, %v6044
    %v6046 = vpop.f32.mrf.mxu0
    %6047 = vdwg.mxu0
    %6048 = vmatpush.bf16.msra.mxu0 %v5886
    %6049 = vmatpush.bf16.msra.mxu0 %v5884
    %6050 = vmatpush.bf16.msra.mxu0 %v5882
    %6051 = vmatpush.bf16.msra.mxu0 %v5880
    %6052 = vmatpush.bf16.msra.mxu0 %v5878
    %6053 = vmatpush.bf16.msra.mxu0 %v5876
    %6054 = vmatpush.bf16.msra.mxu0 %v5874
    %6055 = vmatpush.bf16.msra.mxu0 %v5872
    %6056 = vmatmul.bf16.gmra.mxu0 %v5590
    %v6057 = vpop.f32.mrf.mxu0
    %v6058 = vadd.f32 %v6045, %v6057
    %v6059 = vpop.f32.mrf.mxu0
    %6060 = vdwg.mxu0
    %6061 = vmatpush.bf16.msra.mxu0 %v5902
    %6062 = vmatpush.bf16.msra.mxu0 %v5900
    %6063 = vmatpush.bf16.msra.mxu0 %v5898
    %6064 = vmatpush.bf16.msra.mxu0 %v5896
    %6065 = vmatpush.bf16.msra.mxu0 %v5894
    %6066 = vmatpush.bf16.msra.mxu0 %v5892
    %6067 = vmatpush.bf16.msra.mxu0 %v5890
    %6068 = vmatpush.bf16.msra.mxu0 %v5888
    %6069 = vmatmul.bf16.gmra.mxu0 %v5591
    %v6070 = vpop.f32.mrf.mxu0
    %v6071 = vadd.f32 %v6058, %v6070
    %v6072 = vpop.f32.mrf.mxu0
    %6073 = vdwg.mxu0
    %6074 = vmatpush.bf16.msra.mxu0 %v5918
    %6075 = vmatpush.bf16.msra.mxu0 %v5916
    %6076 = vmatpush.bf16.msra.mxu0 %v5914
    %6077 = vmatpush.bf16.msra.mxu0 %v5912
    %6078 = vmatpush.bf16.msra.mxu0 %v5910
    %6079 = vmatpush.bf16.msra.mxu0 %v5908
    %6080 = vmatpush.bf16.msra.mxu0 %v5906
    %6081 = vmatpush.bf16.msra.mxu0 %v5904
    %6082 = vmatmul.bf16.gmra.mxu0 %v5592
    %v6083 = vpop.f32.mrf.mxu0
    %v6084 = vadd.f32 %v6071, %v6083
    %v6085 = vpop.f32.mrf.mxu0
    %6086 = vdwg.mxu0
    %vm6087 = vcmp.gt.f32.partialorder %v6032, 0.0
    %vm6088 = vcmp.gt.f32.partialorder %v6084, 0.0
    %v6089 = vmul.f32 %v6032, 0.2
    %v6090 = vmul.f32 %v6084, 0.2
    %v6091 = vsel %vm6087, %v6032, %v6089
    %v6092 = vsel %vm6088, %v6084, %v6090
    %v6093 = vld [vmem:[#allocation13] sm:$0x3]
    %v6095 = vperm.slane %v6093, 0
    %v6096 = vperm.slane %v6093, 1
    %v6099 = vmul.f32 %v6091, %v6095
    %v6100 = vmul.f32 %v6092, %v6096
    %v6101 = vadd.f32 %v6099, %v6100
    %6102 = vadd.xlane.f32.xlu0 %v6101
    %v6103 = vpop.xlane.xlu0 %6102
    %v6104 = vld [vmem:[#allocation2] sm:$0x1]
    %v6106 = vperm.slane %v6104, 0
    %v6108 = vadd.f32 %v6103, %v6106
    %v6109 = vxor.u32 %v6108, 2147483648
    %v6110 = vmul.f32 %v6109, 1.442695
    %v6111 = vpow.pop %v6110
    %v6112 = vadd.f32 %v6111, 1.0
    %v6113 = vrcp.pop %v6112
    %v6114 = vmul.f32 %v6112, %v6113
    %v6115 = vsub.f32 1.0, %v6114
    %v6116 = vmul.f32 %v6113, %v6115
    %v6117 = vadd.f32 %v6113, %v6116
    %vm6118 = vweird.f32 %v6112
    %vm6119 = vweird.f32 %v6113
    %vm6120 = vmor %vm6118, %vm6119
    %v6121 = vsel %vm6120, %v6113, %v6117
    %v6122 = vand.u32 2147483647, %v6112
    %vm6123 = vcmp.eq.f32.partialorder %v6122, 8.507059e+37
    %v6124 = vand.u32 %v6112, 2147483648
    %v6125 = vor.u32 1.1754944e-38, %v6124
    %v6126 = vsel %vm6123, %v6125, %v6121
    %v6127 = vmul.f32 1.0, %v6126
    %vm6128 = vcmask 7168
    %6129 = vst.msk [vmem:[%s9] sm:$0xff] %vm6128, %v6127
    // Predicated region
    $region66: #{discriminator_forward.1} parent=1 // pred_check
      _
    $region67: #{discriminator_forward.1} parent=1 // pred_check_branch
      %6131 = sbr.rel (0) target = $region69
    $region68: #{discriminator_forward.1} parent=1 // pred_region
      _
    $region69: #{discriminator_forward.1} parent=1 // pred_fallthru
      _
    // Predicated region
    $region70: #{discriminator_forward.1} parent=1 // pred_check
      _
    $region71: #{discriminator_forward.1} parent=1 // pred_check_branch
      %6133 = sbr.rel (0) target = $region73
    $region72: #{discriminator_forward.1} parent=1 // pred_region
      _
    $region73: #{discriminator_forward.1} parent=1 // pred_fallthru
      _
    %6134 = vsyncpa [#allocation4], 1
    %6135 = vsyncpa [#allocation6], 1
    %6136 = vsyncpa [#allocation9], 1
    %6137 = vsyncpa [#allocation12], 1

</llo_original>
